<compile_context>
chip_gen: v7x
topology: tpu7x:2x2x1
jax: 0.10.0
libtpu: 0.0.40
codegen_flags: <defaults>
</compile_context>

<pallas_src>
import functools
import math

import jax
import jax.numpy as jnp
from jax.experimental import pallas as pl
from jax.experimental.pallas import tpu as pltpu


_LANE = 128


# ---------------------------------------------------------------------------
# Pallas kernels (channels-first: x block is (Cin, Nt), out block is (Cout, Nt))
# ---------------------------------------------------------------------------

def _conv_bias_act_kernel(x_ref, w_ref, t_ref, o_ref, *, relu):
    """o = act(W @ x + t). BN scale is already folded into W on the host."""
    y = jnp.dot(w_ref[...], x_ref[...], preferred_element_type=jnp.float32)
    y = y + t_ref[...]                      # (Cout, 1) broadcast over lanes
    if relu:
        y = jnp.maximum(y, 0.0)
    o_ref[...] = y.astype(o_ref.dtype)


def _dual_conv_bias_act_kernel(xa_ref, wa_ref, xb_ref, wb_ref, t_ref, o_ref, *,
                               relu):
    """o = act(Wa @ xa + Wb @ xb + t). BN scale and FFC gates folded into W.

    Two summed MXU calls instead of one K=Ca+Cb matmul: the op is HBM-bound
    (~2 flops/byte) so the extra weight push is free, and it avoids an
    in-VMEM concat of a sub-8-channel operand.
    """
    y = jnp.dot(wa_ref[...], xa_ref[...], preferred_element_type=jnp.float32)
    y = y + jnp.dot(wb_ref[...], xb_ref[...], preferred_element_type=jnp.float32)
    y = y + t_ref[...]
    if relu:
        y = jnp.maximum(y, 0.0)
    o_ref[...] = y.astype(o_ref.dtype)


# ---------------------------------------------------------------------------
# Tiling / VMEM planning
# ---------------------------------------------------------------------------

@functools.lru_cache(maxsize=None)
def _tpu_vmem_bytes():
    # Generation-aware VMEM size (v5e/v6e: 128 MiB, v7x: 64 MiB per TensorCore).
    try:
        v = int(pltpu.get_tpu_info().vmem_capacity_bytes)
        if v > 0:
            return v
    except Exception:
        pass
    return 64 * 1024 * 1024          # conservative fallback (v7x-sized)


def _round_up(v, m):
    return (v + m - 1) // m * m


def _tile_plan(n, per_col_bytes, fixed_bytes):
    """Pick lane tile Nt (multiple of 128, or full n), grid size, vmem limit."""
    vmem = _tpu_vmem_bytes()
    vlim = int(min(vmem * 3 // 4, 112 * 1024 * 1024))
    budget = max(2 << 20, (vlim * 7) // 10 - fixed_bytes)
    max_nt = max(_LANE, (budget // per_col_bytes) // _LANE * _LANE)
    # Parts with small (<100 MiB) VMEM are v7x-like: 2 TensorCores share the
    # chip, so expose at least 2 "parallel" grid steps when n is large enough.
    # On v5e/v6e (1 TC, 128 MiB) prefer one big block per call.
    if vmem < (100 << 20) and n > 2 * _LANE:
        max_nt = min(max_nt, _round_up(pl.cdiv(n, 2), _LANE))
    nt = min(max_nt, _round_up(n, _LANE))
    if nt >= n:
        nt = n                       # full-extent block (no masked lane tail)
    return int(nt), int(pl.cdiv(n, nt)), vlim


# ---------------------------------------------------------------------------
# Pallas wrappers (channels-first activations: (C, B, H, W))
# ---------------------------------------------------------------------------

def conv1x1_bias_act(x, w, t, relu):
    """x: (Cin, B, H, W); w: (Cout, Cin) scale-folded; t: (Cout,) -> (Cout, B, H, W)."""
    cin = x.shape[0]
    cout = w.shape[0]
    spatial = x.shape[1:]
    n = math.prod(spatial)
    xf = x.reshape(cin, n)
    itemsize = jnp.dtype(x.dtype).itemsize
    per_col = 2 * (cin + cout) * itemsize + cout * 4   # dbl-buffered io + f32 temp
    fixed = cout * cin * itemsize + cout * 4
    nt, grid, vlim = _tile_plan(n, per_col, fixed)

    out = pl.pallas_call(
        functools.partial(_conv_bias_act_kernel, relu=relu),
        out_shape=jax.ShapeDtypeStruct((cout, n), x.dtype),
        grid_spec=pltpu.PrefetchScalarGridSpec(
            num_scalar_prefetch=0,
            grid=(grid,),
            in_specs=[
                pl.BlockSpec((cin, nt), lambda i: (0, i)),
                pl.BlockSpec((cout, cin), lambda i: (0, 0)),
                pl.BlockSpec((cout, 1), lambda i: (0, 0)),
            ],
            out_specs=pl.BlockSpec((cout, nt), lambda i: (0, i)),
        ),
        compiler_params=pltpu.CompilerParams(
            dimension_semantics=("parallel",),
            vmem_limit_bytes=vlim),
    )(xf, w.astype(x.dtype), t.reshape(cout, 1).astype(jnp.float32))
    return out.reshape((cout,) + spatial)


def dual_conv1x1_bias_act(xa, wa, xb, wb, t, relu):
    """act(Wa @ xa + Wb @ xb + t); xa: (Ca,B,H,W), xb: (Cb,B,H,W) -> (Cout,B,H,W)."""
    ca = xa.shape[0]
    cb = xb.shape[0]
    cout = wa.shape[0]
    spatial = xa.shape[1:]
    assert xb.shape[1:] == spatial
    n = math.prod(spatial)
    xaf = xa.reshape(ca, n)
    xbf = xb.reshape(cb, n)
    itemsize = max(jnp.dtype(xa.dtype).itemsize, jnp.dtype(xb.dtype).itemsize)
    per_col = 2 * (ca + cb + cout) * itemsize + cout * 4
    fixed = cout * (ca + cb) * itemsize + cout * 4
    nt, grid, vlim = _tile_plan(n, per_col, fixed)

    out = pl.pallas_call(
        functools.partial(_dual_conv_bias_act_kernel, relu=relu),
        out_shape=jax.ShapeDtypeStruct((cout, n), xa.dtype),
        grid_spec=pltpu.PrefetchScalarGridSpec(
            num_scalar_prefetch=0,
            grid=(grid,),
            in_specs=[
                pl.BlockSpec((ca, nt), lambda i: (0, i)),
                pl.BlockSpec((cout, ca), lambda i: (0, 0)),
                pl.BlockSpec((cb, nt), lambda i: (0, i)),
                pl.BlockSpec((cout, cb), lambda i: (0, 0)),
                pl.BlockSpec((cout, 1), lambda i: (0, 0)),
            ],
            out_specs=pl.BlockSpec((cout, nt), lambda i: (0, i)),
        ),
        compiler_params=pltpu.CompilerParams(
            dimension_semantics=("parallel",),
            vmem_limit_bytes=vlim),
    )(xaf, wa.astype(xa.dtype), xbf, wb.astype(xb.dtype),
      t.reshape(cout, 1).astype(jnp.float32))
    return out.reshape((cout,) + spatial)


# ---------------------------------------------------------------------------
# Parameter folding (BN scale + constant FFC gates into the conv weights)
# ---------------------------------------------------------------------------

def _fold_bn(w, scale):
    return w * scale[:, None]


def fold_params(p):
    f = {}
    f["w_s1"] = _fold_bn(p["w_s1"], p["s_s1"]);   f["t_s1"] = p["t_s1"]
    f["w_fu"] = _fold_bn(p["w_fu"], p["s_fu"]);   f["t_fu"] = p["t_fu"]
    f["w_lfu"] = _fold_bn(p["w_lfu"], p["s_lfu"]); f["t_lfu"] = p["t_lfu"]
    # Local branch: out_l = relu(bn_l(convl2l(x_l) + 3 * convg2l(x_g)))
    f["wa_l"] = _fold_bn(p["w_l2l"], p["s_bnl"])
    f["wb_l"] = 3.0 * _fold_bn(p["w_g2l"], p["s_bnl"])      # g2l_gate = 3 (per spec FFC)
    f["t_l"] = p["t_bnl"]
    # Global branch: out_g = relu(bn_g(convl2g(x_l) * 1 + conv2(x1 + fu + xs)))
    f["wa_g"] = 1.0 * _fold_bn(p["w_l2g"], p["s_bng"])      # l2g_gate = 1
    f["wb_g"] = _fold_bn(p["w_s2"], p["s_bng"])             # SpectralTransform.conv2 fused
    f["t_g"] = p["t_bng"]
    return f


# ---------------------------------------------------------------------------
# FFC_BN_ACT forward pipeline (Pallas path, channels-first internal layout)
# ---------------------------------------------------------------------------

def fourier_unit(x, w, t):
    """FourierUnit: rfft2 -> (1x1 conv + folded BN + ReLU on stacked re/im) -> irfft2."""
    # TODO(synk): rfft2/irfft2 have no Pallas equivalent; run via jnp.fft.
    c, b, h, wd = x.shape
    ff = jnp.fft.rfft2(x, norm="ortho")                    # (C, B, H, Wf) complex
    wf = ff.shape[-1]
    ff = jnp.stack([jnp.real(ff), jnp.imag(ff)], axis=1)   # (C, 2, B, H, Wf)
    ff = ff.reshape(2 * c, b, h, wf)
    ff = conv1x1_bias_act(ff, w, t, relu=True)             # fused conv + BN + ReLU
    cout = ff.shape[0] // 2
    ff = ff.reshape(cout, 2, b, h, wf)
    ffc = jax.lax.complex(ff[:, 0], ff[:, 1])
    return jnp.fft.irfft2(ffc, s=(h, wd), norm="ortho")


def ffc_bn_act_forward(x_l, x_g, p):
    """Inputs (B, C, H, W); internal layout (C, B, H, W); outputs (B, C, H, W)."""
    f = fold_params(p)
    xl = jnp.transpose(x_l, (1, 0, 2, 3))
    xg = jnp.transpose(x_g, (1, 0, 2, 3))

    # SpectralTransform (stride=1, groups=1, enable_lfu=True), conv2 deferred.
    x1 = conv1x1_bias_act(xg, f["w_s1"], f["t_s1"], relu=True)   # conv1 + BN + ReLU
    fu = fourier_unit(x1, f["w_fu"], f["t_fu"])
    c, b, h, w = x1.shape
    assert h % 2 == 0 and w % 2 == 0 and c >= 4
    xs = x1[: c // 4]
    xs = jnp.concatenate(jnp.split(xs, 2, axis=2), axis=0)
    xs = jnp.concatenate(jnp.split(xs, 2, axis=3), axis=0)
    xs = fourier_unit(xs, f["w_lfu"], f["t_lfu"])
    xs = jnp.tile(xs, (1, 1, 2, 2))
    y2 = x1 + fu + xs          # conv2 input; conv2 itself is fused into the dual below

    out_l = dual_conv1x1_bias_act(xl, f["wa_l"], xg, f["wb_l"], f["t_l"], relu=True)
    out_g = dual_conv1x1_bias_act(xl, f["wa_g"], y2, f["wb_g"], f["t_g"], relu=True)
    return (jnp.transpose(out_l, (1, 0, 2, 3)),
            jnp.transpose(out_g, (1, 0, 2, 3)))


# ---------------------------------------------------------------------------
# Independent pure-JAX reference (unfolded params, PyTorch (B, C, H, W) layout)
# ---------------------------------------------------------------------------

def _conv1x1_ref(x, w):
    return jnp.einsum("oc,bchw->bohw", w, x, precision=jax.lax.Precision.HIGHEST)


def _bn_act_ref(x, s, t, relu):
    y = x * s[None, :, None, None] + t[None, :, None, None]
    return jnp.maximum(y, 0.0) if relu else y


def _fourier_unit_ref(x, w, s, t):
    b, c, h, wd = x.shape
    ff = jnp.fft.rfft2(x, norm="ortho")
    wf = ff.shape[-1]
    ff = jnp.stack([jnp.real(ff), jnp.imag(ff)], axis=2).reshape(b, 2 * c, h, wf)
    ff = _bn_act_ref(_conv1x1_ref(ff, w), s, t, True)
    ff = ff.reshape(b, c, 2, h, wf)
    ffc = jax.lax.complex(ff[:, :, 0], ff[:, :, 1])
    return jnp.fft.irfft2(ffc, s=(h, wd), norm="ortho")


def _spectral_transform_ref(x_g, p):
    x1 = _bn_act_ref(_conv1x1_ref(x_g, p["w_s1"]), p["s_s1"], p["t_s1"], True)
    fu = _fourier_unit_ref(x1, p["w_fu"], p["s_fu"], p["t_fu"])
    c = x1.shape[1]
    xs = x1[:, : c // 4]
    xs = jnp.concatenate(jnp.split(xs, 2, axis=2), axis=1)
    xs = jnp.concatenate(jnp.split(xs, 2, axis=3), axis=1)
    xs = _fourier_unit_ref(xs, p["w_lfu"], p["s_lfu"], p["t_lfu"])
    xs = jnp.tile(xs, (1, 1, 2, 2))
    return _conv1x1_ref(x1 + fu + xs, p["w_s2"])


def ffc_bn_act_reference(x_l, x_g, p):
    out_l = _conv1x1_ref(x_l, p["w_l2l"]) + 3.0 * _conv1x1_ref(x_g, p["w_g2l"])
    out_g = 1.0 * _conv1x1_ref(x_l, p["w_l2g"]) + _spectral_transform_ref(x_g, p)
    out_l = _bn_act_ref(out_l, p["s_bnl"], p["t_bnl"], True)
    out_g = _bn_act_ref(out_g, p["s_bng"], p["t_bng"], True)
    return out_l, out_g


# ---------------------------------------------------------------------------
# Self-test
# ---------------------------------------------------------------------------

if __name__ == "__main__":
    # FFC_BN_ACT(in_channels=16, out_channels=16, kernel_size=1,
    #            ratio_gin=0.5, ratio_gout=0.5, stride=1, padding=0, groups=1,
    #            bias=False, norm_layer=BatchNorm2d (inference),
    #            activation_layer=ReLU, enable_lfu=True)
    B, H, W = 2, 16, 16
    in_channels = out_channels = 16
    ratio_gin = ratio_gout = 0.5
    in_cg = int(in_channels * ratio_gin)
    in_cl = in_channels - in_cg
    out_cg = int(out_channels * ratio_gout)
    out_cl = out_channels - out_cg
    cg2 = out_cg // 2                      # SpectralTransform hidden channels

    keys = iter(jax.random.split(jax.random.PRNGKey(0), 40))

    def randn(shape, scale=1.0):
        return jax.random.normal(next(keys), shape, dtype=jnp.float32) * scale

    def conv_w(cout, cin):
        return randn((cout, cin), 1.0 / (cin ** 0.5))

    def bn_scale_bias(c, eps=1e-5):
        # Inference-mode BatchNorm folded into per-channel scale/bias.
        gamma = 1.0 + 0.1 * randn((c,))
        beta = 0.1 * randn((c,))
        mean = 0.1 * randn((c,))
        var = 1.0 + 0.1 * jax.random.uniform(next(keys), (c,), dtype=jnp.float32)
        s = gamma * jax.lax.rsqrt(var + eps)
        return s, beta - mean * s

    x_l = randn((B, in_cl, H, W))
    x_g = randn((B, in_cg, H, W))

    p = {}
    p["w_l2l"] = conv_w(out_cl, in_cl)
    p["w_g2l"] = conv_w(out_cl, in_cg)
    p["w_l2g"] = conv_w(out_cg, in_cl)
    p["w_s1"] = conv_w(cg2, in_cg)
    p["s_s1"], p["t_s1"] = bn_scale_bias(cg2)
    p["w_fu"] = conv_w(2 * cg2, 2 * cg2)
    p["s_fu"], p["t_fu"] = bn_scale_bias(2 * cg2)
    p["w_lfu"] = conv_w(2 * cg2, 2 * cg2)
    p["s_lfu"], p["t_lfu"] = bn_scale_bias(2 * cg2)
    p["w_s2"] = conv_w(out_cg, cg2)
    p["s_bnl"], p["t_bnl"] = bn_scale_bias(out_cl)
    p["s_bng"], p["t_bng"] = bn_scale_bias(out_cg)

    fwd = jax.jit(lambda xl, xg: ffc_bn_act_forward(xl, xg, p))
    out_l, out_g = jax.block_until_ready(fwd(x_l, x_g))

    ref_l, ref_g = ffc_bn_act_reference(x_l, x_g, p)

    assert out_l.shape == (B, out_cl, H, W)
    assert out_g.shape == (B, out_cg, H, W)
    assert jnp.allclose(out_l, ref_l, atol=2e-3, rtol=2e-3), "local branch mismatch"
    assert jnp.allclose(out_g, ref_g, atol=2e-3, rtol=2e-3), "global branch mismatch"

    print("KERNEL_OK")
</pallas_src>

<mosaic_0001>
module attributes {stable_mosaic.version = 11 : i64} {
  func.func @_conv_bias_act_kernel(%arg0: i32, %arg1: memref<8x256xf32, #tpu.memory_space<vmem>>, %arg2: memref<4x8xf32, #tpu.memory_space<vmem>>, %arg3: memref<4x1xf32, #tpu.memory_space<vmem>>, %arg4: memref<4x256xf32, #tpu.memory_space<vmem>>) attributes {dimension_semantics = [#tpu.dimension_semantics<parallel>], iteration_bounds = array<i64: 2>, scalar_prefetch = 0 : i64, scratch_operands = 0 : i64, tpu.core_type = #tpu.core_type<tc>, window_params = [{transform_indices = @transform_0, window_bounds = array<i64: 8, 256>}, {pipeline_mode = #tpu.pipeline_mode<synchronous>, transform_indices = @transform_1, window_bounds = array<i64: 4, 8>}, {pipeline_mode = #tpu.pipeline_mode<synchronous>, transform_indices = @transform_2, window_bounds = array<i64: 4, 1>}, {transform_indices = @transform_3, window_bounds = array<i64: 4, 256>}]} {
    %c0 = arith.constant 0 : index
    %c0_0 = arith.constant 0 : index
    %0 = vector.load %arg2[%c0, %c0_0] : memref<4x8xf32, #tpu.memory_space<vmem>>, vector<4x8xf32>
    %c0_1 = arith.constant 0 : index
    %c0_2 = arith.constant 0 : index
    %1 = vector.load %arg1[%c0_1, %c0_2] : memref<8x256xf32, #tpu.memory_space<vmem>>, vector<8x256xf32>
    %cst = arith.constant dense<0.000000e+00> : vector<4x256xf32>
    %2 = tpu.matmul %0, %1, %cst {dimension_numbers = #tpu.dot_dimension_numbers<[1], [0], [0], [1], [0, 0, 1, 1], [], []>} : vector<4x8xf32>, vector<8x256xf32>, vector<4x256xf32> -> vector<4x256xf32>
    %c0_3 = arith.constant 0 : index
    %c0_4 = arith.constant 0 : index
    %3 = vector.load %arg3[%c0_3, %c0_4] : memref<4x1xf32, #tpu.memory_space<vmem>>, vector<4x1xf32>
    %4 = vector.broadcast %3 : vector<4x1xf32> to vector<4x256xf32>
    %5 = arith.addf %2, %4 : vector<4x256xf32>
    %cst_5 = arith.constant 0.000000e+00 : f32
    %6 = vector.broadcast %cst_5 : f32 to vector<4x256xf32>
    %7 = arith.maximumf %5, %6 : vector<4x256xf32>
    %c0_6 = arith.constant 0 : index
    %c0_7 = arith.constant 0 : index
    %8 = vector.load %arg4[%c0_6, %c0_7] : memref<4x256xf32, #tpu.memory_space<vmem>>, vector<4x256xf32>
    tpu.vector_store %arg4[%c0_6, %c0_7], %7 {strides = array<i32>} : memref<4x256xf32, #tpu.memory_space<vmem>>, vector<4x256xf32>,
    return
  }
  func.func @transform_0(%arg0: i32) -> (i32, i32) {
    %c0_i32 = arith.constant 0 : i32
    %c0_i32_0 = arith.constant 0 : i32
    return %c0_i32, %arg0 : i32, i32
  }
  func.func @transform_1(%arg0: i32) -> (i32, i32) {
    %c0_i32 = arith.constant 0 : i32
    %c0_i32_0 = arith.constant 0 : i32
    %c0_i32_1 = arith.constant 0 : i32
    return %c0_i32, %c0_i32_0 : i32, i32
  }
  func.func @transform_2(%arg0: i32) -> (i32, i32) {
    %c0_i32 = arith.constant 0 : i32
    %c0_i32_0 = arith.constant 0 : i32
    %c0_i32_1 = arith.constant 0 : i32
    return %c0_i32, %c0_i32_0 : i32, i32
  }
  func.func @transform_3(%arg0: i32) -> (i32, i32) {
    %c0_i32 = arith.constant 0 : i32
    %c0_i32_0 = arith.constant 0 : i32
    return %c0_i32, %arg0 : i32, i32
  }
}

module attributes {stable_mosaic.version = 11 : i64} {
  func.func @_conv_bias_act_kernel(%arg0: i32, %arg1: memref<8x256xf32, #tpu.memory_space<vmem>>, %arg2: memref<8x8xf32, #tpu.memory_space<vmem>>, %arg3: memref<8x1xf32, #tpu.memory_space<vmem>>, %arg4: memref<8x256xf32, #tpu.memory_space<vmem>>) attributes {dimension_semantics = [#tpu.dimension_semantics<parallel>], iteration_bounds = array<i64: 2>, scalar_prefetch = 0 : i64, scratch_operands = 0 : i64, tpu.core_type = #tpu.core_type<tc>, window_params = [{transform_indices = @transform_0, window_bounds = array<i64: 8, 256>}, {pipeline_mode = #tpu.pipeline_mode<synchronous>, transform_indices = @transform_1, window_bounds = array<i64: 8, 8>}, {pipeline_mode = #tpu.pipeline_mode<synchronous>, transform_indices = @transform_2, window_bounds = array<i64: 8, 1>}, {transform_indices = @transform_3, window_bounds = array<i64: 8, 256>}]} {
    %c0 = arith.constant 0 : index
    %c0_0 = arith.constant 0 : index
    %0 = vector.load %arg2[%c0, %c0_0] : memref<8x8xf32, #tpu.memory_space<vmem>>, vector<8x8xf32>
    %c0_1 = arith.constant 0 : index
    %c0_2 = arith.constant 0 : index
    %1 = vector.load %arg1[%c0_1, %c0_2] : memref<8x256xf32, #tpu.memory_space<vmem>>, vector<8x256xf32>
    %cst = arith.constant dense<0.000000e+00> : vector<8x256xf32>
    %2 = tpu.matmul %0, %1, %cst {dimension_numbers = #tpu.dot_dimension_numbers<[1], [0], [0], [1], [0, 0, 1, 1], [], []>} : vector<8x8xf32>, vector<8x256xf32>, vector<8x256xf32> -> vector<8x256xf32>
    %c0_3 = arith.constant 0 : index
    %c0_4 = arith.constant 0 : index
    %3 = vector.load %arg3[%c0_3, %c0_4] : memref<8x1xf32, #tpu.memory_space<vmem>>, vector<8x1xf32>
    %4 = vector.broadcast %3 : vector<8x1xf32> to vector<8x256xf32>
    %5 = arith.addf %2, %4 : vector<8x256xf32>
    %cst_5 = arith.constant 0.000000e+00 : f32
    %6 = vector.broadcast %cst_5 : f32 to vector<8x256xf32>
    %7 = arith.maximumf %5, %6 : vector<8x256xf32>
    %c0_6 = arith.constant 0 : index
    %c0_7 = arith.constant 0 : index
    %8 = vector.load %arg4[%c0_6, %c0_7] : memref<8x256xf32, #tpu.memory_space<vmem>>, vector<8x256xf32>
    tpu.vector_store %arg4[%c0_6, %c0_7], %7 {strides = array<i32>} : memref<8x256xf32, #tpu.memory_space<vmem>>, vector<8x256xf32>,
    return
  }
  func.func @transform_0(%arg0: i32) -> (i32, i32) {
    %c0_i32 = arith.constant 0 : i32
    %c0_i32_0 = arith.constant 0 : i32
    return %c0_i32, %arg0 : i32, i32
  }
  func.func @transform_1(%arg0: i32) -> (i32, i32) {
    %c0_i32 = arith.constant 0 : i32
    %c0_i32_0 = arith.constant 0 : i32
    %c0_i32_1 = arith.constant 0 : i32
    return %c0_i32, %c0_i32_0 : i32, i32
  }
  func.func @transform_2(%arg0: i32) -> (i32, i32) {
    %c0_i32 = arith.constant 0 : i32
    %c0_i32_0 = arith.constant 0 : i32
    %c0_i32_1 = arith.constant 0 : i32
    return %c0_i32, %c0_i32_0 : i32, i32
  }
  func.func @transform_3(%arg0: i32) -> (i32, i32) {
    %c0_i32 = arith.constant 0 : i32
    %c0_i32_0 = arith.constant 0 : i32
    return %c0_i32, %arg0 : i32, i32
  }
}

module attributes {stable_mosaic.version = 11 : i64} {
  func.func @_conv_bias_act_kernel(%arg0: i32, %arg1: memref<8x80xf32, #tpu.memory_space<vmem>>, %arg2: memref<8x8xf32, #tpu.memory_space<vmem>>, %arg3: memref<8x1xf32, #tpu.memory_space<vmem>>, %arg4: memref<8x80xf32, #tpu.memory_space<vmem>>) attributes {dimension_semantics = [#tpu.dimension_semantics<parallel>], iteration_bounds = array<i64: 1>, scalar_prefetch = 0 : i64, scratch_operands = 0 : i64, tpu.core_type = #tpu.core_type<tc>, window_params = [{transform_indices = @transform_0, window_bounds = array<i64: 8, 80>}, {pipeline_mode = #tpu.pipeline_mode<synchronous>, transform_indices = @transform_1, window_bounds = array<i64: 8, 8>}, {pipeline_mode = #tpu.pipeline_mode<synchronous>, transform_indices = @transform_2, window_bounds = array<i64: 8, 1>}, {transform_indices = @transform_3, window_bounds = array<i64: 8, 80>}]} {
    %c0 = arith.constant 0 : index
    %c0_0 = arith.constant 0 : index
    %0 = vector.load %arg2[%c0, %c0_0] : memref<8x8xf32, #tpu.memory_space<vmem>>, vector<8x8xf32>
    %c0_1 = arith.constant 0 : index
    %c0_2 = arith.constant 0 : index
    %1 = vector.load %arg1[%c0_1, %c0_2] : memref<8x80xf32, #tpu.memory_space<vmem>>, vector<8x80xf32>
    %cst = arith.constant dense<0.000000e+00> : vector<8x80xf32>
    %2 = tpu.matmul %0, %1, %cst {dimension_numbers = #tpu.dot_dimension_numbers<[1], [0], [0], [1], [0, 0, 1, 1], [], []>} : vector<8x8xf32>, vector<8x80xf32>, vector<8x80xf32> -> vector<8x80xf32>
    %c0_3 = arith.constant 0 : index
    %c0_4 = arith.constant 0 : index
    %3 = vector.load %arg3[%c0_3, %c0_4] : memref<8x1xf32, #tpu.memory_space<vmem>>, vector<8x1xf32>
    %4 = vector.broadcast %3 : vector<8x1xf32> to vector<8x80xf32>
    %5 = arith.addf %2, %4 : vector<8x80xf32>
    %cst_5 = arith.constant 0.000000e+00 : f32
    %6 = vector.broadcast %cst_5 : f32 to vector<8x80xf32>
    %7 = arith.maximumf %5, %6 : vector<8x80xf32>
    %c0_6 = arith.constant 0 : index
    %c0_7 = arith.constant 0 : index
    %8 = vector.load %arg4[%c0_6, %c0_7] : memref<8x80xf32, #tpu.memory_space<vmem>>, vector<8x80xf32>
    tpu.vector_store %arg4[%c0_6, %c0_7], %7 {strides = array<i32>} : memref<8x80xf32, #tpu.memory_space<vmem>>, vector<8x80xf32>,
    return
  }
  func.func @transform_0(%arg0: i32) -> (i32, i32) {
    %c0_i32 = arith.constant 0 : i32
    %c0_i32_0 = arith.constant 0 : i32
    return %c0_i32, %arg0 : i32, i32
  }
  func.func @transform_1(%arg0: i32) -> (i32, i32) {
    %c0_i32 = arith.constant 0 : i32
    %c0_i32_0 = arith.constant 0 : i32
    %c0_i32_1 = arith.constant 0 : i32
    return %c0_i32, %c0_i32_0 : i32, i32
  }
  func.func @transform_2(%arg0: i32) -> (i32, i32) {
    %c0_i32 = arith.constant 0 : i32
    %c0_i32_0 = arith.constant 0 : i32
    %c0_i32_1 = arith.constant 0 : i32
    return %c0_i32, %c0_i32_0 : i32, i32
  }
  func.func @transform_3(%arg0: i32) -> (i32, i32) {
    %c0_i32 = arith.constant 0 : i32
    %c0_i32_0 = arith.constant 0 : i32
    return %c0_i32, %arg0 : i32, i32
  }
}

module attributes {stable_mosaic.version = 11 : i64} {
  func.func @_dual_conv_bias_act_kernel(%arg0: i32, %arg1: memref<8x256xf32, #tpu.memory_space<vmem>>, %arg2: memref<8x8xf32, #tpu.memory_space<vmem>>, %arg3: memref<4x256xf32, #tpu.memory_space<vmem>>, %arg4: memref<8x4xf32, #tpu.memory_space<vmem>>, %arg5: memref<8x1xf32, #tpu.memory_space<vmem>>, %arg6: memref<8x256xf32, #tpu.memory_space<vmem>>) attributes {dimension_semantics = [#tpu.dimension_semantics<parallel>], iteration_bounds = array<i64: 2>, scalar_prefetch = 0 : i64, scratch_operands = 0 : i64, tpu.core_type = #tpu.core_type<tc>, window_params = [{transform_indices = @transform_0, window_bounds = array<i64: 8, 256>}, {pipeline_mode = #tpu.pipeline_mode<synchronous>, transform_indices = @transform_1, window_bounds = array<i64: 8, 8>}, {transform_indices = @transform_2, window_bounds = array<i64: 4, 256>}, {pipeline_mode = #tpu.pipeline_mode<synchronous>, transform_indices = @transform_3, window_bounds = array<i64: 8, 4>}, {pipeline_mode = #tpu.pipeline_mode<synchronous>, transform_indices = @transform_4, window_bounds = array<i64: 8, 1>}, {transform_indices = @transform_5, window_bounds = array<i64: 8, 256>}]} {
    %c0 = arith.constant 0 : index
    %c0_0 = arith.constant 0 : index
    %0 = vector.load %arg2[%c0, %c0_0] : memref<8x8xf32, #tpu.memory_space<vmem>>, vector<8x8xf32>
    %c0_1 = arith.constant 0 : index
    %c0_2 = arith.constant 0 : index
    %1 = vector.load %arg1[%c0_1, %c0_2] : memref<8x256xf32, #tpu.memory_space<vmem>>, vector<8x256xf32>
    %cst = arith.constant dense<0.000000e+00> : vector<8x256xf32>
    %2 = tpu.matmul %0, %1, %cst {dimension_numbers = #tpu.dot_dimension_numbers<[1], [0], [0], [1], [0, 0, 1, 1], [], []>} : vector<8x8xf32>, vector<8x256xf32>, vector<8x256xf32> -> vector<8x256xf32>
    %c0_3 = arith.constant 0 : index
    %c0_4 = arith.constant 0 : index
    %3 = vector.load %arg4[%c0_3, %c0_4] : memref<8x4xf32, #tpu.memory_space<vmem>>, vector<8x4xf32>
    %c0_5 = arith.constant 0 : index
    %c0_6 = arith.constant 0 : index
    %4 = vector.load %arg3[%c0_5, %c0_6] : memref<4x256xf32, #tpu.memory_space<vmem>>, vector<4x256xf32>
    %cst_7 = arith.constant dense<0.000000e+00> : vector<8x256xf32>
    %5 = tpu.matmul %3, %4, %cst_7 {dimension_numbers = #tpu.dot_dimension_numbers<[1], [0], [0], [1], [0, 0, 1, 1], [], []>} : vector<8x4xf32>, vector<4x256xf32>, vector<8x256xf32> -> vector<8x256xf32>
    %6 = arith.addf %2, %5 : vector<8x256xf32>
    %c0_8 = arith.constant 0 : index
    %c0_9 = arith.constant 0 : index
    %7 = vector.load %arg5[%c0_8, %c0_9] : memref<8x1xf32, #tpu.memory_space<vmem>>, vector<8x1xf32>
    %8 = vector.broadcast %7 : vector<8x1xf32> to vector<8x256xf32>
    %9 = arith.addf %6, %8 : vector<8x256xf32>
    %cst_10 = arith.constant 0.000000e+00 : f32
    %10 = vector.broadcast %cst_10 : f32 to vector<8x256xf32>
    %11 = arith.maximumf %9, %10 : vector<8x256xf32>
    %c0_11 = arith.constant 0 : index
    %c0_12 = arith.constant 0 : index
    %12 = vector.load %arg6[%c0_11, %c0_12] : memref<8x256xf32, #tpu.memory_space<vmem>>, vector<8x256xf32>
    tpu.vector_store %arg6[%c0_11, %c0_12], %11 {strides = array<i32>} : memref<8x256xf32, #tpu.memory_space<vmem>>, vector<8x256xf32>,
    return
  }
  func.func @transform_0(%arg0: i32) -> (i32, i32) {
    %c0_i32 = arith.constant 0 : i32
    %c0_i32_0 = arith.constant 0 : i32
    return %c0_i32, %arg0 : i32, i32
  }
  func.func @transform_1(%arg0: i32) -> (i32, i32) {
    %c0_i32 = arith.constant 0 : i32
    %c0_i32_0 = arith.constant 0 : i32
    %c0_i32_1 = arith.constant 0 : i32
    return %c0_i32, %c0_i32_0 : i32, i32
  }
  func.func @transform_2(%arg0: i32) -> (i32, i32) {
    %c0_i32 = arith.constant 0 : i32
    %c0_i32_0 = arith.constant 0 : i32
    return %c0_i32, %arg0 : i32, i32
  }
  func.func @transform_3(%arg0: i32) -> (i32, i32) {
    %c0_i32 = arith.constant 0 : i32
    %c0_i32_0 = arith.constant 0 : i32
    %c0_i32_1 = arith.constant 0 : i32
    return %c0_i32, %c0_i32_0 : i32, i32
  }
  func.func @transform_4(%arg0: i32) -> (i32, i32) {
    %c0_i32 = arith.constant 0 : i32
    %c0_i32_0 = arith.constant 0 : i32
    %c0_i32_1 = arith.constant 0 : i32
    return %c0_i32, %c0_i32_0 : i32, i32
  }
  func.func @transform_5(%arg0: i32) -> (i32, i32) {
    %c0_i32 = arith.constant 0 : i32
    %c0_i32_0 = arith.constant 0 : i32
    return %c0_i32, %arg0 : i32, i32
  }
}

module attributes {stable_mosaic.version = 11 : i64} {
  func.func @_dual_conv_bias_act_kernel(%arg0: i32, %arg1: memref<8x256xf32, #tpu.memory_space<vmem>>, %arg2: memref<8x8xf32, #tpu.memory_space<vmem>>, %arg3: memref<8x256xf32, #tpu.memory_space<vmem>>, %arg4: memref<8x8xf32, #tpu.memory_space<vmem>>, %arg5: memref<8x1xf32, #tpu.memory_space<vmem>>, %arg6: memref<8x256xf32, #tpu.memory_space<vmem>>) attributes {dimension_semantics = [#tpu.dimension_semantics<parallel>], iteration_bounds = array<i64: 2>, scalar_prefetch = 0 : i64, scratch_operands = 0 : i64, tpu.core_type = #tpu.core_type<tc>, window_params = [{transform_indices = @transform_0, window_bounds = array<i64: 8, 256>}, {pipeline_mode = #tpu.pipeline_mode<synchronous>, transform_indices = @transform_1, window_bounds = array<i64: 8, 8>}, {transform_indices = @transform_2, window_bounds = array<i64: 8, 256>}, {pipeline_mode = #tpu.pipeline_mode<synchronous>, transform_indices = @transform_3, window_bounds = array<i64: 8, 8>}, {pipeline_mode = #tpu.pipeline_mode<synchronous>, transform_indices = @transform_4, window_bounds = array<i64: 8, 1>}, {transform_indices = @transform_5, window_bounds = array<i64: 8, 256>}]} {
    %c0 = arith.constant 0 : index
    %c0_0 = arith.constant 0 : index
    %0 = vector.load %arg2[%c0, %c0_0] : memref<8x8xf32, #tpu.memory_space<vmem>>, vector<8x8xf32>
    %c0_1 = arith.constant 0 : index
    %c0_2 = arith.constant 0 : index
    %1 = vector.load %arg1[%c0_1, %c0_2] : memref<8x256xf32, #tpu.memory_space<vmem>>, vector<8x256xf32>
    %cst = arith.constant dense<0.000000e+00> : vector<8x256xf32>
    %2 = tpu.matmul %0, %1, %cst {dimension_numbers = #tpu.dot_dimension_numbers<[1], [0], [0], [1], [0, 0, 1, 1], [], []>} : vector<8x8xf32>, vector<8x256xf32>, vector<8x256xf32> -> vector<8x256xf32>
    %c0_3 = arith.constant 0 : index
    %c0_4 = arith.constant 0 : index
    %3 = vector.load %arg4[%c0_3, %c0_4] : memref<8x8xf32, #tpu.memory_space<vmem>>, vector<8x8xf32>
    %c0_5 = arith.constant 0 : index
    %c0_6 = arith.constant 0 : index
    %4 = vector.load %arg3[%c0_5, %c0_6] : memref<8x256xf32, #tpu.memory_space<vmem>>, vector<8x256xf32>
    %cst_7 = arith.constant dense<0.000000e+00> : vector<8x256xf32>
    %5 = tpu.matmul %3, %4, %cst_7 {dimension_numbers = #tpu.dot_dimension_numbers<[1], [0], [0], [1], [0, 0, 1, 1], [], []>} : vector<8x8xf32>, vector<8x256xf32>, vector<8x256xf32> -> vector<8x256xf32>
    %6 = arith.addf %2, %5 : vector<8x256xf32>
    %c0_8 = arith.constant 0 : index
    %c0_9 = arith.constant 0 : index
    %7 = vector.load %arg5[%c0_8, %c0_9] : memref<8x1xf32, #tpu.memory_space<vmem>>, vector<8x1xf32>
    %8 = vector.broadcast %7 : vector<8x1xf32> to vector<8x256xf32>
    %9 = arith.addf %6, %8 : vector<8x256xf32>
    %cst_10 = arith.constant 0.000000e+00 : f32
    %10 = vector.broadcast %cst_10 : f32 to vector<8x256xf32>
    %11 = arith.maximumf %9, %10 : vector<8x256xf32>
    %c0_11 = arith.constant 0 : index
    %c0_12 = arith.constant 0 : index
    %12 = vector.load %arg6[%c0_11, %c0_12] : memref<8x256xf32, #tpu.memory_space<vmem>>, vector<8x256xf32>
    tpu.vector_store %arg6[%c0_11, %c0_12], %11 {strides = array<i32>} : memref<8x256xf32, #tpu.memory_space<vmem>>, vector<8x256xf32>,
    return
  }
  func.func @transform_0(%arg0: i32) -> (i32, i32) {
    %c0_i32 = arith.constant 0 : i32
    %c0_i32_0 = arith.constant 0 : i32
    return %c0_i32, %arg0 : i32, i32
  }
  func.func @transform_1(%arg0: i32) -> (i32, i32) {
    %c0_i32 = arith.constant 0 : i32
    %c0_i32_0 = arith.constant 0 : i32
    %c0_i32_1 = arith.constant 0 : i32
    return %c0_i32, %c0_i32_0 : i32, i32
  }
  func.func @transform_2(%arg0: i32) -> (i32, i32) {
    %c0_i32 = arith.constant 0 : i32
    %c0_i32_0 = arith.constant 0 : i32
    return %c0_i32, %arg0 : i32, i32
  }
  func.func @transform_3(%arg0: i32) -> (i32, i32) {
    %c0_i32 = arith.constant 0 : i32
    %c0_i32_0 = arith.constant 0 : i32
    %c0_i32_1 = arith.constant 0 : i32
    return %c0_i32, %c0_i32_0 : i32, i32
  }
  func.func @transform_4(%arg0: i32) -> (i32, i32) {
    %c0_i32 = arith.constant 0 : i32
    %c0_i32_0 = arith.constant 0 : i32
    %c0_i32_1 = arith.constant 0 : i32
    return %c0_i32, %c0_i32_0 : i32, i32
  }
  func.func @transform_5(%arg0: i32) -> (i32, i32) {
    %c0_i32 = arith.constant 0 : i32
    %c0_i32_0 = arith.constant 0 : i32
    return %c0_i32, %arg0 : i32, i32
  }
}

</mosaic_0001>

<llo_original>
// kernel: _lambda_.6
$region0: #{_lambda_.6}
  #allocation0 [shape = 'u32[]', space=smem, size = 0x4, offset = 0x4, fixed_abs, tag = 'smem constant byte address 0x4 - core index']
  #allocation1 [shape = 'u32[144,128]{1,0:T(1,128)}', space=vmem, size = 0x12000, scoped, tag = 'internal scratch']
  %s0 = inlined_call_operand.vmem [shape: f32[8,512], index: 0, kind: input, shape index: {}]
  %s1 = inlined_call_operand.vmem [shape: f32[4,8], index: 1, kind: input, shape index: {}]
  %s2 = inlined_call_operand.vmem [shape: f32[4,1], index: 2, kind: input, shape index: {}]
  %s3 = inlined_call_operand.vmem [shape: f32[4,512], index: 3, kind: output, shape index: {}]
  %s4 = sld [smem:[#allocation0]]
  $region45: #{_lambda_.6} parent=0
    _
  %s6 = ssub.s32 1, %s4
  %s7 = scalar_select 0, %s6, %s4
  loop: start=0, step=1, limit=4
  $region2: #{_lambda_.6} parent=0 // loop_pre_header
    _
  $region3: #{_lambda_.6} parent=0 // loop_header
    %s9 = sphi 0, %s13
    %p10 = scmp.ge.s32.totalorder %s9, 4
    %s19 = sphi 0, %s21
    %s22 = sphi 0, %s19
    %s23 = sphi 0, %s22
    %s39 = sphi 0, %s23
    %s43 = sphi 0, %s43
    %s45 = sphi 0, %s43
    %s46 = sphi 0, %s45
    %s60 = sphi 0, %s46
    %s64 = sphi 0, %s64
    %s66 = sphi 0, %s64
    %s67 = sphi 0, %s66
    %s81 = sphi 0, %s67
    %s87 = sphi 0, %s89
    %s90 = sphi 0, %s87
    %s91 = sphi 0, %s90
    %s107 = sphi 0, %s91
  $region4: #{_lambda_.6} parent=0 // loop_header_branch
    %12 = sbr.rel (%p10) target = $region8
  $region5: #{_lambda_.6} parent=0 // loop_body
    %s14 = ssub.s32 %s9, 1
    %s15 = ssub.s32 %s9, 2
    %s16 = sadd.s32 %s9, 1
    %s17 = ssub.s32 %s9, %s16
    %p18 = scmp.eq.s32.totalorder %s17, 0
    %s20 = sadd.s32 %s19, 1
    %s21 = scalar_select %p18, %s19, %s20
    %p24 = pneg %p18
    %p25 = scmp.eq.s32.totalorder %s9, 1
    %p26 = por %p24, %p25
    %p27 = scmp.ne.s32.totalorder %s19, %s22
    %p28 = scmp.eq.s32.totalorder %s9, 0
    %p29 = por %p27, %p28
    %p30 = scmp.ne.s32.totalorder %s19, %s22
    %p31 = scmp.eq.s32.totalorder %s14, 1
    %p32 = por %p30, %p31
    %p33 = scmp.ne.s32.totalorder %s22, %s23
    %p34 = scmp.eq.s32.totalorder %s14, 0
    %p35 = por %p33, %p34
    %p36 = scmp.ne.s32.totalorder %s22, %s23
    %p37 = scmp.eq.s32.totalorder %s15, 1
    %p38 = por %p36, %p37
    %p40 = scmp.ne.s32.totalorder %s23, %s39
    %p41 = scmp.eq.s32.totalorder %s15, 0
    %p42 = por %p40, %p41
    %s44 = sadd.s32 %s43, 1
    %p47 = scmp.eq.s32.totalorder %s9, 1
    %p48 = scmp.ne.s32.totalorder %s43, %s45
    %p49 = scmp.eq.s32.totalorder %s9, 0
    %p50 = por %p48, %p49
    %p51 = scmp.ne.s32.totalorder %s43, %s45
    %p52 = scmp.eq.s32.totalorder %s14, 1
    %p53 = por %p51, %p52
    %p54 = scmp.ne.s32.totalorder %s45, %s46
    %p55 = scmp.eq.s32.totalorder %s14, 0
    %p56 = por %p54, %p55
    %p57 = scmp.ne.s32.totalorder %s45, %s46
    %p58 = scmp.eq.s32.totalorder %s15, 1
    %p59 = por %p57, %p58
    %p61 = scmp.ne.s32.totalorder %s46, %s60
    %p62 = scmp.eq.s32.totalorder %s15, 0
    %p63 = por %p61, %p62
    %s65 = sadd.s32 %s64, 1
    %p68 = scmp.eq.s32.totalorder %s9, 1
    %p69 = scmp.ne.s32.totalorder %s64, %s66
    %p70 = scmp.eq.s32.totalorder %s9, 0
    %p71 = por %p69, %p70
    %p72 = scmp.ne.s32.totalorder %s64, %s66
    %p73 = scmp.eq.s32.totalorder %s14, 1
    %p74 = por %p72, %p73
    %p75 = scmp.ne.s32.totalorder %s66, %s67
    %p76 = scmp.eq.s32.totalorder %s14, 0
    %p77 = por %p75, %p76
    %p78 = scmp.ne.s32.totalorder %s66, %s67
    %p79 = scmp.eq.s32.totalorder %s15, 1
    %p80 = por %p78, %p79
    %p82 = scmp.ne.s32.totalorder %s67, %s81
    %p83 = scmp.eq.s32.totalorder %s15, 0
    %p84 = por %p82, %p83
    %s85 = ssub.s32 %s9, %s16
    %p86 = scmp.eq.s32.totalorder %s85, 0
    %s88 = sadd.s32 %s87, 1
    %s89 = scalar_select %p86, %s87, %s88
    %p92 = pneg %p86
    %p93 = scmp.eq.s32.totalorder %s9, 1
    %p94 = por %p92, %p93
    %p95 = scmp.ne.s32.totalorder %s87, %s90
    %p96 = scmp.eq.s32.totalorder %s9, 0
    %p97 = por %p95, %p96
    %p98 = scmp.ne.s32.totalorder %s87, %s90
    %p99 = scmp.eq.s32.totalorder %s14, 1
    %p100 = por %p98, %p99
    %p101 = scmp.ne.s32.totalorder %s90, %s91
    %p102 = scmp.eq.s32.totalorder %s14, 0
    %p103 = por %p101, %p102
    %p104 = scmp.ne.s32.totalorder %s90, %s91
    %p105 = scmp.eq.s32.totalorder %s15, 1
    %p106 = por %p104, %p105
    %p108 = scmp.ne.s32.totalorder %s91, %s107
    %p109 = scmp.eq.s32.totalorder %s15, 0
    %p110 = por %p108, %p109
    %p111 = scmp.le.s32.totalorder 1, %s9
    %p112 = scmp.lt.s32.totalorder %s9, 3
    %p113 = pnand %p111, %p112
    %p114 = pneg %p113
    // Predicated region
    $region9: #{_lambda_.6} parent=5 // pred_check
      _
    $region10: #{_lambda_.6} parent=5 // pred_check_branch
      %116 = sbr.rel (%p113) target = $region12
    $region11: #{_lambda_.6} parent=5 // pred_region
      %s117 = ssub.s32 %s9, 1
      // Predicated region
      $region13: #{_lambda_.6} parent=11 // pred_check
        %p118 = pneg %p56
      $region14: #{_lambda_.6} parent=11 // pred_check_branch
        %120 = sbr.rel (%p118) target = $region16
      $region15: #{_lambda_.6} parent=11 // pred_region
        _
      $region16: #{_lambda_.6} parent=11 // pred_fallthru
        _
      // Predicated region
      $region17: #{_lambda_.6} parent=11 // pred_check
        %p121 = pneg %p77
      $region18: #{_lambda_.6} parent=11 // pred_check_branch
        %123 = sbr.rel (%p121) target = $region20
      $region19: #{_lambda_.6} parent=11 // pred_region
        _
      $region20: #{_lambda_.6} parent=11 // pred_fallthru
        _
    $region12: #{_lambda_.6} parent=5 // pred_fallthru
      _
    %p124 = scmp.lt.s32.totalorder %s9, 2
    // Predicated region
    $region21: #{_lambda_.6} parent=5 // pred_check
      %p125 = pneg %p124
    $region22: #{_lambda_.6} parent=5 // pred_check_branch
      %127 = sbr.rel (%p125) target = $region24
    $region23: #{_lambda_.6} parent=5 // pred_region
      // Predicated region
      $region25: #{_lambda_.6} parent=23 // pred_check
        %p128 = pneg %p29
      $region26: #{_lambda_.6} parent=23 // pred_check_branch
        %130 = sbr.rel (%p128) target = $region28
      $region27: #{_lambda_.6} parent=23 // pred_region
        %s131 = smul.u32 2, %s9
        %p132 = scmp.lt.s32.totalorder %s131, 3
        %s133 = scalar_select %p132, %s131, 3
        %s134 = smul.addr %s133, 8
        %s135 = scalar_lea.vmem %s0, %s134
        %s136 = smul.u32 2, %s9
      $region28: #{_lambda_.6} parent=23 // pred_fallthru
        _
    $region24: #{_lambda_.6} parent=5 // pred_fallthru
      _
    %p137 = scmp.le.s32.totalorder 1, %s9
    %p138 = scmp.lt.s32.totalorder %s9, 3
    %p139 = pnand %p137, %p138
    %p140 = pneg %p139
    // Predicated region
    $region29: #{_lambda_.6} parent=5 // pred_check
      _
    $region30: #{_lambda_.6} parent=5 // pred_check_branch
      %142 = sbr.rel (%p139) target = $region32
    $region31: #{_lambda_.6} parent=5 // pred_region
      %s143 = ssub.s32 %s9, 1
      %s144 = smul.u32 2, %s14
      %p145 = scmp.lt.s32.totalorder %s144, 3
      %s146 = scalar_select %p145, %s144, 3
      %s147 = smul.addr %s146, 8
      %s148 = scalar_lea.vmem %s0, %s147
      %p149 = pneg %p35
      %p150 = pneg %p32
      %p151 = pneg %p56
      %p152 = pneg %p53
      %p153 = pneg %p77
      %p154 = pneg %p74
      %p155 = pneg %p103
      %p156 = pneg %p100
      %s157 = smul.u32 2, %s14
      %p158 = scmp.lt.s32.totalorder %s157, 3
      %s159 = scalar_select %p158, %s157, 3
      %s160 = smul.addr %s159, 4
      %s161 = scalar_lea.vmem %s3, %s160
      %s162 = smul.u32 2, %s14
      %p163 = scmp.lt.s32.totalorder %s162, 3
      %s164 = scalar_select %p163, %s162, 3
      %s165 = smul.addr %s164, 8
      %s166 = scalar_lea.vmem %s0, %s165
      %s167 = smul.u32 2, %s14
      %s168 = smul.u32 2, %s14
      %p169 = scmp.lt.s32.totalorder %s168, 3
      %s170 = scalar_select %p169, %s168, 3
      %s171 = smul.addr %s170, 4
      %s172 = scalar_lea.vmem %s3, %s171
      %s173 = smul.u32 2, %s14
      %v174 = vld [vmem:[%s1] sm:$0xf]
      %v175 = vld [vmem:[%s166] sm:$0xff]
      %v176 = vld [vmem:[%s166 + $0x8] sm:$0xff]
      %v177 = vld [vmem:[%s2] sm:$0xf]
      %179 = vset.pattern.permute.xlu0 0
      %180 = vperm.xlu0 %179, %v177
      %v181 = vpop.permute.xlu0 %180
      %vm183 = vcmask 64512
      %v185 = vsel %vm183, %v174, 0
      %187 = vmatprep.subr.mxu0 %v176
      %188 = vmatpush1.msra.mxu0 %v175
      %189 = vmatprep.subr.mxu0 0.0
      %190 = vmatpush1.msra.mxu0 0.0
      %191 = vmatprep.subr.mxu0 0.0
      %192 = vmatpush1.msra.mxu0 0.0
      %193 = vmatprep.subr.mxu0 0.0
      %194 = vmatpush1.msra.mxu0 0.0
      %195 = vmatprep.subr.mxu0 0.0
      %196 = vmatpush1.msra.mxu0 0.0
      %197 = vmatprep.subr.mxu0 0.0
      %198 = vmatpush1.msra.mxu0 0.0
      %199 = vmatprep.subr.mxu0 0.0
      %200 = vmatpush1.msra.mxu0 0.0
      %201 = vmatprep.subr.mxu0 0.0
      %202 = vmatpush1.msra.mxu0 0.0
      %203 = vmatprep.subr.mxu0 0.0
      %204 = vmatpush1.msra.mxu0 0.0
      %205 = vmatprep.subr.mxu0 0.0
      %206 = vmatpush1.msra.mxu0 0.0
      %207 = vmatprep.subr.mxu0 0.0
      %208 = vmatpush1.msra.mxu0 0.0
      %209 = vmatprep.subr.mxu0 0.0
      %210 = vmatpush1.msra.mxu0 0.0
      %211 = vmatprep.subr.mxu0 0.0
      %212 = vmatpush1.msra.mxu0 0.0
      %213 = vmatprep.subr.mxu0 0.0
      %214 = vmatpush1.msra.mxu0 0.0
      %215 = vmatprep.subr.mxu0 0.0
      %216 = vmatpush1.msra.mxu0 0.0
      %217 = vmatprep.subr.mxu0 0.0
      %218 = vmatpush1.msra.mxu0 0.0
      %219 = vmatprep.subr.mxu0 0.0
      %220 = vmatpush1.msra.mxu0 0.0
      %221 = vmatprep.subr.mxu0 0.0
      %222 = vmatpush1.msra.mxu0 0.0
      %223 = vmatprep.subr.mxu0 0.0
      %224 = vmatpush1.msra.mxu0 0.0
      %225 = vmatprep.subr.mxu0 0.0
      %226 = vmatpush1.msra.mxu0 0.0
      %227 = vmatprep.subr.mxu0 0.0
      %228 = vmatpush1.msra.mxu0 0.0
      %229 = vmatprep.subr.mxu0 0.0
      %230 = vmatpush1.msra.mxu0 0.0
      %231 = vmatprep.subr.mxu0 0.0
      %232 = vmatpush1.msra.mxu0 0.0
      %233 = vmatprep.subr.mxu0 0.0
      %234 = vmatpush1.msra.mxu0 0.0
      %235 = vmatprep.subr.mxu0 0.0
      %236 = vmatpush1.msra.mxu0 0.0
      %237 = vmatprep.subr.mxu0 0.0
      %238 = vmatpush1.msra.mxu0 0.0
      %239 = vmatprep.subr.mxu0 0.0
      %240 = vmatpush1.msra.mxu0 0.0
      %241 = vmatprep.subr.mxu0 0.0
      %242 = vmatpush1.msra.mxu0 0.0
      %243 = vmatprep.subr.mxu0 0.0
      %244 = vmatpush1.msra.mxu0 0.0
      %245 = vmatprep.subr.mxu0 0.0
      %246 = vmatpush1.msra.mxu0 0.0
      %247 = vmatprep.subr.mxu0 0.0
      %248 = vmatpush1.msra.mxu0 0.0
      %249 = vmatprep.subr.mxu0 0.0
      %250 = vmatpush1.msra.mxu0 0.0
      %251 = vmatprep.mubr.f32.mxu0 0.0
      %252 = vmatmul.mubr.f32.gmra.mrb[0].mxu0 %v185
      %v253 = vpop.f32.mrb[0].mxu0
      %v254 = vadd.f32 %v181, %v253
      %v255 = vpop.f32.mrb[0].mxu0
      %v256 = vadd.f32 %v181, %v255
      %257 = vdwg.mxu0
      %v258 = vmax.f32 %v254, 0.0
      %v259 = vmax.f32 %v256, 0.0
      %v262 = vcombine.low %v258, %v259
      %264 = vst [vmem:[%s172] sm:$0xff] %v262
      %s265 = smul.u32 2, %s14
      %p266 = scmp.lt.s32.totalorder %s265, 3
      %s267 = scalar_select %p266, %s265, 3
      %s268 = smul.addr %s267, 4
      %s269 = scalar_lea.vmem %s3, %s268
      // Predicated region
      $region33: #{_lambda_.6} parent=31 // pred_check
        %p270 = pneg %p100
      $region34: #{_lambda_.6} parent=31 // pred_check_branch
        %272 = sbr.rel (%p270) target = $region36
      $region35: #{_lambda_.6} parent=31 // pred_region
        %s273 = smul.u32 2, %s14
      $region36: #{_lambda_.6} parent=31 // pred_fallthru
        _
    $region32: #{_lambda_.6} parent=5 // pred_fallthru
      _
    %p274 = scmp.le.s32.totalorder 2, %s9
    // Predicated region
    $region37: #{_lambda_.6} parent=5 // pred_check
      %p275 = pneg %p274
    $region38: #{_lambda_.6} parent=5 // pred_check_branch
      %277 = sbr.rel (%p275) target = $region40
    $region39: #{_lambda_.6} parent=5 // pred_region
      %s278 = ssub.s32 %s9, 2
      // Predicated region
      $region41: #{_lambda_.6} parent=39 // pred_check
        %p279 = pneg %p106
      $region42: #{_lambda_.6} parent=39 // pred_check_branch
        %281 = sbr.rel (%p279) target = $region44
      $region43: #{_lambda_.6} parent=39 // pred_region
        %s282 = smul.u32 2, %s15
        %p283 = scmp.lt.s32.totalorder %s282, 3
        %s284 = scalar_select %p283, %s282, 3
        %s285 = smul.addr %s284, 4
        %s286 = scalar_lea.vmem %s3, %s285
      $region44: #{_lambda_.6} parent=39 // pred_fallthru
        _
    $region40: #{_lambda_.6} parent=5 // pred_fallthru
      _
  $region6: #{_lambda_.6} parent=0 // loop_footer
    %s13 = sadd.s32 1, %s9
  $region7: #{_lambda_.6} parent=0 // loop_footer_branch
    %8 = sbr.rel target = $region3
  $region8: #{_lambda_.6} parent=0 // loop_exit
    _

// kernel: _lambda_.7
$region0: #{_lambda_.7}
  #allocation0 [shape = 'u32[]', space=smem, size = 0x4, offset = 0x4, fixed_abs, tag = 'smem constant byte address 0x4 - core index']
  #allocation1 [shape = 'u32[144,128]{1,0:T(1,128)}', space=vmem, size = 0x12000, scoped, tag = 'internal scratch']
  %s0 = inlined_call_operand.vmem [shape: f32[8,288], index: 0, kind: input, shape index: {}]
  %s1 = inlined_call_operand.vmem [shape: f32[8,8], index: 1, kind: input, shape index: {}]
  %s2 = inlined_call_operand.vmem [shape: f32[8,1], index: 2, kind: input, shape index: {}]
  %s3 = inlined_call_operand.vmem [shape: f32[8,288], index: 3, kind: output, shape index: {}]
  %s4 = sld [smem:[#allocation0]]
  $region107: #{_lambda_.7} parent=0
    _
  %s6 = ssub.s32 1, %s4
  %s7 = scalar_select 0, %s6, %s4
  $region1: #{_lambda_.7} parent=0
    #allocation2 [shape = 'u8[16384]{0}', space=vmem, size = 0x4000, scoped, tag = 'output window, operand 0']
    loop: start=0, step=1, limit=4
    $region2: #{_lambda_.7} parent=1 // loop_pre_header
      _
    $region3: #{_lambda_.7} parent=1 // loop_header
      %s9 = sphi 0, %s13
      %p10 = scmp.ge.s32.totalorder %s9, 4
      %s19 = sphi 0, %s21
      %s22 = sphi 0, %s19
      %s23 = sphi 0, %s22
      %s39 = sphi 0, %s23
      %s43 = sphi 0, %s43
      %s45 = sphi 0, %s43
      %s46 = sphi 0, %s45
      %s60 = sphi 0, %s46
      %s64 = sphi 0, %s64
      %s66 = sphi 0, %s64
      %s67 = sphi 0, %s66
      %s81 = sphi 0, %s67
      %s87 = sphi 0, %s89
      %s90 = sphi 0, %s87
      %s91 = sphi 0, %s90
      %s107 = sphi 0, %s91
    $region4: #{_lambda_.7} parent=1 // loop_header_branch
      %12 = sbr.rel (%p10) target = $region8
    $region5: #{_lambda_.7} parent=1 // loop_body
      %s14 = ssub.s32 %s9, 1
      %s15 = ssub.s32 %s9, 2
      %s16 = sadd.s32 %s9, 1
      %s17 = ssub.s32 %s9, %s16
      %p18 = scmp.eq.s32.totalorder %s17, 0
      %s20 = sadd.s32 %s19, 1
      %s21 = scalar_select %p18, %s19, %s20
      %p24 = pneg %p18
      %p25 = scmp.eq.s32.totalorder %s9, 1
      %p26 = por %p24, %p25
      %p27 = scmp.ne.s32.totalorder %s19, %s22
      %p28 = scmp.eq.s32.totalorder %s9, 0
      %p29 = por %p27, %p28
      %p30 = scmp.ne.s32.totalorder %s19, %s22
      %p31 = scmp.eq.s32.totalorder %s14, 1
      %p32 = por %p30, %p31
      %p33 = scmp.ne.s32.totalorder %s22, %s23
      %p34 = scmp.eq.s32.totalorder %s14, 0
      %p35 = por %p33, %p34
      %p36 = scmp.ne.s32.totalorder %s22, %s23
      %p37 = scmp.eq.s32.totalorder %s15, 1
      %p38 = por %p36, %p37
      %p40 = scmp.ne.s32.totalorder %s23, %s39
      %p41 = scmp.eq.s32.totalorder %s15, 0
      %p42 = por %p40, %p41
      %s44 = sadd.s32 %s43, 1
      %p47 = scmp.eq.s32.totalorder %s9, 1
      %p48 = scmp.ne.s32.totalorder %s43, %s45
      %p49 = scmp.eq.s32.totalorder %s9, 0
      %p50 = por %p48, %p49
      %p51 = scmp.ne.s32.totalorder %s43, %s45
      %p52 = scmp.eq.s32.totalorder %s14, 1
      %p53 = por %p51, %p52
      %p54 = scmp.ne.s32.totalorder %s45, %s46
      %p55 = scmp.eq.s32.totalorder %s14, 0
      %p56 = por %p54, %p55
      %p57 = scmp.ne.s32.totalorder %s45, %s46
      %p58 = scmp.eq.s32.totalorder %s15, 1
      %p59 = por %p57, %p58
      %p61 = scmp.ne.s32.totalorder %s46, %s60
      %p62 = scmp.eq.s32.totalorder %s15, 0
      %p63 = por %p61, %p62
      %s65 = sadd.s32 %s64, 1
      %p68 = scmp.eq.s32.totalorder %s9, 1
      %p69 = scmp.ne.s32.totalorder %s64, %s66
      %p70 = scmp.eq.s32.totalorder %s9, 0
      %p71 = por %p69, %p70
      %p72 = scmp.ne.s32.totalorder %s64, %s66
      %p73 = scmp.eq.s32.totalorder %s14, 1
      %p74 = por %p72, %p73
      %p75 = scmp.ne.s32.totalorder %s66, %s67
      %p76 = scmp.eq.s32.totalorder %s14, 0
      %p77 = por %p75, %p76
      %p78 = scmp.ne.s32.totalorder %s66, %s67
      %p79 = scmp.eq.s32.totalorder %s15, 1
      %p80 = por %p78, %p79
      %p82 = scmp.ne.s32.totalorder %s67, %s81
      %p83 = scmp.eq.s32.totalorder %s15, 0
      %p84 = por %p82, %p83
      %s85 = ssub.s32 %s9, %s16
      %p86 = scmp.eq.s32.totalorder %s85, 0
      %s88 = sadd.s32 %s87, 1
      %s89 = scalar_select %p86, %s87, %s88
      %p92 = pneg %p86
      %p93 = scmp.eq.s32.totalorder %s9, 1
      %p94 = por %p92, %p93
      %p95 = scmp.ne.s32.totalorder %s87, %s90
      %p96 = scmp.eq.s32.totalorder %s9, 0
      %p97 = por %p95, %p96
      %p98 = scmp.ne.s32.totalorder %s87, %s90
      %p99 = scmp.eq.s32.totalorder %s14, 1
      %p100 = por %p98, %p99
      %p101 = scmp.ne.s32.totalorder %s90, %s91
      %p102 = scmp.eq.s32.totalorder %s14, 0
      %p103 = por %p101, %p102
      %p104 = scmp.ne.s32.totalorder %s90, %s91
      %p105 = scmp.eq.s32.totalorder %s15, 1
      %p106 = por %p104, %p105
      %p108 = scmp.ne.s32.totalorder %s91, %s107
      %p109 = scmp.eq.s32.totalorder %s15, 0
      %p110 = por %p108, %p109
      %p111 = scmp.le.s32.totalorder 1, %s9
      %p112 = scmp.lt.s32.totalorder %s9, 3
      %p113 = pnand %p111, %p112
      %p114 = pneg %p113
      // Predicated region
      $region9: #{_lambda_.7} parent=5 // pred_check
        _
      $region10: #{_lambda_.7} parent=5 // pred_check_branch
        %116 = sbr.rel (%p113) target = $region12
      $region11: #{_lambda_.7} parent=5 // pred_region
        %s117 = ssub.s32 %s9, 1
        // Predicated region
        $region13: #{_lambda_.7} parent=11 // pred_check
          %p118 = pneg %p56
        $region14: #{_lambda_.7} parent=11 // pred_check_branch
          %120 = sbr.rel (%p118) target = $region16
        $region15: #{_lambda_.7} parent=11 // pred_region
          _
        $region16: #{_lambda_.7} parent=11 // pred_fallthru
          _
        // Predicated region
        $region17: #{_lambda_.7} parent=11 // pred_check
          %p121 = pneg %p77
        $region18: #{_lambda_.7} parent=11 // pred_check_branch
          %123 = sbr.rel (%p121) target = $region20
        $region19: #{_lambda_.7} parent=11 // pred_region
          _
        $region20: #{_lambda_.7} parent=11 // pred_fallthru
          _
      $region12: #{_lambda_.7} parent=5 // pred_fallthru
        _
      %p124 = scmp.lt.s32.totalorder %s9, 2
      // Predicated region
      $region21: #{_lambda_.7} parent=5 // pred_check
        %p125 = pneg %p124
      $region22: #{_lambda_.7} parent=5 // pred_check_branch
        %127 = sbr.rel (%p125) target = $region24
      $region23: #{_lambda_.7} parent=5 // pred_region
        // Predicated region
        $region25: #{_lambda_.7} parent=23 // pred_check
          %p128 = pneg %p29
        $region26: #{_lambda_.7} parent=23 // pred_check_branch
          %130 = sbr.rel (%p128) target = $region28
        $region27: #{_lambda_.7} parent=23 // pred_region
          %s131 = smul.u32 2, %s9
          %s132 = ssub.s32 3, %s131
          %p133 = scmp.lt.s32.totalorder %s132, 2
          %s134 = scalar_select %p133, %s132, 2
          %s135 = smul.u32 128, %s134
          %p136 = scmp.lt.s32.totalorder %s131, 2
          %s137 = scalar_select %p136, %s131, 2
          %s138 = smul.addr %s137, 8
          %s139 = scalar_lea.vmem %s0, %s138
          %s140 = smul.u32 2, %s9
          %s141 = ssub.s32 3, %s140
          %p142 = scmp.lt.s32.totalorder %s141, 2
          %s143 = scalar_select %p142, %s141, 2
          %s144 = smul.u32 128, %s143
        $region28: #{_lambda_.7} parent=23 // pred_fallthru
          _
      $region24: #{_lambda_.7} parent=5 // pred_fallthru
        _
      %p145 = scmp.le.s32.totalorder 1, %s9
      %p146 = scmp.lt.s32.totalorder %s9, 3
      %p147 = pnand %p145, %p146
      %p148 = pneg %p147
      // Predicated region
      $region29: #{_lambda_.7} parent=5 // pred_check
        _
      $region30: #{_lambda_.7} parent=5 // pred_check_branch
        %150 = sbr.rel (%p147) target = $region32
      $region31: #{_lambda_.7} parent=5 // pred_region
        %s151 = ssub.s32 %s9, 1
        %s152 = smul.u32 2, %s14
        %s153 = ssub.s32 3, %s152
        %p154 = scmp.lt.s32.totalorder %s153, 2
        %s155 = scalar_select %p154, %s153, 2
        %s156 = smul.u32 128, %s155
        %p157 = scmp.lt.s32.totalorder %s152, 2
        %s158 = scalar_select %p157, %s152, 2
        %s159 = smul.addr %s158, 8
        %s160 = scalar_lea.vmem %s0, %s159
        %p161 = pneg %p35
        %p162 = pneg %p32
        %p163 = pneg %p56
        %p164 = pneg %p53
        %p165 = pneg %p77
        %p166 = pneg %p74
        %p167 = pneg %p103
        %p168 = pneg %p100
        %s169 = sand.u32 %s90, 1
        %s170 = sand.u32 %s90, 1
        %s171 = smul.addr %s170, 16
        %s172 = scalar_lea.vmem [#allocation2], %s171
        %s173 = smul.u32 2, %s14
        %s174 = ssub.s32 3, %s173
        %p175 = scmp.lt.s32.totalorder %s174, 2
        %s176 = scalar_select %p175, %s174, 2
        %s177 = smul.u32 128, %s176
        %p178 = scmp.lt.s32.totalorder %s173, 2
        %s179 = scalar_select %p178, %s173, 2
        %s180 = smul.addr %s179, 8
        %s181 = scalar_lea.vmem %s0, %s180
        %s182 = smul.u32 2, %s14
        %s183 = ssub.s32 3, %s182
        %p184 = scmp.lt.s32.totalorder %s183, 2
        %s185 = scalar_select %p184, %s183, 2
        %s186 = smul.u32 128, %s185
        %s187 = smul.u32 2, %s14
        %s188 = ssub.s32 3, %s187
        %p189 = scmp.lt.s32.totalorder %s188, 2
        %s190 = scalar_select %p189, %s188, 2
        %s191 = smul.u32 128, %s190
        %v192 = vld [vmem:[%s1] sm:$0xff]
        %v193 = vld [vmem:[%s181] sm:$0xff]
        %v194 = vld [vmem:[%s181 + $0x8] sm:$0xff]
        %v195 = vld [vmem:[%s2] sm:$0xff]
        %197 = vset.pattern.permute.xlu0 0
        %198 = vperm.xlu0 %197, %v195
        %v199 = vpop.permute.xlu0 %198
        %vm201 = vcmask 64512
        %v203 = vsel %vm201, %v192, 0
        %205 = vmatprep.subr.mxu0 %v194
        %206 = vmatpush1.msra.mxu0 %v193
        %207 = vmatprep.subr.mxu0 0.0
        %208 = vmatpush1.msra.mxu0 0.0
        %209 = vmatprep.subr.mxu0 0.0
        %210 = vmatpush1.msra.mxu0 0.0
        %211 = vmatprep.subr.mxu0 0.0
        %212 = vmatpush1.msra.mxu0 0.0
        %213 = vmatprep.subr.mxu0 0.0
        %214 = vmatpush1.msra.mxu0 0.0
        %215 = vmatprep.subr.mxu0 0.0
        %216 = vmatpush1.msra.mxu0 0.0
        %217 = vmatprep.subr.mxu0 0.0
        %218 = vmatpush1.msra.mxu0 0.0
        %219 = vmatprep.subr.mxu0 0.0
        %220 = vmatpush1.msra.mxu0 0.0
        %221 = vmatprep.subr.mxu0 0.0
        %222 = vmatpush1.msra.mxu0 0.0
        %223 = vmatprep.subr.mxu0 0.0
        %224 = vmatpush1.msra.mxu0 0.0
        %225 = vmatprep.subr.mxu0 0.0
        %226 = vmatpush1.msra.mxu0 0.0
        %227 = vmatprep.subr.mxu0 0.0
        %228 = vmatpush1.msra.mxu0 0.0
        %229 = vmatprep.subr.mxu0 0.0
        %230 = vmatpush1.msra.mxu0 0.0
        %231 = vmatprep.subr.mxu0 0.0
        %232 = vmatpush1.msra.mxu0 0.0
        %233 = vmatprep.subr.mxu0 0.0
        %234 = vmatpush1.msra.mxu0 0.0
        %235 = vmatprep.subr.mxu0 0.0
        %236 = vmatpush1.msra.mxu0 0.0
        %237 = vmatprep.subr.mxu0 0.0
        %238 = vmatpush1.msra.mxu0 0.0
        %239 = vmatprep.subr.mxu0 0.0
        %240 = vmatpush1.msra.mxu0 0.0
        %241 = vmatprep.subr.mxu0 0.0
        %242 = vmatpush1.msra.mxu0 0.0
        %243 = vmatprep.subr.mxu0 0.0
        %244 = vmatpush1.msra.mxu0 0.0
        %245 = vmatprep.subr.mxu0 0.0
        %246 = vmatpush1.msra.mxu0 0.0
        %247 = vmatprep.subr.mxu0 0.0
        %248 = vmatpush1.msra.mxu0 0.0
        %249 = vmatprep.subr.mxu0 0.0
        %250 = vmatpush1.msra.mxu0 0.0
        %251 = vmatprep.subr.mxu0 0.0
        %252 = vmatpush1.msra.mxu0 0.0
        %253 = vmatprep.subr.mxu0 0.0
        %254 = vmatpush1.msra.mxu0 0.0
        %255 = vmatprep.subr.mxu0 0.0
        %256 = vmatpush1.msra.mxu0 0.0
        %257 = vmatprep.subr.mxu0 0.0
        %258 = vmatpush1.msra.mxu0 0.0
        %259 = vmatprep.subr.mxu0 0.0
        %260 = vmatpush1.msra.mxu0 0.0
        %261 = vmatprep.subr.mxu0 0.0
        %262 = vmatpush1.msra.mxu0 0.0
        %263 = vmatprep.subr.mxu0 0.0
        %264 = vmatpush1.msra.mxu0 0.0
        %265 = vmatprep.subr.mxu0 0.0
        %266 = vmatpush1.msra.mxu0 0.0
        %267 = vmatprep.subr.mxu0 0.0
        %268 = vmatpush1.msra.mxu0 0.0
        %269 = vmatprep.mubr.f32.mxu0 0.0
        %270 = vmatmul.mubr.f32.gmra.mrb[0].mxu0 %v203
        %v271 = vpop.f32.mrb[0].mxu0
        %v272 = vadd.f32 %v199, %v271
        %v273 = vpop.f32.mrb[0].mxu0
        %v274 = vadd.f32 %v199, %v273
        %275 = vdwg.mxu0
        %v276 = vmax.f32 %v272, 0.0
        %v277 = vmax.f32 %v274, 0.0
        %278 = vst [vmem:[%s172] sm:$0xff] %v276
        %279 = vst [vmem:[%s172 + $0x8] sm:$0xff] %v277
        %s280 = sand.u32 %s90, 1
        %s281 = sand.u32 %s90, 1
        %s282 = smul.addr %s281, 16
        %s283 = scalar_lea.vmem [#allocation2], %s282
        // Predicated region
        $region33: #{_lambda_.7} parent=31 // pred_check
          %p284 = pneg %p100
        $region34: #{_lambda_.7} parent=31 // pred_check_branch
          %286 = sbr.rel (%p284) target = $region36
        $region35: #{_lambda_.7} parent=31 // pred_region
          %s287 = smul.u32 2, %s14
          %s288 = ssub.s32 3, %s287
          %p289 = scmp.lt.s32.totalorder %s288, 2
          %s290 = scalar_select %p289, %s288, 2
          %s291 = smul.u32 128, %s290
          %p292 = scmp.ne.s32.totalorder 0, %s291
          %s293 = smul.addr %s287, 8
          %s294 = scalar_lea.vmem %s3, %s293
          %s295 = smul.u32 %s290, 8
          // Predicated region
          $region37: #{_lambda_.7} parent=35 // pred_check
            %p296 = pneg %p292
          $region38: #{_lambda_.7} parent=35 // pred_check_branch
            %298 = sbr.rel (%p296) target = $region40
          $region39: #{_lambda_.7} parent=35 // pred_region
            %p299 = scmp.lt.u32.totalorder %s295, 8
            %p300 = pneg %p299
            // Predicated region
            $region41: #{_lambda_.7} parent=39 // pred_check
              _
            $region42: #{_lambda_.7} parent=39 // pred_check_branch
              %302 = sbr.rel (%p299) target = $region44
            $region43: #{_lambda_.7} parent=39 // pred_region
              %s317 = sand.u32 %s295, 7
              %p318 = scmp.eq.s32.totalorder %s317, 0
              // Predicated region
              $region56: #{_lambda_.7} parent=43 // pred_check
                %p319 = pneg %p318
              $region57: #{_lambda_.7} parent=43 // pred_check_branch
                %321 = sbr.rel (%p319) target = $region59
              $region58: #{_lambda_.7} parent=43 // pred_region
                %s322 = sshrl.u32 %s295, 3
                %s323 = sshrl.u32 %s322, 6
                // While loop
                $region60: #{_lambda_.7} parent=58 // loop_pre_header
                  _
                $region61: #{_lambda_.7} parent=58 // loop_header
                  %s327 = sphi 0, %s329
                  %p328 = scmp.ge.s32.totalorder %s327, %s323
                  %s332 = sphi 0, %s465
                  %s333 = sphi %s283, %s468
                  %s334 = sphi %s294, %s469
                $region62: #{_lambda_.7} parent=58 // loop_header_branch
                  %331 = sbr.rel (%p328) target = $region66
                $region63: #{_lambda_.7} parent=58 // loop_body
                  %v335 = vld [vmem:[%s333] sm:$0xff]
                  %336 = vst [vmem:[%s334] sm:$0xff] %v335
                  %v337 = vld [vmem:[%s333 + $0x8] sm:$0xff]
                  %338 = vst [vmem:[%s334 + $0x8] sm:$0xff] %v337
                  %v339 = vld [vmem:[%s333 + $0x10] sm:$0xff]
                  %340 = vst [vmem:[%s334 + $0x10] sm:$0xff] %v339
                  %v341 = vld [vmem:[%s333 + $0x18] sm:$0xff]
                  %342 = vst [vmem:[%s334 + $0x18] sm:$0xff] %v341
                  %v343 = vld [vmem:[%s333 + $0x20] sm:$0xff]
                  %344 = vst [vmem:[%s334 + $0x20] sm:$0xff] %v343
                  %v345 = vld [vmem:[%s333 + $0x28] sm:$0xff]
                  %346 = vst [vmem:[%s334 + $0x28] sm:$0xff] %v345
                  %v347 = vld [vmem:[%s333 + $0x30] sm:$0xff]
                  %348 = vst [vmem:[%s334 + $0x30] sm:$0xff] %v347
                  %v349 = vld [vmem:[%s333 + $0x38] sm:$0xff]
                  %350 = vst [vmem:[%s334 + $0x38] sm:$0xff] %v349
                  %v351 = vld [vmem:[%s333 + $0x40] sm:$0xff]
                  %352 = vst [vmem:[%s334 + $0x40] sm:$0xff] %v351
                  %v353 = vld [vmem:[%s333 + $0x48] sm:$0xff]
                  %354 = vst [vmem:[%s334 + $0x48] sm:$0xff] %v353
                  %v355 = vld [vmem:[%s333 + $0x50] sm:$0xff]
                  %356 = vst [vmem:[%s334 + $0x50] sm:$0xff] %v355
                  %v357 = vld [vmem:[%s333 + $0x58] sm:$0xff]
                  %358 = vst [vmem:[%s334 + $0x58] sm:$0xff] %v357
                  %v359 = vld [vmem:[%s333 + $0x60] sm:$0xff]
                  %360 = vst [vmem:[%s334 + $0x60] sm:$0xff] %v359
                  %v361 = vld [vmem:[%s333 + $0x68] sm:$0xff]
                  %362 = vst [vmem:[%s334 + $0x68] sm:$0xff] %v361
                  %v363 = vld [vmem:[%s333 + $0x70] sm:$0xff]
                  %364 = vst [vmem:[%s334 + $0x70] sm:$0xff] %v363
                  %v365 = vld [vmem:[%s333 + $0x78] sm:$0xff]
                  %366 = vst [vmem:[%s334 + $0x78] sm:$0xff] %v365
                  %v367 = vld [vmem:[%s333 + $0x80] sm:$0xff]
                  %368 = vst [vmem:[%s334 + $0x80] sm:$0xff] %v367
                  %v369 = vld [vmem:[%s333 + $0x88] sm:$0xff]
                  %370 = vst [vmem:[%s334 + $0x88] sm:$0xff] %v369
                  %v371 = vld [vmem:[%s333 + $0x90] sm:$0xff]
                  %372 = vst [vmem:[%s334 + $0x90] sm:$0xff] %v371
                  %v373 = vld [vmem:[%s333 + $0x98] sm:$0xff]
                  %374 = vst [vmem:[%s334 + $0x98] sm:$0xff] %v373
                  %v375 = vld [vmem:[%s333 + $0xa0] sm:$0xff]
                  %376 = vst [vmem:[%s334 + $0xa0] sm:$0xff] %v375
                  %v377 = vld [vmem:[%s333 + $0xa8] sm:$0xff]
                  %378 = vst [vmem:[%s334 + $0xa8] sm:$0xff] %v377
                  %v379 = vld [vmem:[%s333 + $0xb0] sm:$0xff]
                  %380 = vst [vmem:[%s334 + $0xb0] sm:$0xff] %v379
                  %v381 = vld [vmem:[%s333 + $0xb8] sm:$0xff]
                  %382 = vst [vmem:[%s334 + $0xb8] sm:$0xff] %v381
                  %v383 = vld [vmem:[%s333 + $0xc0] sm:$0xff]
                  %384 = vst [vmem:[%s334 + $0xc0] sm:$0xff] %v383
                  %v385 = vld [vmem:[%s333 + $0xc8] sm:$0xff]
                  %386 = vst [vmem:[%s334 + $0xc8] sm:$0xff] %v385
                  %v387 = vld [vmem:[%s333 + $0xd0] sm:$0xff]
                  %388 = vst [vmem:[%s334 + $0xd0] sm:$0xff] %v387
                  %v389 = vld [vmem:[%s333 + $0xd8] sm:$0xff]
                  %390 = vst [vmem:[%s334 + $0xd8] sm:$0xff] %v389
                  %v391 = vld [vmem:[%s333 + $0xe0] sm:$0xff]
                  %392 = vst [vmem:[%s334 + $0xe0] sm:$0xff] %v391
                  %v393 = vld [vmem:[%s333 + $0xe8] sm:$0xff]
                  %394 = vst [vmem:[%s334 + $0xe8] sm:$0xff] %v393
                  %v395 = vld [vmem:[%s333 + $0xf0] sm:$0xff]
                  %396 = vst [vmem:[%s334 + $0xf0] sm:$0xff] %v395
                  %v397 = vld [vmem:[%s333 + $0xf8] sm:$0xff]
                  %398 = vst [vmem:[%s334 + $0xf8] sm:$0xff] %v397
                  %v399 = vld [vmem:[%s333 + $0x100] sm:$0xff]
                  %400 = vst [vmem:[%s334 + $0x100] sm:$0xff] %v399
                  %v401 = vld [vmem:[%s333 + $0x108] sm:$0xff]
                  %402 = vst [vmem:[%s334 + $0x108] sm:$0xff] %v401
                  %v403 = vld [vmem:[%s333 + $0x110] sm:$0xff]
                  %404 = vst [vmem:[%s334 + $0x110] sm:$0xff] %v403
                  %v405 = vld [vmem:[%s333 + $0x118] sm:$0xff]
                  %406 = vst [vmem:[%s334 + $0x118] sm:$0xff] %v405
                  %v407 = vld [vmem:[%s333 + $0x120] sm:$0xff]
                  %408 = vst [vmem:[%s334 + $0x120] sm:$0xff] %v407
                  %v409 = vld [vmem:[%s333 + $0x128] sm:$0xff]
                  %410 = vst [vmem:[%s334 + $0x128] sm:$0xff] %v409
                  %v411 = vld [vmem:[%s333 + $0x130] sm:$0xff]
                  %412 = vst [vmem:[%s334 + $0x130] sm:$0xff] %v411
                  %v413 = vld [vmem:[%s333 + $0x138] sm:$0xff]
                  %414 = vst [vmem:[%s334 + $0x138] sm:$0xff] %v413
                  %v415 = vld [vmem:[%s333 + $0x140] sm:$0xff]
                  %416 = vst [vmem:[%s334 + $0x140] sm:$0xff] %v415
                  %v417 = vld [vmem:[%s333 + $0x148] sm:$0xff]
                  %418 = vst [vmem:[%s334 + $0x148] sm:$0xff] %v417
                  %v419 = vld [vmem:[%s333 + $0x150] sm:$0xff]
                  %420 = vst [vmem:[%s334 + $0x150] sm:$0xff] %v419
                  %v421 = vld [vmem:[%s333 + $0x158] sm:$0xff]
                  %422 = vst [vmem:[%s334 + $0x158] sm:$0xff] %v421
                  %v423 = vld [vmem:[%s333 + $0x160] sm:$0xff]
                  %424 = vst [vmem:[%s334 + $0x160] sm:$0xff] %v423
                  %v425 = vld [vmem:[%s333 + $0x168] sm:$0xff]
                  %426 = vst [vmem:[%s334 + $0x168] sm:$0xff] %v425
                  %v427 = vld [vmem:[%s333 + $0x170] sm:$0xff]
                  %428 = vst [vmem:[%s334 + $0x170] sm:$0xff] %v427
                  %v429 = vld [vmem:[%s333 + $0x178] sm:$0xff]
                  %430 = vst [vmem:[%s334 + $0x178] sm:$0xff] %v429
                  %v431 = vld [vmem:[%s333 + $0x180] sm:$0xff]
                  %432 = vst [vmem:[%s334 + $0x180] sm:$0xff] %v431
                  %v433 = vld [vmem:[%s333 + $0x188] sm:$0xff]
                  %434 = vst [vmem:[%s334 + $0x188] sm:$0xff] %v433
                  %v435 = vld [vmem:[%s333 + $0x190] sm:$0xff]
                  %436 = vst [vmem:[%s334 + $0x190] sm:$0xff] %v435
                  %v437 = vld [vmem:[%s333 + $0x198] sm:$0xff]
                  %438 = vst [vmem:[%s334 + $0x198] sm:$0xff] %v437
                  %v439 = vld [vmem:[%s333 + $0x1a0] sm:$0xff]
                  %440 = vst [vmem:[%s334 + $0x1a0] sm:$0xff] %v439
                  %v441 = vld [vmem:[%s333 + $0x1a8] sm:$0xff]
                  %442 = vst [vmem:[%s334 + $0x1a8] sm:$0xff] %v441
                  %v443 = vld [vmem:[%s333 + $0x1b0] sm:$0xff]
                  %444 = vst [vmem:[%s334 + $0x1b0] sm:$0xff] %v443
                  %v445 = vld [vmem:[%s333 + $0x1b8] sm:$0xff]
                  %446 = vst [vmem:[%s334 + $0x1b8] sm:$0xff] %v445
                  %v447 = vld [vmem:[%s333 + $0x1c0] sm:$0xff]
                  %448 = vst [vmem:[%s334 + $0x1c0] sm:$0xff] %v447
                  %v449 = vld [vmem:[%s333 + $0x1c8] sm:$0xff]
                  %450 = vst [vmem:[%s334 + $0x1c8] sm:$0xff] %v449
                  %v451 = vld [vmem:[%s333 + $0x1d0] sm:$0xff]
                  %452 = vst [vmem:[%s334 + $0x1d0] sm:$0xff] %v451
                  %v453 = vld [vmem:[%s333 + $0x1d8] sm:$0xff]
                  %454 = vst [vmem:[%s334 + $0x1d8] sm:$0xff] %v453
                  %v455 = vld [vmem:[%s333 + $0x1e0] sm:$0xff]
                  %456 = vst [vmem:[%s334 + $0x1e0] sm:$0xff] %v455
                  %v457 = vld [vmem:[%s333 + $0x1e8] sm:$0xff]
                  %458 = vst [vmem:[%s334 + $0x1e8] sm:$0xff] %v457
                  %v459 = vld [vmem:[%s333 + $0x1f0] sm:$0xff]
                  %460 = vst [vmem:[%s334 + $0x1f0] sm:$0xff] %v459
                  %v461 = vld [vmem:[%s333 + $0x1f8] sm:$0xff]
                  %462 = vst [vmem:[%s334 + $0x1f8] sm:$0xff] %v461
                  %s463 = sadd.s32 1, %s332
                  %p464 = scmp.ge.s32.totalorder %s463, %s323
                  %s465 = scalar_select %p464, 0, %s463
                  %s466 = smul.u32 %s465, 512
                  %s467 = smul.u32 %s465, 512
                  %s468 = scalar_lea.vmem %s283, %s466 [#allocation2]
                  %s469 = scalar_lea.vmem %s294, %s467
                $region64: #{_lambda_.7} parent=58 // loop_footer
                  %s329 = sadd.s32 %s327, 1
                $region65: #{_lambda_.7} parent=58 // loop_footer_branch
                  %326 = sbr.rel target = $region61
                $region66: #{_lambda_.7} parent=58 // loop_exit
                  _
                %s470 = sshrl.u32 %s322, 6
                %s471 = sand.u32 %s322, 63
                %s472 = smul.u32 %s470, 64
                %s473 = smul.u32 128, %s472
                %s474 = sshra.s32 %s473, 4
                %s475 = scalar_lea.vmem %s283, %s474 [#allocation2]
                %s476 = smul.u32 128, %s472
                %s477 = sshra.s32 %s476, 4
                %s478 = scalar_lea.vmem %s294, %s477
                // While loop
                $region67: #{_lambda_.7} parent=58 // loop_pre_header
                  _
                $region68: #{_lambda_.7} parent=58 // loop_header
                  %s482 = sphi 0, %s484
                  %p483 = scmp.ge.s32.totalorder %s482, %s471
                  %s487 = sphi 0, %s494
                  %s488 = sphi %s475, %s497
                  %s489 = sphi %s478, %s498
                $region69: #{_lambda_.7} parent=58 // loop_header_branch
                  %486 = sbr.rel (%p483) target = $region73
                $region70: #{_lambda_.7} parent=58 // loop_body
                  %v490 = vld [vmem:[%s488] sm:$0xff]
                  %491 = vst [vmem:[%s489] sm:$0xff] %v490
                  %s492 = sadd.s32 1, %s487
                  %p493 = scmp.ge.s32.totalorder %s492, %s471
                  %s494 = scalar_select %p493, 0, %s492
                  %s495 = smul.u32 %s494, 8
                  %s496 = smul.u32 %s494, 8
                  %s497 = scalar_lea.vmem %s475, %s495 [#allocation2]
                  %s498 = scalar_lea.vmem %s478, %s496
                $region71: #{_lambda_.7} parent=58 // loop_footer
                  %s484 = sadd.s32 %s482, 1
                $region72: #{_lambda_.7} parent=58 // loop_footer_branch
                  %481 = sbr.rel target = $region68
                $region73: #{_lambda_.7} parent=58 // loop_exit
                  _
              $region59: #{_lambda_.7} parent=43 // pred_fallthru
                _
              %p499 = pneg %p318
              // Predicated region
              $region74: #{_lambda_.7} parent=43 // pred_check
                _
              $region75: #{_lambda_.7} parent=43 // pred_check_branch
                %501 = sbr.rel (%p318) target = $region77
              $region76: #{_lambda_.7} parent=43 // pred_region
                %s502 = sand.u32 %s295, 7
                %s503 = ssub.s32 %s295, %s502
                %s504 = scalar_lea.vmem %s283, %s503 [#allocation2]
                %s505 = ssub.s32 %s295, %s502
                %s506 = scalar_lea.vmem %s294, %s505
                %s507 = sshrl.u32 %s295, 3
                %s508 = sshrl.u32 %s507, 6
                // While loop
                $region78: #{_lambda_.7} parent=76 // loop_pre_header
                  _
                $region79: #{_lambda_.7} parent=76 // loop_header
                  %s512 = sphi 0, %s514
                  %p513 = scmp.ge.s32.totalorder %s512, %s508
                  %s517 = sphi 0, %s650
                  %s518 = sphi %s283, %s653
                  %s519 = sphi %s294, %s654
                $region80: #{_lambda_.7} parent=76 // loop_header_branch
                  %516 = sbr.rel (%p513) target = $region84
                $region81: #{_lambda_.7} parent=76 // loop_body
                  %v520 = vld [vmem:[%s518] sm:$0xff]
                  %521 = vst [vmem:[%s519] sm:$0xff] %v520
                  %v522 = vld [vmem:[%s518 + $0x8] sm:$0xff]
                  %523 = vst [vmem:[%s519 + $0x8] sm:$0xff] %v522
                  %v524 = vld [vmem:[%s518 + $0x10] sm:$0xff]
                  %525 = vst [vmem:[%s519 + $0x10] sm:$0xff] %v524
                  %v526 = vld [vmem:[%s518 + $0x18] sm:$0xff]
                  %527 = vst [vmem:[%s519 + $0x18] sm:$0xff] %v526
                  %v528 = vld [vmem:[%s518 + $0x20] sm:$0xff]
                  %529 = vst [vmem:[%s519 + $0x20] sm:$0xff] %v528
                  %v530 = vld [vmem:[%s518 + $0x28] sm:$0xff]
                  %531 = vst [vmem:[%s519 + $0x28] sm:$0xff] %v530
                  %v532 = vld [vmem:[%s518 + $0x30] sm:$0xff]
                  %533 = vst [vmem:[%s519 + $0x30] sm:$0xff] %v532
                  %v534 = vld [vmem:[%s518 + $0x38] sm:$0xff]
                  %535 = vst [vmem:[%s519 + $0x38] sm:$0xff] %v534
                  %v536 = vld [vmem:[%s518 + $0x40] sm:$0xff]
                  %537 = vst [vmem:[%s519 + $0x40] sm:$0xff] %v536
                  %v538 = vld [vmem:[%s518 + $0x48] sm:$0xff]
                  %539 = vst [vmem:[%s519 + $0x48] sm:$0xff] %v538
                  %v540 = vld [vmem:[%s518 + $0x50] sm:$0xff]
                  %541 = vst [vmem:[%s519 + $0x50] sm:$0xff] %v540
                  %v542 = vld [vmem:[%s518 + $0x58] sm:$0xff]
                  %543 = vst [vmem:[%s519 + $0x58] sm:$0xff] %v542
                  %v544 = vld [vmem:[%s518 + $0x60] sm:$0xff]
                  %545 = vst [vmem:[%s519 + $0x60] sm:$0xff] %v544
                  %v546 = vld [vmem:[%s518 + $0x68] sm:$0xff]
                  %547 = vst [vmem:[%s519 + $0x68] sm:$0xff] %v546
                  %v548 = vld [vmem:[%s518 + $0x70] sm:$0xff]
                  %549 = vst [vmem:[%s519 + $0x70] sm:$0xff] %v548
                  %v550 = vld [vmem:[%s518 + $0x78] sm:$0xff]
                  %551 = vst [vmem:[%s519 + $0x78] sm:$0xff] %v550
                  %v552 = vld [vmem:[%s518 + $0x80] sm:$0xff]
                  %553 = vst [vmem:[%s519 + $0x80] sm:$0xff] %v552
                  %v554 = vld [vmem:[%s518 + $0x88] sm:$0xff]
                  %555 = vst [vmem:[%s519 + $0x88] sm:$0xff] %v554
                  %v556 = vld [vmem:[%s518 + $0x90] sm:$0xff]
                  %557 = vst [vmem:[%s519 + $0x90] sm:$0xff] %v556
                  %v558 = vld [vmem:[%s518 + $0x98] sm:$0xff]
                  %559 = vst [vmem:[%s519 + $0x98] sm:$0xff] %v558
                  %v560 = vld [vmem:[%s518 + $0xa0] sm:$0xff]
                  %561 = vst [vmem:[%s519 + $0xa0] sm:$0xff] %v560
                  %v562 = vld [vmem:[%s518 + $0xa8] sm:$0xff]
                  %563 = vst [vmem:[%s519 + $0xa8] sm:$0xff] %v562
                  %v564 = vld [vmem:[%s518 + $0xb0] sm:$0xff]
                  %565 = vst [vmem:[%s519 + $0xb0] sm:$0xff] %v564
                  %v566 = vld [vmem:[%s518 + $0xb8] sm:$0xff]
                  %567 = vst [vmem:[%s519 + $0xb8] sm:$0xff] %v566
                  %v568 = vld [vmem:[%s518 + $0xc0] sm:$0xff]
                  %569 = vst [vmem:[%s519 + $0xc0] sm:$0xff] %v568
                  %v570 = vld [vmem:[%s518 + $0xc8] sm:$0xff]
                  %571 = vst [vmem:[%s519 + $0xc8] sm:$0xff] %v570
                  %v572 = vld [vmem:[%s518 + $0xd0] sm:$0xff]
                  %573 = vst [vmem:[%s519 + $0xd0] sm:$0xff] %v572
                  %v574 = vld [vmem:[%s518 + $0xd8] sm:$0xff]
                  %575 = vst [vmem:[%s519 + $0xd8] sm:$0xff] %v574
                  %v576 = vld [vmem:[%s518 + $0xe0] sm:$0xff]
                  %577 = vst [vmem:[%s519 + $0xe0] sm:$0xff] %v576
                  %v578 = vld [vmem:[%s518 + $0xe8] sm:$0xff]
                  %579 = vst [vmem:[%s519 + $0xe8] sm:$0xff] %v578
                  %v580 = vld [vmem:[%s518 + $0xf0] sm:$0xff]
                  %581 = vst [vmem:[%s519 + $0xf0] sm:$0xff] %v580
                  %v582 = vld [vmem:[%s518 + $0xf8] sm:$0xff]
                  %583 = vst [vmem:[%s519 + $0xf8] sm:$0xff] %v582
                  %v584 = vld [vmem:[%s518 + $0x100] sm:$0xff]
                  %585 = vst [vmem:[%s519 + $0x100] sm:$0xff] %v584
                  %v586 = vld [vmem:[%s518 + $0x108] sm:$0xff]
                  %587 = vst [vmem:[%s519 + $0x108] sm:$0xff] %v586
                  %v588 = vld [vmem:[%s518 + $0x110] sm:$0xff]
                  %589 = vst [vmem:[%s519 + $0x110] sm:$0xff] %v588
                  %v590 = vld [vmem:[%s518 + $0x118] sm:$0xff]
                  %591 = vst [vmem:[%s519 + $0x118] sm:$0xff] %v590
                  %v592 = vld [vmem:[%s518 + $0x120] sm:$0xff]
                  %593 = vst [vmem:[%s519 + $0x120] sm:$0xff] %v592
                  %v594 = vld [vmem:[%s518 + $0x128] sm:$0xff]
                  %595 = vst [vmem:[%s519 + $0x128] sm:$0xff] %v594
                  %v596 = vld [vmem:[%s518 + $0x130] sm:$0xff]
                  %597 = vst [vmem:[%s519 + $0x130] sm:$0xff] %v596
                  %v598 = vld [vmem:[%s518 + $0x138] sm:$0xff]
                  %599 = vst [vmem:[%s519 + $0x138] sm:$0xff] %v598
                  %v600 = vld [vmem:[%s518 + $0x140] sm:$0xff]
                  %601 = vst [vmem:[%s519 + $0x140] sm:$0xff] %v600
                  %v602 = vld [vmem:[%s518 + $0x148] sm:$0xff]
                  %603 = vst [vmem:[%s519 + $0x148] sm:$0xff] %v602
                  %v604 = vld [vmem:[%s518 + $0x150] sm:$0xff]
                  %605 = vst [vmem:[%s519 + $0x150] sm:$0xff] %v604
                  %v606 = vld [vmem:[%s518 + $0x158] sm:$0xff]
                  %607 = vst [vmem:[%s519 + $0x158] sm:$0xff] %v606
                  %v608 = vld [vmem:[%s518 + $0x160] sm:$0xff]
                  %609 = vst [vmem:[%s519 + $0x160] sm:$0xff] %v608
                  %v610 = vld [vmem:[%s518 + $0x168] sm:$0xff]
                  %611 = vst [vmem:[%s519 + $0x168] sm:$0xff] %v610
                  %v612 = vld [vmem:[%s518 + $0x170] sm:$0xff]
                  %613 = vst [vmem:[%s519 + $0x170] sm:$0xff] %v612
                  %v614 = vld [vmem:[%s518 + $0x178] sm:$0xff]
                  %615 = vst [vmem:[%s519 + $0x178] sm:$0xff] %v614
                  %v616 = vld [vmem:[%s518 + $0x180] sm:$0xff]
                  %617 = vst [vmem:[%s519 + $0x180] sm:$0xff] %v616
                  %v618 = vld [vmem:[%s518 + $0x188] sm:$0xff]
                  %619 = vst [vmem:[%s519 + $0x188] sm:$0xff] %v618
                  %v620 = vld [vmem:[%s518 + $0x190] sm:$0xff]
                  %621 = vst [vmem:[%s519 + $0x190] sm:$0xff] %v620
                  %v622 = vld [vmem:[%s518 + $0x198] sm:$0xff]
                  %623 = vst [vmem:[%s519 + $0x198] sm:$0xff] %v622
                  %v624 = vld [vmem:[%s518 + $0x1a0] sm:$0xff]
                  %625 = vst [vmem:[%s519 + $0x1a0] sm:$0xff] %v624
                  %v626 = vld [vmem:[%s518 + $0x1a8] sm:$0xff]
                  %627 = vst [vmem:[%s519 + $0x1a8] sm:$0xff] %v626
                  %v628 = vld [vmem:[%s518 + $0x1b0] sm:$0xff]
                  %629 = vst [vmem:[%s519 + $0x1b0] sm:$0xff] %v628
                  %v630 = vld [vmem:[%s518 + $0x1b8] sm:$0xff]
                  %631 = vst [vmem:[%s519 + $0x1b8] sm:$0xff] %v630
                  %v632 = vld [vmem:[%s518 + $0x1c0] sm:$0xff]
                  %633 = vst [vmem:[%s519 + $0x1c0] sm:$0xff] %v632
                  %v634 = vld [vmem:[%s518 + $0x1c8] sm:$0xff]
                  %635 = vst [vmem:[%s519 + $0x1c8] sm:$0xff] %v634
                  %v636 = vld [vmem:[%s518 + $0x1d0] sm:$0xff]
                  %637 = vst [vmem:[%s519 + $0x1d0] sm:$0xff] %v636
                  %v638 = vld [vmem:[%s518 + $0x1d8] sm:$0xff]
                  %639 = vst [vmem:[%s519 + $0x1d8] sm:$0xff] %v638
                  %v640 = vld [vmem:[%s518 + $0x1e0] sm:$0xff]
                  %641 = vst [vmem:[%s519 + $0x1e0] sm:$0xff] %v640
                  %v642 = vld [vmem:[%s518 + $0x1e8] sm:$0xff]
                  %643 = vst [vmem:[%s519 + $0x1e8] sm:$0xff] %v642
                  %v644 = vld [vmem:[%s518 + $0x1f0] sm:$0xff]
                  %645 = vst [vmem:[%s519 + $0x1f0] sm:$0xff] %v644
                  %v646 = vld [vmem:[%s518 + $0x1f8] sm:$0xff]
                  %647 = vst [vmem:[%s519 + $0x1f8] sm:$0xff] %v646
                  %s648 = sadd.s32 1, %s517
                  %p649 = scmp.ge.s32.totalorder %s648, %s508
                  %s650 = scalar_select %p649, 0, %s648
                  %s651 = smul.u32 %s650, 512
                  %s652 = smul.u32 %s650, 512
                  %s653 = scalar_lea.vmem %s283, %s651 [#allocation2]
                  %s654 = scalar_lea.vmem %s294, %s652
                $region82: #{_lambda_.7} parent=76 // loop_footer
                  %s514 = sadd.s32 %s512, 1
                $region83: #{_lambda_.7} parent=76 // loop_footer_branch
                  %511 = sbr.rel target = $region79
                $region84: #{_lambda_.7} parent=76 // loop_exit
                  _
                %s655 = sshrl.u32 %s507, 6
                %s656 = sand.u32 %s507, 63
                %s657 = smul.u32 %s655, 64
                %s658 = smul.u32 128, %s657
                %s659 = sshra.s32 %s658, 4
                %s660 = scalar_lea.vmem %s283, %s659 [#allocation2]
                %s661 = smul.u32 128, %s657
                %s662 = sshra.s32 %s661, 4
                %s663 = scalar_lea.vmem %s294, %s662
                // While loop
                $region85: #{_lambda_.7} parent=76 // loop_pre_header
                  _
                $region86: #{_lambda_.7} parent=76 // loop_header
                  %s667 = sphi 0, %s669
                  %p668 = scmp.ge.s32.totalorder %s667, %s656
                  %s672 = sphi 0, %s679
                  %s673 = sphi %s660, %s682
                  %s674 = sphi %s663, %s683
                $region87: #{_lambda_.7} parent=76 // loop_header_branch
                  %671 = sbr.rel (%p668) target = $region91
                $region88: #{_lambda_.7} parent=76 // loop_body
                  %v675 = vld [vmem:[%s673] sm:$0xff]
                  %676 = vst [vmem:[%s674] sm:$0xff] %v675
                  %s677 = sadd.s32 1, %s672
                  %p678 = scmp.ge.s32.totalorder %s677, %s656
                  %s679 = scalar_select %p678, 0, %s677
                  %s680 = smul.u32 %s679, 8
                  %s681 = smul.u32 %s679, 8
                  %s682 = scalar_lea.vmem %s660, %s680 [#allocation2]
                  %s683 = scalar_lea.vmem %s663, %s681
                $region89: #{_lambda_.7} parent=76 // loop_footer
                  %s669 = sadd.s32 %s667, 1
                $region90: #{_lambda_.7} parent=76 // loop_footer_branch
                  %666 = sbr.rel target = $region86
                $region91: #{_lambda_.7} parent=76 // loop_exit
                  _
                %s684 = sshllo.u32 0, %s502
                loop: start=0, step=1, limit=1
                $region92: #{_lambda_.7} parent=76 // loop_pre_header
                  _
                $region93: #{_lambda_.7} parent=76 // loop_header
                  %s686 = sphi 0, %s690
                  %p687 = scmp.ge.s32.totalorder %s686, 1
                  %s691 = sphi %s504, %s504
                  %s692 = sphi %s506, %s506
                $region94: #{_lambda_.7} parent=76 // loop_header_branch
                  %689 = sbr.rel (%p687) target = $region98
                $region95: #{_lambda_.7} parent=76 // loop_body
                  %v693 = vld [vmem:[%s691] sm:%s684]
                  %694 = vst [vmem:[%s692] sm:%s684] %v693
                $region96: #{_lambda_.7} parent=76 // loop_footer
                  %s690 = sadd.s32 1, %s686
                $region97: #{_lambda_.7} parent=76 // loop_footer_branch
                  %685 = sbr.rel target = $region93
                $region98: #{_lambda_.7} parent=76 // loop_exit
                  _
              $region77: #{_lambda_.7} parent=43 // pred_fallthru
                _
            $region44: #{_lambda_.7} parent=39 // pred_fallthru
              _
            // Predicated region
            $region45: #{_lambda_.7} parent=39 // pred_check
              %p303 = pneg %p299
            $region46: #{_lambda_.7} parent=39 // pred_check_branch
              %305 = sbr.rel (%p303) target = $region48
            $region47: #{_lambda_.7} parent=39 // pred_region
              %s306 = sshllo.u32 0, %s295
              loop: start=0, step=1, limit=1
              $region49: #{_lambda_.7} parent=47 // loop_pre_header
                _
              $region50: #{_lambda_.7} parent=47 // loop_header
                %s308 = sphi 0, %s312
                %p309 = scmp.ge.s32.totalorder %s308, 1
                %s313 = sphi %s283, %s283
                %s314 = sphi %s294, %s294
              $region51: #{_lambda_.7} parent=47 // loop_header_branch
                %311 = sbr.rel (%p309) target = $region55
              $region52: #{_lambda_.7} parent=47 // loop_body
                %v315 = vld [vmem:[%s313] sm:%s306]
                %316 = vst [vmem:[%s314] sm:%s306] %v315
              $region53: #{_lambda_.7} parent=47 // loop_footer
                %s312 = sadd.s32 1, %s308
              $region54: #{_lambda_.7} parent=47 // loop_footer_branch
                %307 = sbr.rel target = $region50
              $region55: #{_lambda_.7} parent=47 // loop_exit
                _
            $region48: #{_lambda_.7} parent=39 // pred_fallthru
              _
          $region40: #{_lambda_.7} parent=35 // pred_fallthru
            _
          %695 = vnop
        $region36: #{_lambda_.7} parent=31 // pred_fallthru
          _
      $region32: #{_lambda_.7} parent=5 // pred_fallthru
        _
      %p696 = scmp.le.s32.totalorder 2, %s9
      // Predicated region
      $region99: #{_lambda_.7} parent=5 // pred_check
        %p697 = pneg %p696
      $region100: #{_lambda_.7} parent=5 // pred_check_branch
        %699 = sbr.rel (%p697) target = $region102
      $region101: #{_lambda_.7} parent=5 // pred_region
        %s700 = ssub.s32 %s9, 2
        // Predicated region
        $region103: #{_lambda_.7} parent=101 // pred_check
          %p701 = pneg %p106
        $region104: #{_lambda_.7} parent=101 // pred_check_branch
          %703 = sbr.rel (%p701) target = $region106
        $region105: #{_lambda_.7} parent=101 // pred_region
          %s704 = sand.u32 %s91, 1
          %s705 = sand.u32 %s91, 1
          %s706 = smul.addr %s705, 16
          %s707 = scalar_lea.vmem [#allocation2], %s706
        $region106: #{_lambda_.7} parent=101 // pred_fallthru
          _
      $region102: #{_lambda_.7} parent=5 // pred_fallthru
        _
    $region6: #{_lambda_.7} parent=1 // loop_footer
      %s13 = sadd.s32 1, %s9
    $region7: #{_lambda_.7} parent=1 // loop_footer_branch
      %8 = sbr.rel target = $region3
    $region8: #{_lambda_.7} parent=1 // loop_exit
      _

// kernel: reverse.0
$region0: #{reverse.0}
  %s0 = inlined_call_operand.vmem [shape: f32[4,2,16,7], index: 0, kind: input, shape index: {}]
  %s1 = inlined_call_operand.vmem [shape: f32[4,2,16,7], index: 1, kind: output, shape index: {}]
  $region1: #{reverse.0} parent=0
    #allocation0 [shape = 'u8[65536]{0}', space=vmem, size = 0x10000, scoped, tag = 'operand span for operand 0']
    #allocation1 [shape = 'u8[32768]{0}', space=vmem, size = 0x8000, scoped, tag = 'operand span for operand 1']
    %s2 = scalar_lea.vmem [#allocation0], 8
    // Predicated region
    $region2: #{reverse.0} parent=1 // pred_check
      _
    $region3: #{reverse.0} parent=1 // pred_check_branch
      %4 = sbr.rel (0) target = $region5
    $region4: #{reverse.0} parent=1 // pred_region
      // Predicated region
      $region6: #{reverse.0} parent=4 // pred_check
        _
      $region7: #{reverse.0} parent=4 // pred_check_branch
        %6 = sbr.rel (0) target = $region9
      $region8: #{reverse.0} parent=4 // pred_region
        // Predicated region
        $region21: #{reverse.0} parent=8 // pred_check
          _
        $region22: #{reverse.0} parent=8 // pred_check_branch
          %35 = sbr.rel (0) target = $region24
        $region23: #{reverse.0} parent=8 // pred_region
          loop: start=0, step=1, limit=1
          $region25: #{reverse.0} parent=23 // loop_pre_header
            _
          $region26: #{reverse.0} parent=23 // loop_header
            %s37 = sphi 0, %s41
            %p38 = scmp.ge.s32.totalorder %s37, 1
            %s42 = sphi %s0, %s0
            %s43 = sphi %s2, %s2
          $region27: #{reverse.0} parent=23 // loop_header_branch
            %40 = sbr.rel (%p38) target = $region31
          $region28: #{reverse.0} parent=23 // loop_body
            %v44 = vld [vmem:[%s42] sm:$0xff]
            %45 = vst [vmem:[%s43] sm:$0xff] %v44
            %v46 = vld [vmem:[%s42 + $0x8] sm:$0xff]
            %47 = vst [vmem:[%s43 + $0x10] sm:$0xff] %v46
            %v48 = vld [vmem:[%s42 + $0x10] sm:$0xff]
            %49 = vst [vmem:[%s43 + $0x20] sm:$0xff] %v48
            %v50 = vld [vmem:[%s42 + $0x18] sm:$0xff]
            %51 = vst [vmem:[%s43 + $0x30] sm:$0xff] %v50
            %v52 = vld [vmem:[%s42 + $0x20] sm:$0xff]
            %53 = vst [vmem:[%s43 + $0x40] sm:$0xff] %v52
            %v54 = vld [vmem:[%s42 + $0x28] sm:$0xff]
            %55 = vst [vmem:[%s43 + $0x50] sm:$0xff] %v54
            %v56 = vld [vmem:[%s42 + $0x30] sm:$0xff]
            %57 = vst [vmem:[%s43 + $0x60] sm:$0xff] %v56
            %v58 = vld [vmem:[%s42 + $0x38] sm:$0xff]
            %59 = vst [vmem:[%s43 + $0x70] sm:$0xff] %v58
          $region29: #{reverse.0} parent=23 // loop_footer
            %s41 = sadd.s32 1, %s37
          $region30: #{reverse.0} parent=23 // loop_footer_branch
            %36 = sbr.rel target = $region26
          $region31: #{reverse.0} parent=23 // loop_exit
            _
        $region24: #{reverse.0} parent=8 // pred_fallthru
          _
        // Predicated region
        $region32: #{reverse.0} parent=8 // pred_check
          _
        $region33: #{reverse.0} parent=8 // pred_check_branch
          %61 = sbr.rel target = $region35
        $region34: #{reverse.0} parent=8 // pred_region
          _
        $region35: #{reverse.0} parent=8 // pred_fallthru
          _
      $region9: #{reverse.0} parent=4 // pred_fallthru
        _
      // Predicated region
      $region10: #{reverse.0} parent=4 // pred_check
        _
      $region11: #{reverse.0} parent=4 // pred_check_branch
        %8 = sbr.rel target = $region13
      $region12: #{reverse.0} parent=4 // pred_region
        loop: start=0, step=1, limit=1
        $region14: #{reverse.0} parent=12 // loop_pre_header
          _
        $region15: #{reverse.0} parent=12 // loop_header
          %s11 = sphi 0, %s15
          %p12 = scmp.ge.s32.totalorder %s11, 1
          %s16 = sphi %s0, %s0
          %s17 = sphi %s2, %s2
        $region16: #{reverse.0} parent=12 // loop_header_branch
          %14 = sbr.rel (%p12) target = $region20
        $region17: #{reverse.0} parent=12 // loop_body
          %v18 = vld [vmem:[%s16] sm:$0xff]
          %19 = vst [vmem:[%s17] sm:$0xff] %v18
          %v20 = vld [vmem:[%s16 + $0x8] sm:$0xff]
          %21 = vst [vmem:[%s17 + $0x10] sm:$0xff] %v20
          %v22 = vld [vmem:[%s16 + $0x10] sm:$0xff]
          %23 = vst [vmem:[%s17 + $0x20] sm:$0xff] %v22
          %v24 = vld [vmem:[%s16 + $0x18] sm:$0xff]
          %25 = vst [vmem:[%s17 + $0x30] sm:$0xff] %v24
          %v26 = vld [vmem:[%s16 + $0x20] sm:$0xff]
          %27 = vst [vmem:[%s17 + $0x40] sm:$0xff] %v26
          %v28 = vld [vmem:[%s16 + $0x28] sm:$0xff]
          %29 = vst [vmem:[%s17 + $0x50] sm:$0xff] %v28
          %v30 = vld [vmem:[%s16 + $0x30] sm:$0xff]
          %31 = vst [vmem:[%s17 + $0x60] sm:$0xff] %v30
          %v32 = vld [vmem:[%s16 + $0x38] sm:$0xff]
          %33 = vst [vmem:[%s17 + $0x70] sm:$0xff] %v32
        $region18: #{reverse.0} parent=12 // loop_footer
          %s15 = sadd.s32 1, %s11
        $region19: #{reverse.0} parent=12 // loop_footer_branch
          %10 = sbr.rel target = $region15
        $region20: #{reverse.0} parent=12 // loop_exit
          _
      $region13: #{reverse.0} parent=4 // pred_fallthru
        _
    $region5: #{reverse.0} parent=1 // pred_fallthru
      _
    %62 = vnop
    %s63 = scalar_lea.vmem [#allocation0], 7
    %v64 = vld [vmem:[%s63] ss:$-1 sm:$0xff]
    %v65 = vrot.slane %v64, 1
    %66 = vst [vmem:[#allocation1] sm:$0xff] %v65
    %s67 = scalar_lea.vmem [#allocation0], 8
    %s68 = scalar_lea.vmem %s67, 7 [#allocation0]
    %v69 = vld [vmem:[%s68] ss:$-1 sm:$0xff]
    %v70 = vrot.slane %v69, 1
    %v71 = vlaneseq
    %v72 = vshrl.u32 %v71, 7
    %vm73 = vcmp.lt.s32.totalorder %v72, 7
    %74 = vst.msk [vmem:[#allocation1] sm:$0xff] %vm73, %v70
    %s75 = scalar_lea.vmem [#allocation1], 8
    %s76 = scalar_lea.vmem [#allocation0], 16
    %s77 = scalar_lea.vmem %s76, 7 [#allocation0]
    %v78 = vld [vmem:[%s77] ss:$-1 sm:$0xff]
    %v79 = vrot.slane %v78, 1
    %80 = vst [vmem:[%s75] sm:$0xff] %v79
    %s81 = scalar_lea.vmem %s76, 8 [#allocation0]
    %s82 = scalar_lea.vmem %s81, 7 [#allocation0]
    %v83 = vld [vmem:[%s82] ss:$-1 sm:$0xff]
    %v84 = vrot.slane %v83, 1
    %v85 = vlaneseq
    %v86 = vshrl.u32 %v85, 7
    %vm87 = vcmp.lt.s32.totalorder %v86, 7
    %88 = vst.msk [vmem:[%s75] sm:$0xff] %vm87, %v84
    %s89 = scalar_lea.vmem [#allocation1], 16
    %s90 = scalar_lea.vmem [#allocation0], 32
    %s91 = scalar_lea.vmem %s90, 7 [#allocation0]
    %v92 = vld [vmem:[%s91] ss:$-1 sm:$0xff]
    %v93 = vrot.slane %v92, 1
    %94 = vst [vmem:[%s89] sm:$0xff] %v93
    %s95 = scalar_lea.vmem %s90, 8 [#allocation0]
    %s96 = scalar_lea.vmem %s95, 7 [#allocation0]
    %v97 = vld [vmem:[%s96] ss:$-1 sm:$0xff]
    %v98 = vrot.slane %v97, 1
    %v99 = vlaneseq
    %v100 = vshrl.u32 %v99, 7
    %vm101 = vcmp.lt.s32.totalorder %v100, 7
    %102 = vst.msk [vmem:[%s89] sm:$0xff] %vm101, %v98
    %s103 = scalar_lea.vmem [#allocation1], 24
    %s104 = scalar_lea.vmem [#allocation0], 48
    %s105 = scalar_lea.vmem %s104, 7 [#allocation0]
    %v106 = vld [vmem:[%s105] ss:$-1 sm:$0xff]
    %v107 = vrot.slane %v106, 1
    %108 = vst [vmem:[%s103] sm:$0xff] %v107
    %s109 = scalar_lea.vmem %s104, 8 [#allocation0]
    %s110 = scalar_lea.vmem %s109, 7 [#allocation0]
    %v111 = vld [vmem:[%s110] ss:$-1 sm:$0xff]
    %v112 = vrot.slane %v111, 1
    %v113 = vlaneseq
    %v114 = vshrl.u32 %v113, 7
    %vm115 = vcmp.lt.s32.totalorder %v114, 7
    %116 = vst.msk [vmem:[%s103] sm:$0xff] %vm115, %v112
    %s117 = scalar_lea.vmem [#allocation1], 32
    %s118 = scalar_lea.vmem [#allocation0], 64
    %s119 = scalar_lea.vmem %s118, 7 [#allocation0]
    %v120 = vld [vmem:[%s119] ss:$-1 sm:$0xff]
    %v121 = vrot.slane %v120, 1
    %122 = vst [vmem:[%s117] sm:$0xff] %v121
    %s123 = scalar_lea.vmem %s118, 8 [#allocation0]
    %s124 = scalar_lea.vmem %s123, 7 [#allocation0]
    %v125 = vld [vmem:[%s124] ss:$-1 sm:$0xff]
    %v126 = vrot.slane %v125, 1
    %v127 = vlaneseq
    %v128 = vshrl.u32 %v127, 7
    %vm129 = vcmp.lt.s32.totalorder %v128, 7
    %130 = vst.msk [vmem:[%s117] sm:$0xff] %vm129, %v126
    %s131 = scalar_lea.vmem [#allocation1], 40
    %s132 = scalar_lea.vmem [#allocation0], 80
    %s133 = scalar_lea.vmem %s132, 7 [#allocation0]
    %v134 = vld [vmem:[%s133] ss:$-1 sm:$0xff]
    %v135 = vrot.slane %v134, 1
    %136 = vst [vmem:[%s131] sm:$0xff] %v135
    %s137 = scalar_lea.vmem %s132, 8 [#allocation0]
    %s138 = scalar_lea.vmem %s137, 7 [#allocation0]
    %v139 = vld [vmem:[%s138] ss:$-1 sm:$0xff]
    %v140 = vrot.slane %v139, 1
    %v141 = vlaneseq
    %v142 = vshrl.u32 %v141, 7
    %vm143 = vcmp.lt.s32.totalorder %v142, 7
    %144 = vst.msk [vmem:[%s131] sm:$0xff] %vm143, %v140
    %s145 = scalar_lea.vmem [#allocation1], 48
    %s146 = scalar_lea.vmem [#allocation0], 96
    %s147 = scalar_lea.vmem %s146, 7 [#allocation0]
    %v148 = vld [vmem:[%s147] ss:$-1 sm:$0xff]
    %v149 = vrot.slane %v148, 1
    %150 = vst [vmem:[%s145] sm:$0xff] %v149
    %s151 = scalar_lea.vmem %s146, 8 [#allocation0]
    %s152 = scalar_lea.vmem %s151, 7 [#allocation0]
    %v153 = vld [vmem:[%s152] ss:$-1 sm:$0xff]
    %v154 = vrot.slane %v153, 1
    %v155 = vlaneseq
    %v156 = vshrl.u32 %v155, 7
    %vm157 = vcmp.lt.s32.totalorder %v156, 7
    %158 = vst.msk [vmem:[%s145] sm:$0xff] %vm157, %v154
    %s159 = scalar_lea.vmem [#allocation1], 56
    %s160 = scalar_lea.vmem [#allocation0], 112
    %s161 = scalar_lea.vmem %s160, 7 [#allocation0]
    %v162 = vld [vmem:[%s161] ss:$-1 sm:$0xff]
    %v163 = vrot.slane %v162, 1
    %164 = vst [vmem:[%s159] sm:$0xff] %v163
    %s165 = scalar_lea.vmem %s160, 8 [#allocation0]
    %s166 = scalar_lea.vmem %s165, 7 [#allocation0]
    %v167 = vld [vmem:[%s166] ss:$-1 sm:$0xff]
    %v168 = vrot.slane %v167, 1
    %v169 = vlaneseq
    %v170 = vshrl.u32 %v169, 7
    %vm171 = vcmp.lt.s32.totalorder %v170, 7
    %172 = vst.msk [vmem:[%s159] sm:$0xff] %vm171, %v168
    // Predicated region
    $region36: #{reverse.0} parent=1 // pred_check
      _
    $region37: #{reverse.0} parent=1 // pred_check_branch
      %174 = sbr.rel (0) target = $region39
    $region38: #{reverse.0} parent=1 // pred_region
      // Predicated region
      $region40: #{reverse.0} parent=38 // pred_check
        _
      $region41: #{reverse.0} parent=38 // pred_check_branch
        %176 = sbr.rel (0) target = $region43
      $region42: #{reverse.0} parent=38 // pred_region
        // Predicated region
        $region55: #{reverse.0} parent=42 // pred_check
          _
        $region56: #{reverse.0} parent=42 // pred_check_branch
          %205 = sbr.rel (0) target = $region58
        $region57: #{reverse.0} parent=42 // pred_region
          loop: start=0, step=1, limit=1
          $region59: #{reverse.0} parent=57 // loop_pre_header
            _
          $region60: #{reverse.0} parent=57 // loop_header
            %s207 = sphi 0, %s211
            %p208 = scmp.ge.s32.totalorder %s207, 1
            %s212 = sphi [#allocation1], [#allocation1]
            %s213 = sphi %s1, %s1
          $region61: #{reverse.0} parent=57 // loop_header_branch
            %210 = sbr.rel (%p208) target = $region65
          $region62: #{reverse.0} parent=57 // loop_body
            %v214 = vld [vmem:[%s212] sm:$0xff]
            %215 = vst [vmem:[%s213] sm:$0xff] %v214
            %v216 = vld [vmem:[%s212 + $0x8] sm:$0xff]
            %217 = vst [vmem:[%s213 + $0x8] sm:$0xff] %v216
            %v218 = vld [vmem:[%s212 + $0x10] sm:$0xff]
            %219 = vst [vmem:[%s213 + $0x10] sm:$0xff] %v218
            %v220 = vld [vmem:[%s212 + $0x18] sm:$0xff]
            %221 = vst [vmem:[%s213 + $0x18] sm:$0xff] %v220
            %v222 = vld [vmem:[%s212 + $0x20] sm:$0xff]
            %223 = vst [vmem:[%s213 + $0x20] sm:$0xff] %v222
            %v224 = vld [vmem:[%s212 + $0x28] sm:$0xff]
            %225 = vst [vmem:[%s213 + $0x28] sm:$0xff] %v224
            %v226 = vld [vmem:[%s212 + $0x30] sm:$0xff]
            %227 = vst [vmem:[%s213 + $0x30] sm:$0xff] %v226
            %v228 = vld [vmem:[%s212 + $0x38] sm:$0xff]
            %229 = vst [vmem:[%s213 + $0x38] sm:$0xff] %v228
          $region63: #{reverse.0} parent=57 // loop_footer
            %s211 = sadd.s32 1, %s207
          $region64: #{reverse.0} parent=57 // loop_footer_branch
            %206 = sbr.rel target = $region60
          $region65: #{reverse.0} parent=57 // loop_exit
            _
        $region58: #{reverse.0} parent=42 // pred_fallthru
          _
        // Predicated region
        $region66: #{reverse.0} parent=42 // pred_check
          _
        $region67: #{reverse.0} parent=42 // pred_check_branch
          %231 = sbr.rel target = $region69
        $region68: #{reverse.0} parent=42 // pred_region
          _
        $region69: #{reverse.0} parent=42 // pred_fallthru
          _
      $region43: #{reverse.0} parent=38 // pred_fallthru
        _
      // Predicated region
      $region44: #{reverse.0} parent=38 // pred_check
        _
      $region45: #{reverse.0} parent=38 // pred_check_branch
        %178 = sbr.rel target = $region47
      $region46: #{reverse.0} parent=38 // pred_region
        loop: start=0, step=1, limit=1
        $region48: #{reverse.0} parent=46 // loop_pre_header
          _
        $region49: #{reverse.0} parent=46 // loop_header
          %s181 = sphi 0, %s185
          %p182 = scmp.ge.s32.totalorder %s181, 1
          %s186 = sphi [#allocation1], [#allocation1]
          %s187 = sphi %s1, %s1
        $region50: #{reverse.0} parent=46 // loop_header_branch
          %184 = sbr.rel (%p182) target = $region54
        $region51: #{reverse.0} parent=46 // loop_body
          %v188 = vld [vmem:[%s186] sm:$0xff]
          %189 = vst [vmem:[%s187] sm:$0xff] %v188
          %v190 = vld [vmem:[%s186 + $0x8] sm:$0xff]
          %191 = vst [vmem:[%s187 + $0x8] sm:$0xff] %v190
          %v192 = vld [vmem:[%s186 + $0x10] sm:$0xff]
          %193 = vst [vmem:[%s187 + $0x10] sm:$0xff] %v192
          %v194 = vld [vmem:[%s186 + $0x18] sm:$0xff]
          %195 = vst [vmem:[%s187 + $0x18] sm:$0xff] %v194
          %v196 = vld [vmem:[%s186 + $0x20] sm:$0xff]
          %197 = vst [vmem:[%s187 + $0x20] sm:$0xff] %v196
          %v198 = vld [vmem:[%s186 + $0x28] sm:$0xff]
          %199 = vst [vmem:[%s187 + $0x28] sm:$0xff] %v198
          %v200 = vld [vmem:[%s186 + $0x30] sm:$0xff]
          %201 = vst [vmem:[%s187 + $0x30] sm:$0xff] %v200
          %v202 = vld [vmem:[%s186 + $0x38] sm:$0xff]
          %203 = vst [vmem:[%s187 + $0x38] sm:$0xff] %v202
        $region52: #{reverse.0} parent=46 // loop_footer
          %s185 = sadd.s32 1, %s181
        $region53: #{reverse.0} parent=46 // loop_footer_branch
          %180 = sbr.rel target = $region49
        $region54: #{reverse.0} parent=46 // loop_exit
          _
      $region47: #{reverse.0} parent=38 // pred_fallthru
        _
    $region39: #{reverse.0} parent=1 // pred_fallthru
      _
    %232 = vnop

// kernel: reverse.1
$region0: #{reverse.1}
  %s0 = inlined_call_operand.vmem [shape: f32[4,2,8,3], index: 0, kind: input, shape index: {}]
  %s1 = inlined_call_operand.vmem [shape: f32[4,2,8,3], index: 1, kind: output, shape index: {}]
  $region1: #{reverse.1} parent=0
    #allocation0 [shape = 'u8[65536]{0}', space=vmem, size = 0x10000, scoped, tag = 'operand span for operand 0']
    #allocation1 [shape = 'u8[32768]{0}', space=vmem, size = 0x8000, scoped, tag = 'packed  for operand 0']
    #allocation2 [shape = 'u8[32768]{0}', space=vmem, size = 0x8000, scoped, tag = 'operand span for operand 1']
    #allocation3 [shape = 'u8[16384]{0}', space=vmem, size = 0x4000, scoped, tag = 'packed  for operand 1']
    %s2 = scalar_lea.vmem [#allocation1], 4
    // Predicated region
    $region2: #{reverse.1} parent=1 // pred_check
      _
    $region3: #{reverse.1} parent=1 // pred_check_branch
      %4 = sbr.rel (0) target = $region5
    $region4: #{reverse.1} parent=1 // pred_region
      // Predicated region
      $region6: #{reverse.1} parent=4 // pred_check
        _
      $region7: #{reverse.1} parent=4 // pred_check_branch
        %6 = sbr.rel target = $region9
      $region8: #{reverse.1} parent=4 // pred_region
        // Predicated region
        $region21: #{reverse.1} parent=8 // pred_check
          _
        $region22: #{reverse.1} parent=8 // pred_check_branch
          %35 = sbr.rel (0) target = $region24
        $region23: #{reverse.1} parent=8 // pred_region
          loop: start=0, step=1, limit=1
          $region25: #{reverse.1} parent=23 // loop_pre_header
            _
          $region26: #{reverse.1} parent=23 // loop_header
            %s37 = sphi 0, %s41
            %p38 = scmp.ge.s32.totalorder %s37, 1
            %s42 = sphi %s0, %s0
            %s43 = sphi %s2, %s2
          $region27: #{reverse.1} parent=23 // loop_header_branch
            %40 = sbr.rel (%p38) target = $region31
          $region28: #{reverse.1} parent=23 // loop_body
            _
          $region29: #{reverse.1} parent=23 // loop_footer
            %s41 = sadd.s32 1, %s37
          $region30: #{reverse.1} parent=23 // loop_footer_branch
            %36 = sbr.rel target = $region26
          $region31: #{reverse.1} parent=23 // loop_exit
            _
          loop: start=0, step=1, limit=1
          $region32: #{reverse.1} parent=23 // loop_pre_header
            _
          $region33: #{reverse.1} parent=23 // loop_header
            %s46 = sphi 0, %s50
            %p47 = scmp.ge.s32.totalorder %s46, 1
            %s51 = sphi %s0, %s0
            %s52 = sphi %s2, %s2
          $region34: #{reverse.1} parent=23 // loop_header_branch
            %49 = sbr.rel (%p47) target = $region38
          $region35: #{reverse.1} parent=23 // loop_body
            %v53 = vld [vmem:[%s51] sm:$0xf]
            %54 = vst [vmem:[%s52] sm:$0xf] %v53
            %v55 = vld [vmem:[%s51 + $0x4] sm:$0xf]
            %56 = vst [vmem:[%s52 + $0x8] sm:$0xf] %v55
            %v57 = vld [vmem:[%s51 + $0x8] sm:$0xf]
            %58 = vst [vmem:[%s52 + $0x10] sm:$0xf] %v57
            %v59 = vld [vmem:[%s51 + $0xc] sm:$0xf]
            %60 = vst [vmem:[%s52 + $0x18] sm:$0xf] %v59
            %v61 = vld [vmem:[%s51 + $0x10] sm:$0xf]
            %62 = vst [vmem:[%s52 + $0x20] sm:$0xf] %v61
            %v63 = vld [vmem:[%s51 + $0x14] sm:$0xf]
            %64 = vst [vmem:[%s52 + $0x28] sm:$0xf] %v63
            %v65 = vld [vmem:[%s51 + $0x18] sm:$0xf]
            %66 = vst [vmem:[%s52 + $0x30] sm:$0xf] %v65
            %v67 = vld [vmem:[%s51 + $0x1c] sm:$0xf]
            %68 = vst [vmem:[%s52 + $0x38] sm:$0xf] %v67
          $region36: #{reverse.1} parent=23 // loop_footer
            %s50 = sadd.s32 1, %s46
          $region37: #{reverse.1} parent=23 // loop_footer_branch
            %45 = sbr.rel target = $region33
          $region38: #{reverse.1} parent=23 // loop_exit
            _
        $region24: #{reverse.1} parent=8 // pred_fallthru
          _
      $region9: #{reverse.1} parent=4 // pred_fallthru
        _
      // Predicated region
      $region10: #{reverse.1} parent=4 // pred_check
        _
      $region11: #{reverse.1} parent=4 // pred_check_branch
        %8 = sbr.rel (0) target = $region13
      $region12: #{reverse.1} parent=4 // pred_region
        loop: start=0, step=1, limit=1
        $region14: #{reverse.1} parent=12 // loop_pre_header
          _
        $region15: #{reverse.1} parent=12 // loop_header
          %s11 = sphi 0, %s15
          %p12 = scmp.ge.s32.totalorder %s11, 1
          %s16 = sphi %s0, %s0
          %s17 = sphi %s2, %s2
        $region16: #{reverse.1} parent=12 // loop_header_branch
          %14 = sbr.rel (%p12) target = $region20
        $region17: #{reverse.1} parent=12 // loop_body
          %v18 = vld [vmem:[%s16] sm:$0xf]
          %19 = vst [vmem:[%s17] sm:$0xf] %v18
          %v20 = vld [vmem:[%s16 + $0x4] sm:$0xf]
          %21 = vst [vmem:[%s17 + $0x8] sm:$0xf] %v20
          %v22 = vld [vmem:[%s16 + $0x8] sm:$0xf]
          %23 = vst [vmem:[%s17 + $0x10] sm:$0xf] %v22
          %v24 = vld [vmem:[%s16 + $0xc] sm:$0xf]
          %25 = vst [vmem:[%s17 + $0x18] sm:$0xf] %v24
          %v26 = vld [vmem:[%s16 + $0x10] sm:$0xf]
          %27 = vst [vmem:[%s17 + $0x20] sm:$0xf] %v26
          %v28 = vld [vmem:[%s16 + $0x14] sm:$0xf]
          %29 = vst [vmem:[%s17 + $0x28] sm:$0xf] %v28
          %v30 = vld [vmem:[%s16 + $0x18] sm:$0xf]
          %31 = vst [vmem:[%s17 + $0x30] sm:$0xf] %v30
          %v32 = vld [vmem:[%s16 + $0x1c] sm:$0xf]
          %33 = vst [vmem:[%s17 + $0x38] sm:$0xf] %v32
        $region18: #{reverse.1} parent=12 // loop_footer
          %s15 = sadd.s32 1, %s11
        $region19: #{reverse.1} parent=12 // loop_footer_branch
          %10 = sbr.rel target = $region15
        $region20: #{reverse.1} parent=12 // loop_exit
          _
      $region13: #{reverse.1} parent=4 // pred_fallthru
        _
    $region5: #{reverse.1} parent=1 // pred_fallthru
      _
    %69 = vnop
    %s71 = sshllo.u32 0, 4
    %s72 = smul.addr 4, 15
    %s73 = scalar_lea.vmem [#allocation1], %s72
    %v74 = vld [vmem:[%s73] sm:%s71]
    %s75 = scalar_lea.vmem [#allocation0], 120
    %76 = vst [vmem:[%s75] sm:%s71] %v74
    %s77 = smul.addr 4, 14
    %s78 = scalar_lea.vmem [#allocation1], %s77
    %v79 = vld [vmem:[%s78] sm:%s71]
    %s80 = scalar_lea.vmem [#allocation0], 112
    %81 = vst [vmem:[%s80] sm:%s71] %v79
    %s82 = smul.addr 4, 13
    %s83 = scalar_lea.vmem [#allocation1], %s82
    %v84 = vld [vmem:[%s83] sm:%s71]
    %s85 = scalar_lea.vmem [#allocation0], 104
    %86 = vst [vmem:[%s85] sm:%s71] %v84
    %s87 = smul.addr 4, 12
    %s88 = scalar_lea.vmem [#allocation1], %s87
    %v89 = vld [vmem:[%s88] sm:%s71]
    %s90 = scalar_lea.vmem [#allocation0], 96
    %91 = vst [vmem:[%s90] sm:%s71] %v89
    %s92 = smul.addr 4, 11
    %s93 = scalar_lea.vmem [#allocation1], %s92
    %v94 = vld [vmem:[%s93] sm:%s71]
    %s95 = scalar_lea.vmem [#allocation0], 88
    %96 = vst [vmem:[%s95] sm:%s71] %v94
    %s97 = smul.addr 4, 10
    %s98 = scalar_lea.vmem [#allocation1], %s97
    %v99 = vld [vmem:[%s98] sm:%s71]
    %s100 = scalar_lea.vmem [#allocation0], 80
    %101 = vst [vmem:[%s100] sm:%s71] %v99
    %s102 = smul.addr 4, 9
    %s103 = scalar_lea.vmem [#allocation1], %s102
    %v104 = vld [vmem:[%s103] sm:%s71]
    %s105 = scalar_lea.vmem [#allocation0], 72
    %106 = vst [vmem:[%s105] sm:%s71] %v104
    %s107 = smul.addr 4, 8
    %s108 = scalar_lea.vmem [#allocation1], %s107
    %v109 = vld [vmem:[%s108] sm:%s71]
    %s110 = scalar_lea.vmem [#allocation0], 64
    %111 = vst [vmem:[%s110] sm:%s71] %v109
    %s112 = smul.addr 4, 7
    %s113 = scalar_lea.vmem [#allocation1], %s112
    %v114 = vld [vmem:[%s113] sm:%s71]
    %s115 = scalar_lea.vmem [#allocation0], 56
    %116 = vst [vmem:[%s115] sm:%s71] %v114
    %s117 = smul.addr 4, 6
    %s118 = scalar_lea.vmem [#allocation1], %s117
    %v119 = vld [vmem:[%s118] sm:%s71]
    %s120 = scalar_lea.vmem [#allocation0], 48
    %121 = vst [vmem:[%s120] sm:%s71] %v119
    %s122 = smul.addr 4, 5
    %s123 = scalar_lea.vmem [#allocation1], %s122
    %v124 = vld [vmem:[%s123] sm:%s71]
    %s125 = scalar_lea.vmem [#allocation0], 40
    %126 = vst [vmem:[%s125] sm:%s71] %v124
    %s127 = smul.addr 4, 4
    %s128 = scalar_lea.vmem [#allocation1], %s127
    %v129 = vld [vmem:[%s128] sm:%s71]
    %s130 = scalar_lea.vmem [#allocation0], 32
    %131 = vst [vmem:[%s130] sm:%s71] %v129
    %s132 = smul.addr 4, 3
    %s133 = scalar_lea.vmem [#allocation1], %s132
    %v134 = vld [vmem:[%s133] sm:%s71]
    %s135 = scalar_lea.vmem [#allocation0], 24
    %136 = vst [vmem:[%s135] sm:%s71] %v134
    %s137 = smul.addr 4, 2
    %s138 = scalar_lea.vmem [#allocation1], %s137
    %v139 = vld [vmem:[%s138] sm:%s71]
    %s140 = scalar_lea.vmem [#allocation0], 16
    %141 = vst [vmem:[%s140] sm:%s71] %v139
    %s142 = scalar_lea.vmem [#allocation1], 4
    %v143 = vld [vmem:[%s142] sm:%s71]
    %s144 = scalar_lea.vmem [#allocation0], 8
    %145 = vst [vmem:[%s144] sm:%s71] %v143
    %v146 = vld [vmem:[#allocation1] sm:%s71]
    %147 = vst [vmem:[#allocation0] sm:%s71] %v146
    %s148 = scalar_lea.vmem [#allocation0], 7
    %v149 = vld [vmem:[%s148] ss:$-1 sm:$0xff]
    %v150 = vrot.slane %v149, 5
    %151 = vst [vmem:[#allocation2] sm:$0xff] %v150
    %s152 = scalar_lea.vmem [#allocation0], 8
    %s153 = scalar_lea.vmem %s152, 7 [#allocation0]
    %v154 = vld [vmem:[%s153] ss:$-1 sm:$0xff]
    %v155 = vrot.slane %v154, 5
    %v156 = vlaneseq
    %v157 = vshrl.u32 %v156, 7
    %vm158 = vcmp.lt.s32.totalorder %v157, 3
    %159 = vst.msk [vmem:[#allocation2] sm:$0xff] %vm158, %v155
    %s160 = scalar_lea.vmem [#allocation2], 8
    %s161 = scalar_lea.vmem [#allocation0], 16
    %s162 = scalar_lea.vmem %s161, 7 [#allocation0]
    %v163 = vld [vmem:[%s162] ss:$-1 sm:$0xff]
    %v164 = vrot.slane %v163, 5
    %165 = vst [vmem:[%s160] sm:$0xff] %v164
    %s166 = scalar_lea.vmem %s161, 8 [#allocation0]
    %s167 = scalar_lea.vmem %s166, 7 [#allocation0]
    %v168 = vld [vmem:[%s167] ss:$-1 sm:$0xff]
    %v169 = vrot.slane %v168, 5
    %v170 = vlaneseq
    %v171 = vshrl.u32 %v170, 7
    %vm172 = vcmp.lt.s32.totalorder %v171, 3
    %173 = vst.msk [vmem:[%s160] sm:$0xff] %vm172, %v169
    %s174 = scalar_lea.vmem [#allocation2], 16
    %s175 = scalar_lea.vmem [#allocation0], 32
    %s176 = scalar_lea.vmem %s175, 7 [#allocation0]
    %v177 = vld [vmem:[%s176] ss:$-1 sm:$0xff]
    %v178 = vrot.slane %v177, 5
    %179 = vst [vmem:[%s174] sm:$0xff] %v178
    %s180 = scalar_lea.vmem %s175, 8 [#allocation0]
    %s181 = scalar_lea.vmem %s180, 7 [#allocation0]
    %v182 = vld [vmem:[%s181] ss:$-1 sm:$0xff]
    %v183 = vrot.slane %v182, 5
    %v184 = vlaneseq
    %v185 = vshrl.u32 %v184, 7
    %vm186 = vcmp.lt.s32.totalorder %v185, 3
    %187 = vst.msk [vmem:[%s174] sm:$0xff] %vm186, %v183
    %s188 = scalar_lea.vmem [#allocation2], 24
    %s189 = scalar_lea.vmem [#allocation0], 48
    %s190 = scalar_lea.vmem %s189, 7 [#allocation0]
    %v191 = vld [vmem:[%s190] ss:$-1 sm:$0xff]
    %v192 = vrot.slane %v191, 5
    %193 = vst [vmem:[%s188] sm:$0xff] %v192
    %s194 = scalar_lea.vmem %s189, 8 [#allocation0]
    %s195 = scalar_lea.vmem %s194, 7 [#allocation0]
    %v196 = vld [vmem:[%s195] ss:$-1 sm:$0xff]
    %v197 = vrot.slane %v196, 5
    %v198 = vlaneseq
    %v199 = vshrl.u32 %v198, 7
    %vm200 = vcmp.lt.s32.totalorder %v199, 3
    %201 = vst.msk [vmem:[%s188] sm:$0xff] %vm200, %v197
    %s202 = scalar_lea.vmem [#allocation2], 32
    %s203 = scalar_lea.vmem [#allocation0], 64
    %s204 = scalar_lea.vmem %s203, 7 [#allocation0]
    %v205 = vld [vmem:[%s204] ss:$-1 sm:$0xff]
    %v206 = vrot.slane %v205, 5
    %207 = vst [vmem:[%s202] sm:$0xff] %v206
    %s208 = scalar_lea.vmem %s203, 8 [#allocation0]
    %s209 = scalar_lea.vmem %s208, 7 [#allocation0]
    %v210 = vld [vmem:[%s209] ss:$-1 sm:$0xff]
    %v211 = vrot.slane %v210, 5
    %v212 = vlaneseq
    %v213 = vshrl.u32 %v212, 7
    %vm214 = vcmp.lt.s32.totalorder %v213, 3
    %215 = vst.msk [vmem:[%s202] sm:$0xff] %vm214, %v211
    %s216 = scalar_lea.vmem [#allocation2], 40
    %s217 = scalar_lea.vmem [#allocation0], 80
    %s218 = scalar_lea.vmem %s217, 7 [#allocation0]
    %v219 = vld [vmem:[%s218] ss:$-1 sm:$0xff]
    %v220 = vrot.slane %v219, 5
    %221 = vst [vmem:[%s216] sm:$0xff] %v220
    %s222 = scalar_lea.vmem %s217, 8 [#allocation0]
    %s223 = scalar_lea.vmem %s222, 7 [#allocation0]
    %v224 = vld [vmem:[%s223] ss:$-1 sm:$0xff]
    %v225 = vrot.slane %v224, 5
    %v226 = vlaneseq
    %v227 = vshrl.u32 %v226, 7
    %vm228 = vcmp.lt.s32.totalorder %v227, 3
    %229 = vst.msk [vmem:[%s216] sm:$0xff] %vm228, %v225
    %s230 = scalar_lea.vmem [#allocation2], 48
    %s231 = scalar_lea.vmem [#allocation0], 96
    %s232 = scalar_lea.vmem %s231, 7 [#allocation0]
    %v233 = vld [vmem:[%s232] ss:$-1 sm:$0xff]
    %v234 = vrot.slane %v233, 5
    %235 = vst [vmem:[%s230] sm:$0xff] %v234
    %s236 = scalar_lea.vmem %s231, 8 [#allocation0]
    %s237 = scalar_lea.vmem %s236, 7 [#allocation0]
    %v238 = vld [vmem:[%s237] ss:$-1 sm:$0xff]
    %v239 = vrot.slane %v238, 5
    %v240 = vlaneseq
    %v241 = vshrl.u32 %v240, 7
    %vm242 = vcmp.lt.s32.totalorder %v241, 3
    %243 = vst.msk [vmem:[%s230] sm:$0xff] %vm242, %v239
    %s244 = scalar_lea.vmem [#allocation2], 56
    %s245 = scalar_lea.vmem [#allocation0], 112
    %s246 = scalar_lea.vmem %s245, 7 [#allocation0]
    %v247 = vld [vmem:[%s246] ss:$-1 sm:$0xff]
    %v248 = vrot.slane %v247, 5
    %249 = vst [vmem:[%s244] sm:$0xff] %v248
    %s250 = scalar_lea.vmem %s245, 8 [#allocation0]
    %s251 = scalar_lea.vmem %s250, 7 [#allocation0]
    %v252 = vld [vmem:[%s251] ss:$-1 sm:$0xff]
    %v253 = vrot.slane %v252, 5
    %v254 = vlaneseq
    %v255 = vshrl.u32 %v254, 7
    %vm256 = vcmp.lt.s32.totalorder %v255, 3
    %257 = vst.msk [vmem:[%s244] sm:$0xff] %vm256, %v253
    %s259 = sshllo.u32 0, 4
    %v261 = vld [vmem:[#allocation2] sm:%s259]
    %s262 = sshllo.u32 0, 4
    %263 = vst [vmem:[#allocation3] sm:%s262] %v261
    %s264 = scalar_lea.vmem [#allocation2], 8
    %v265 = vld [vmem:[%s264] sm:%s259]
    %s266 = sshllo.u32 0, 4
    %s267 = scalar_lea.vmem [#allocation3], 4
    %268 = vst [vmem:[%s267] sm:%s266] %v265
    %s269 = scalar_lea.vmem [#allocation2], 16
    %v270 = vld [vmem:[%s269] sm:%s259]
    %s271 = sshllo.u32 0, 4
    %s272 = smul.addr 4, 2
    %s273 = scalar_lea.vmem [#allocation3], %s272
    %274 = vst [vmem:[%s273] sm:%s271] %v270
    %s275 = scalar_lea.vmem [#allocation2], 24
    %v276 = vld [vmem:[%s275] sm:%s259]
    %s277 = sshllo.u32 0, 4
    %s278 = smul.addr 4, 3
    %s279 = scalar_lea.vmem [#allocation3], %s278
    %280 = vst [vmem:[%s279] sm:%s277] %v276
    %s281 = scalar_lea.vmem [#allocation2], 32
    %v282 = vld [vmem:[%s281] sm:%s259]
    %s283 = sshllo.u32 0, 4
    %s284 = smul.addr 4, 4
    %s285 = scalar_lea.vmem [#allocation3], %s284
    %286 = vst [vmem:[%s285] sm:%s283] %v282
    %s287 = scalar_lea.vmem [#allocation2], 40
    %v288 = vld [vmem:[%s287] sm:%s259]
    %s289 = sshllo.u32 0, 4
    %s290 = smul.addr 4, 5
    %s291 = scalar_lea.vmem [#allocation3], %s290
    %292 = vst [vmem:[%s291] sm:%s289] %v288
    %s293 = scalar_lea.vmem [#allocation2], 48
    %v294 = vld [vmem:[%s293] sm:%s259]
    %s295 = sshllo.u32 0, 4
    %s296 = smul.addr 4, 6
    %s297 = scalar_lea.vmem [#allocation3], %s296
    %298 = vst [vmem:[%s297] sm:%s295] %v294
    %s299 = scalar_lea.vmem [#allocation2], 56
    %v300 = vld [vmem:[%s299] sm:%s259]
    %s301 = sshllo.u32 0, 4
    %s302 = smul.addr 4, 7
    %s303 = scalar_lea.vmem [#allocation3], %s302
    %304 = vst [vmem:[%s303] sm:%s301] %v300
    // Predicated region
    $region39: #{reverse.1} parent=1 // pred_check
      _
    $region40: #{reverse.1} parent=1 // pred_check_branch
      %306 = sbr.rel (0) target = $region42
    $region41: #{reverse.1} parent=1 // pred_region
      // Predicated region
      $region43: #{reverse.1} parent=41 // pred_check
        _
      $region44: #{reverse.1} parent=41 // pred_check_branch
        %308 = sbr.rel target = $region46
      $region45: #{reverse.1} parent=41 // pred_region
        // Predicated region
        $region58: #{reverse.1} parent=45 // pred_check
          _
        $region59: #{reverse.1} parent=45 // pred_check_branch
          %337 = sbr.rel (0) target = $region61
        $region60: #{reverse.1} parent=45 // pred_region
          loop: start=0, step=1, limit=1
          $region62: #{reverse.1} parent=60 // loop_pre_header
            _
          $region63: #{reverse.1} parent=60 // loop_header
            %s339 = sphi 0, %s343
            %p340 = scmp.ge.s32.totalorder %s339, 1
            %s344 = sphi [#allocation3], [#allocation3]
            %s345 = sphi %s1, %s1
          $region64: #{reverse.1} parent=60 // loop_header_branch
            %342 = sbr.rel (%p340) target = $region68
          $region65: #{reverse.1} parent=60 // loop_body
            _
          $region66: #{reverse.1} parent=60 // loop_footer
            %s343 = sadd.s32 1, %s339
          $region67: #{reverse.1} parent=60 // loop_footer_branch
            %338 = sbr.rel target = $region63
          $region68: #{reverse.1} parent=60 // loop_exit
            _
          loop: start=0, step=1, limit=1
          $region69: #{reverse.1} parent=60 // loop_pre_header
            _
          $region70: #{reverse.1} parent=60 // loop_header
            %s348 = sphi 0, %s352
            %p349 = scmp.ge.s32.totalorder %s348, 1
            %s353 = sphi [#allocation3], [#allocation3]
            %s354 = sphi %s1, %s1
          $region71: #{reverse.1} parent=60 // loop_header_branch
            %351 = sbr.rel (%p349) target = $region75
          $region72: #{reverse.1} parent=60 // loop_body
            %v355 = vld [vmem:[%s353] sm:$0xf]
            %356 = vst [vmem:[%s354] sm:$0xf] %v355
            %v357 = vld [vmem:[%s353 + $0x4] sm:$0xf]
            %358 = vst [vmem:[%s354 + $0x4] sm:$0xf] %v357
            %v359 = vld [vmem:[%s353 + $0x8] sm:$0xf]
            %360 = vst [vmem:[%s354 + $0x8] sm:$0xf] %v359
            %v361 = vld [vmem:[%s353 + $0xc] sm:$0xf]
            %362 = vst [vmem:[%s354 + $0xc] sm:$0xf] %v361
            %v363 = vld [vmem:[%s353 + $0x10] sm:$0xf]
            %364 = vst [vmem:[%s354 + $0x10] sm:$0xf] %v363
            %v365 = vld [vmem:[%s353 + $0x14] sm:$0xf]
            %366 = vst [vmem:[%s354 + $0x14] sm:$0xf] %v365
            %v367 = vld [vmem:[%s353 + $0x18] sm:$0xf]
            %368 = vst [vmem:[%s354 + $0x18] sm:$0xf] %v367
            %v369 = vld [vmem:[%s353 + $0x1c] sm:$0xf]
            %370 = vst [vmem:[%s354 + $0x1c] sm:$0xf] %v369
          $region73: #{reverse.1} parent=60 // loop_footer
            %s352 = sadd.s32 1, %s348
          $region74: #{reverse.1} parent=60 // loop_footer_branch
            %347 = sbr.rel target = $region70
          $region75: #{reverse.1} parent=60 // loop_exit
            _
        $region61: #{reverse.1} parent=45 // pred_fallthru
          _
      $region46: #{reverse.1} parent=41 // pred_fallthru
        _
      // Predicated region
      $region47: #{reverse.1} parent=41 // pred_check
        _
      $region48: #{reverse.1} parent=41 // pred_check_branch
        %310 = sbr.rel (0) target = $region50
      $region49: #{reverse.1} parent=41 // pred_region
        loop: start=0, step=1, limit=1
        $region51: #{reverse.1} parent=49 // loop_pre_header
          _
        $region52: #{reverse.1} parent=49 // loop_header
          %s313 = sphi 0, %s317
          %p314 = scmp.ge.s32.totalorder %s313, 1
          %s318 = sphi [#allocation3], [#allocation3]
          %s319 = sphi %s1, %s1
        $region53: #{reverse.1} parent=49 // loop_header_branch
          %316 = sbr.rel (%p314) target = $region57
        $region54: #{reverse.1} parent=49 // loop_body
          %v320 = vld [vmem:[%s318] sm:$0xf]
          %321 = vst [vmem:[%s319] sm:$0xf] %v320
          %v322 = vld [vmem:[%s318 + $0x4] sm:$0xf]
          %323 = vst [vmem:[%s319 + $0x4] sm:$0xf] %v322
          %v324 = vld [vmem:[%s318 + $0x8] sm:$0xf]
          %325 = vst [vmem:[%s319 + $0x8] sm:$0xf] %v324
          %v326 = vld [vmem:[%s318 + $0xc] sm:$0xf]
          %327 = vst [vmem:[%s319 + $0xc] sm:$0xf] %v326
          %v328 = vld [vmem:[%s318 + $0x10] sm:$0xf]
          %329 = vst [vmem:[%s319 + $0x10] sm:$0xf] %v328
          %v330 = vld [vmem:[%s318 + $0x14] sm:$0xf]
          %331 = vst [vmem:[%s319 + $0x14] sm:$0xf] %v330
          %v332 = vld [vmem:[%s318 + $0x18] sm:$0xf]
          %333 = vst [vmem:[%s319 + $0x18] sm:$0xf] %v332
          %v334 = vld [vmem:[%s318 + $0x1c] sm:$0xf]
          %335 = vst [vmem:[%s319 + $0x1c] sm:$0xf] %v334
        $region55: #{reverse.1} parent=49 // loop_footer
          %s317 = sadd.s32 1, %s313
        $region56: #{reverse.1} parent=49 // loop_footer_branch
          %312 = sbr.rel target = $region52
        $region57: #{reverse.1} parent=49 // loop_exit
          _
      $region50: #{reverse.1} parent=41 // pred_fallthru
        _
    $region42: #{reverse.1} parent=1 // pred_fallthru
      _
    %371 = vnop

// kernel: tile.9
$region0: #{tile.9}
  %s0 = inlined_call_operand.vmem [shape: f32[4,2,2,8,2,8], index: 0, kind: input, shape index: {}]
  %s1 = inlined_call_operand.vmem [shape: f32[4,2,16,16], index: 1, kind: output, shape index: {}]
  $region1: #{tile.9} parent=0
    #allocation0 [shape = 'u8[524288]{0}', space=vmem, size = 0x80000, scoped, tag = 'scoped mem for input reshape']
    %s3 = sshllo.u32 0, 2
    %s4 = smul.addr 2, 127
    %s5 = scalar_lea.vmem %s0, %s4
    %v6 = vld [vmem:[%s5] sm:%s3]
    %s7 = scalar_lea.vmem [#allocation0], 1016
    %8 = vst [vmem:[%s7] sm:%s3] %v6
    %s9 = smul.addr 2, 126
    %s10 = scalar_lea.vmem %s0, %s9
    %v11 = vld [vmem:[%s10] sm:%s3]
    %s12 = scalar_lea.vmem [#allocation0], 1008
    %13 = vst [vmem:[%s12] sm:%s3] %v11
    %s14 = smul.addr 2, 125
    %s15 = scalar_lea.vmem %s0, %s14
    %v16 = vld [vmem:[%s15] sm:%s3]
    %s17 = scalar_lea.vmem [#allocation0], 1000
    %18 = vst [vmem:[%s17] sm:%s3] %v16
    %s19 = smul.addr 2, 124
    %s20 = scalar_lea.vmem %s0, %s19
    %v21 = vld [vmem:[%s20] sm:%s3]
    %s22 = scalar_lea.vmem [#allocation0], 992
    %23 = vst [vmem:[%s22] sm:%s3] %v21
    %s24 = smul.addr 2, 123
    %s25 = scalar_lea.vmem %s0, %s24
    %v26 = vld [vmem:[%s25] sm:%s3]
    %s27 = scalar_lea.vmem [#allocation0], 984
    %28 = vst [vmem:[%s27] sm:%s3] %v26
    %s29 = smul.addr 2, 122
    %s30 = scalar_lea.vmem %s0, %s29
    %v31 = vld [vmem:[%s30] sm:%s3]
    %s32 = scalar_lea.vmem [#allocation0], 976
    %33 = vst [vmem:[%s32] sm:%s3] %v31
    %s34 = smul.addr 2, 121
    %s35 = scalar_lea.vmem %s0, %s34
    %v36 = vld [vmem:[%s35] sm:%s3]
    %s37 = scalar_lea.vmem [#allocation0], 968
    %38 = vst [vmem:[%s37] sm:%s3] %v36
    %s39 = smul.addr 2, 120
    %s40 = scalar_lea.vmem %s0, %s39
    %v41 = vld [vmem:[%s40] sm:%s3]
    %s42 = scalar_lea.vmem [#allocation0], 960
    %43 = vst [vmem:[%s42] sm:%s3] %v41
    %s44 = smul.addr 2, 119
    %s45 = scalar_lea.vmem %s0, %s44
    %v46 = vld [vmem:[%s45] sm:%s3]
    %s47 = scalar_lea.vmem [#allocation0], 952
    %48 = vst [vmem:[%s47] sm:%s3] %v46
    %s49 = smul.addr 2, 118
    %s50 = scalar_lea.vmem %s0, %s49
    %v51 = vld [vmem:[%s50] sm:%s3]
    %s52 = scalar_lea.vmem [#allocation0], 944
    %53 = vst [vmem:[%s52] sm:%s3] %v51
    %s54 = smul.addr 2, 117
    %s55 = scalar_lea.vmem %s0, %s54
    %v56 = vld [vmem:[%s55] sm:%s3]
    %s57 = scalar_lea.vmem [#allocation0], 936
    %58 = vst [vmem:[%s57] sm:%s3] %v56
    %s59 = smul.addr 2, 116
    %s60 = scalar_lea.vmem %s0, %s59
    %v61 = vld [vmem:[%s60] sm:%s3]
    %s62 = scalar_lea.vmem [#allocation0], 928
    %63 = vst [vmem:[%s62] sm:%s3] %v61
    %s64 = smul.addr 2, 115
    %s65 = scalar_lea.vmem %s0, %s64
    %v66 = vld [vmem:[%s65] sm:%s3]
    %s67 = scalar_lea.vmem [#allocation0], 920
    %68 = vst [vmem:[%s67] sm:%s3] %v66
    %s69 = smul.addr 2, 114
    %s70 = scalar_lea.vmem %s0, %s69
    %v71 = vld [vmem:[%s70] sm:%s3]
    %s72 = scalar_lea.vmem [#allocation0], 912
    %73 = vst [vmem:[%s72] sm:%s3] %v71
    %s74 = smul.addr 2, 113
    %s75 = scalar_lea.vmem %s0, %s74
    %v76 = vld [vmem:[%s75] sm:%s3]
    %s77 = scalar_lea.vmem [#allocation0], 904
    %78 = vst [vmem:[%s77] sm:%s3] %v76
    %s79 = smul.addr 2, 112
    %s80 = scalar_lea.vmem %s0, %s79
    %v81 = vld [vmem:[%s80] sm:%s3]
    %s82 = scalar_lea.vmem [#allocation0], 896
    %83 = vst [vmem:[%s82] sm:%s3] %v81
    %s84 = smul.addr 2, 111
    %s85 = scalar_lea.vmem %s0, %s84
    %v86 = vld [vmem:[%s85] sm:%s3]
    %s87 = scalar_lea.vmem [#allocation0], 888
    %88 = vst [vmem:[%s87] sm:%s3] %v86
    %s89 = smul.addr 2, 110
    %s90 = scalar_lea.vmem %s0, %s89
    %v91 = vld [vmem:[%s90] sm:%s3]
    %s92 = scalar_lea.vmem [#allocation0], 880
    %93 = vst [vmem:[%s92] sm:%s3] %v91
    %s94 = smul.addr 2, 109
    %s95 = scalar_lea.vmem %s0, %s94
    %v96 = vld [vmem:[%s95] sm:%s3]
    %s97 = scalar_lea.vmem [#allocation0], 872
    %98 = vst [vmem:[%s97] sm:%s3] %v96
    %s99 = smul.addr 2, 108
    %s100 = scalar_lea.vmem %s0, %s99
    %v101 = vld [vmem:[%s100] sm:%s3]
    %s102 = scalar_lea.vmem [#allocation0], 864
    %103 = vst [vmem:[%s102] sm:%s3] %v101
    %s104 = smul.addr 2, 107
    %s105 = scalar_lea.vmem %s0, %s104
    %v106 = vld [vmem:[%s105] sm:%s3]
    %s107 = scalar_lea.vmem [#allocation0], 856
    %108 = vst [vmem:[%s107] sm:%s3] %v106
    %s109 = smul.addr 2, 106
    %s110 = scalar_lea.vmem %s0, %s109
    %v111 = vld [vmem:[%s110] sm:%s3]
    %s112 = scalar_lea.vmem [#allocation0], 848
    %113 = vst [vmem:[%s112] sm:%s3] %v111
    %s114 = smul.addr 2, 105
    %s115 = scalar_lea.vmem %s0, %s114
    %v116 = vld [vmem:[%s115] sm:%s3]
    %s117 = scalar_lea.vmem [#allocation0], 840
    %118 = vst [vmem:[%s117] sm:%s3] %v116
    %s119 = smul.addr 2, 104
    %s120 = scalar_lea.vmem %s0, %s119
    %v121 = vld [vmem:[%s120] sm:%s3]
    %s122 = scalar_lea.vmem [#allocation0], 832
    %123 = vst [vmem:[%s122] sm:%s3] %v121
    %s124 = smul.addr 2, 103
    %s125 = scalar_lea.vmem %s0, %s124
    %v126 = vld [vmem:[%s125] sm:%s3]
    %s127 = scalar_lea.vmem [#allocation0], 824
    %128 = vst [vmem:[%s127] sm:%s3] %v126
    %s129 = smul.addr 2, 102
    %s130 = scalar_lea.vmem %s0, %s129
    %v131 = vld [vmem:[%s130] sm:%s3]
    %s132 = scalar_lea.vmem [#allocation0], 816
    %133 = vst [vmem:[%s132] sm:%s3] %v131
    %s134 = smul.addr 2, 101
    %s135 = scalar_lea.vmem %s0, %s134
    %v136 = vld [vmem:[%s135] sm:%s3]
    %s137 = scalar_lea.vmem [#allocation0], 808
    %138 = vst [vmem:[%s137] sm:%s3] %v136
    %s139 = smul.addr 2, 100
    %s140 = scalar_lea.vmem %s0, %s139
    %v141 = vld [vmem:[%s140] sm:%s3]
    %s142 = scalar_lea.vmem [#allocation0], 800
    %143 = vst [vmem:[%s142] sm:%s3] %v141
    %s144 = smul.addr 2, 99
    %s145 = scalar_lea.vmem %s0, %s144
    %v146 = vld [vmem:[%s145] sm:%s3]
    %s147 = scalar_lea.vmem [#allocation0], 792
    %148 = vst [vmem:[%s147] sm:%s3] %v146
    %s149 = smul.addr 2, 98
    %s150 = scalar_lea.vmem %s0, %s149
    %v151 = vld [vmem:[%s150] sm:%s3]
    %s152 = scalar_lea.vmem [#allocation0], 784
    %153 = vst [vmem:[%s152] sm:%s3] %v151
    %s154 = smul.addr 2, 97
    %s155 = scalar_lea.vmem %s0, %s154
    %v156 = vld [vmem:[%s155] sm:%s3]
    %s157 = scalar_lea.vmem [#allocation0], 776
    %158 = vst [vmem:[%s157] sm:%s3] %v156
    %s159 = smul.addr 2, 96
    %s160 = scalar_lea.vmem %s0, %s159
    %v161 = vld [vmem:[%s160] sm:%s3]
    %s162 = scalar_lea.vmem [#allocation0], 768
    %163 = vst [vmem:[%s162] sm:%s3] %v161
    %s164 = smul.addr 2, 95
    %s165 = scalar_lea.vmem %s0, %s164
    %v166 = vld [vmem:[%s165] sm:%s3]
    %s167 = scalar_lea.vmem [#allocation0], 760
    %168 = vst [vmem:[%s167] sm:%s3] %v166
    %s169 = smul.addr 2, 94
    %s170 = scalar_lea.vmem %s0, %s169
    %v171 = vld [vmem:[%s170] sm:%s3]
    %s172 = scalar_lea.vmem [#allocation0], 752
    %173 = vst [vmem:[%s172] sm:%s3] %v171
    %s174 = smul.addr 2, 93
    %s175 = scalar_lea.vmem %s0, %s174
    %v176 = vld [vmem:[%s175] sm:%s3]
    %s177 = scalar_lea.vmem [#allocation0], 744
    %178 = vst [vmem:[%s177] sm:%s3] %v176
    %s179 = smul.addr 2, 92
    %s180 = scalar_lea.vmem %s0, %s179
    %v181 = vld [vmem:[%s180] sm:%s3]
    %s182 = scalar_lea.vmem [#allocation0], 736
    %183 = vst [vmem:[%s182] sm:%s3] %v181
    %s184 = smul.addr 2, 91
    %s185 = scalar_lea.vmem %s0, %s184
    %v186 = vld [vmem:[%s185] sm:%s3]
    %s187 = scalar_lea.vmem [#allocation0], 728
    %188 = vst [vmem:[%s187] sm:%s3] %v186
    %s189 = smul.addr 2, 90
    %s190 = scalar_lea.vmem %s0, %s189
    %v191 = vld [vmem:[%s190] sm:%s3]
    %s192 = scalar_lea.vmem [#allocation0], 720
    %193 = vst [vmem:[%s192] sm:%s3] %v191
    %s194 = smul.addr 2, 89
    %s195 = scalar_lea.vmem %s0, %s194
    %v196 = vld [vmem:[%s195] sm:%s3]
    %s197 = scalar_lea.vmem [#allocation0], 712
    %198 = vst [vmem:[%s197] sm:%s3] %v196
    %s199 = smul.addr 2, 88
    %s200 = scalar_lea.vmem %s0, %s199
    %v201 = vld [vmem:[%s200] sm:%s3]
    %s202 = scalar_lea.vmem [#allocation0], 704
    %203 = vst [vmem:[%s202] sm:%s3] %v201
    %s204 = smul.addr 2, 87
    %s205 = scalar_lea.vmem %s0, %s204
    %v206 = vld [vmem:[%s205] sm:%s3]
    %s207 = scalar_lea.vmem [#allocation0], 696
    %208 = vst [vmem:[%s207] sm:%s3] %v206
    %s209 = smul.addr 2, 86
    %s210 = scalar_lea.vmem %s0, %s209
    %v211 = vld [vmem:[%s210] sm:%s3]
    %s212 = scalar_lea.vmem [#allocation0], 688
    %213 = vst [vmem:[%s212] sm:%s3] %v211
    %s214 = smul.addr 2, 85
    %s215 = scalar_lea.vmem %s0, %s214
    %v216 = vld [vmem:[%s215] sm:%s3]
    %s217 = scalar_lea.vmem [#allocation0], 680
    %218 = vst [vmem:[%s217] sm:%s3] %v216
    %s219 = smul.addr 2, 84
    %s220 = scalar_lea.vmem %s0, %s219
    %v221 = vld [vmem:[%s220] sm:%s3]
    %s222 = scalar_lea.vmem [#allocation0], 672
    %223 = vst [vmem:[%s222] sm:%s3] %v221
    %s224 = smul.addr 2, 83
    %s225 = scalar_lea.vmem %s0, %s224
    %v226 = vld [vmem:[%s225] sm:%s3]
    %s227 = scalar_lea.vmem [#allocation0], 664
    %228 = vst [vmem:[%s227] sm:%s3] %v226
    %s229 = smul.addr 2, 82
    %s230 = scalar_lea.vmem %s0, %s229
    %v231 = vld [vmem:[%s230] sm:%s3]
    %s232 = scalar_lea.vmem [#allocation0], 656
    %233 = vst [vmem:[%s232] sm:%s3] %v231
    %s234 = smul.addr 2, 81
    %s235 = scalar_lea.vmem %s0, %s234
    %v236 = vld [vmem:[%s235] sm:%s3]
    %s237 = scalar_lea.vmem [#allocation0], 648
    %238 = vst [vmem:[%s237] sm:%s3] %v236
    %s239 = smul.addr 2, 80
    %s240 = scalar_lea.vmem %s0, %s239
    %v241 = vld [vmem:[%s240] sm:%s3]
    %s242 = scalar_lea.vmem [#allocation0], 640
    %243 = vst [vmem:[%s242] sm:%s3] %v241
    %s244 = smul.addr 2, 79
    %s245 = scalar_lea.vmem %s0, %s244
    %v246 = vld [vmem:[%s245] sm:%s3]
    %s247 = scalar_lea.vmem [#allocation0], 632
    %248 = vst [vmem:[%s247] sm:%s3] %v246
    %s249 = smul.addr 2, 78
    %s250 = scalar_lea.vmem %s0, %s249
    %v251 = vld [vmem:[%s250] sm:%s3]
    %s252 = scalar_lea.vmem [#allocation0], 624
    %253 = vst [vmem:[%s252] sm:%s3] %v251
    %s254 = smul.addr 2, 77
    %s255 = scalar_lea.vmem %s0, %s254
    %v256 = vld [vmem:[%s255] sm:%s3]
    %s257 = scalar_lea.vmem [#allocation0], 616
    %258 = vst [vmem:[%s257] sm:%s3] %v256
    %s259 = smul.addr 2, 76
    %s260 = scalar_lea.vmem %s0, %s259
    %v261 = vld [vmem:[%s260] sm:%s3]
    %s262 = scalar_lea.vmem [#allocation0], 608
    %263 = vst [vmem:[%s262] sm:%s3] %v261
    %s264 = smul.addr 2, 75
    %s265 = scalar_lea.vmem %s0, %s264
    %v266 = vld [vmem:[%s265] sm:%s3]
    %s267 = scalar_lea.vmem [#allocation0], 600
    %268 = vst [vmem:[%s267] sm:%s3] %v266
    %s269 = smul.addr 2, 74
    %s270 = scalar_lea.vmem %s0, %s269
    %v271 = vld [vmem:[%s270] sm:%s3]
    %s272 = scalar_lea.vmem [#allocation0], 592
    %273 = vst [vmem:[%s272] sm:%s3] %v271
    %s274 = smul.addr 2, 73
    %s275 = scalar_lea.vmem %s0, %s274
    %v276 = vld [vmem:[%s275] sm:%s3]
    %s277 = scalar_lea.vmem [#allocation0], 584
    %278 = vst [vmem:[%s277] sm:%s3] %v276
    %s279 = smul.addr 2, 72
    %s280 = scalar_lea.vmem %s0, %s279
    %v281 = vld [vmem:[%s280] sm:%s3]
    %s282 = scalar_lea.vmem [#allocation0], 576
    %283 = vst [vmem:[%s282] sm:%s3] %v281
    %s284 = smul.addr 2, 71
    %s285 = scalar_lea.vmem %s0, %s284
    %v286 = vld [vmem:[%s285] sm:%s3]
    %s287 = scalar_lea.vmem [#allocation0], 568
    %288 = vst [vmem:[%s287] sm:%s3] %v286
    %s289 = smul.addr 2, 70
    %s290 = scalar_lea.vmem %s0, %s289
    %v291 = vld [vmem:[%s290] sm:%s3]
    %s292 = scalar_lea.vmem [#allocation0], 560
    %293 = vst [vmem:[%s292] sm:%s3] %v291
    %s294 = smul.addr 2, 69
    %s295 = scalar_lea.vmem %s0, %s294
    %v296 = vld [vmem:[%s295] sm:%s3]
    %s297 = scalar_lea.vmem [#allocation0], 552
    %298 = vst [vmem:[%s297] sm:%s3] %v296
    %s299 = smul.addr 2, 68
    %s300 = scalar_lea.vmem %s0, %s299
    %v301 = vld [vmem:[%s300] sm:%s3]
    %s302 = scalar_lea.vmem [#allocation0], 544
    %303 = vst [vmem:[%s302] sm:%s3] %v301
    %s304 = smul.addr 2, 67
    %s305 = scalar_lea.vmem %s0, %s304
    %v306 = vld [vmem:[%s305] sm:%s3]
    %s307 = scalar_lea.vmem [#allocation0], 536
    %308 = vst [vmem:[%s307] sm:%s3] %v306
    %s309 = smul.addr 2, 66
    %s310 = scalar_lea.vmem %s0, %s309
    %v311 = vld [vmem:[%s310] sm:%s3]
    %s312 = scalar_lea.vmem [#allocation0], 528
    %313 = vst [vmem:[%s312] sm:%s3] %v311
    %s314 = smul.addr 2, 65
    %s315 = scalar_lea.vmem %s0, %s314
    %v316 = vld [vmem:[%s315] sm:%s3]
    %s317 = scalar_lea.vmem [#allocation0], 520
    %318 = vst [vmem:[%s317] sm:%s3] %v316
    %s319 = smul.addr 2, 64
    %s320 = scalar_lea.vmem %s0, %s319
    %v321 = vld [vmem:[%s320] sm:%s3]
    %s322 = scalar_lea.vmem [#allocation0], 512
    %323 = vst [vmem:[%s322] sm:%s3] %v321
    %s324 = smul.addr 2, 63
    %s325 = scalar_lea.vmem %s0, %s324
    %v326 = vld [vmem:[%s325] sm:%s3]
    %s327 = scalar_lea.vmem [#allocation0], 504
    %328 = vst [vmem:[%s327] sm:%s3] %v326
    %s329 = smul.addr 2, 62
    %s330 = scalar_lea.vmem %s0, %s329
    %v331 = vld [vmem:[%s330] sm:%s3]
    %s332 = scalar_lea.vmem [#allocation0], 496
    %333 = vst [vmem:[%s332] sm:%s3] %v331
    %s334 = smul.addr 2, 61
    %s335 = scalar_lea.vmem %s0, %s334
    %v336 = vld [vmem:[%s335] sm:%s3]
    %s337 = scalar_lea.vmem [#allocation0], 488
    %338 = vst [vmem:[%s337] sm:%s3] %v336
    %s339 = smul.addr 2, 60
    %s340 = scalar_lea.vmem %s0, %s339
    %v341 = vld [vmem:[%s340] sm:%s3]
    %s342 = scalar_lea.vmem [#allocation0], 480
    %343 = vst [vmem:[%s342] sm:%s3] %v341
    %s344 = smul.addr 2, 59
    %s345 = scalar_lea.vmem %s0, %s344
    %v346 = vld [vmem:[%s345] sm:%s3]
    %s347 = scalar_lea.vmem [#allocation0], 472
    %348 = vst [vmem:[%s347] sm:%s3] %v346
    %s349 = smul.addr 2, 58
    %s350 = scalar_lea.vmem %s0, %s349
    %v351 = vld [vmem:[%s350] sm:%s3]
    %s352 = scalar_lea.vmem [#allocation0], 464
    %353 = vst [vmem:[%s352] sm:%s3] %v351
    %s354 = smul.addr 2, 57
    %s355 = scalar_lea.vmem %s0, %s354
    %v356 = vld [vmem:[%s355] sm:%s3]
    %s357 = scalar_lea.vmem [#allocation0], 456
    %358 = vst [vmem:[%s357] sm:%s3] %v356
    %s359 = smul.addr 2, 56
    %s360 = scalar_lea.vmem %s0, %s359
    %v361 = vld [vmem:[%s360] sm:%s3]
    %s362 = scalar_lea.vmem [#allocation0], 448
    %363 = vst [vmem:[%s362] sm:%s3] %v361
    %s364 = smul.addr 2, 55
    %s365 = scalar_lea.vmem %s0, %s364
    %v366 = vld [vmem:[%s365] sm:%s3]
    %s367 = scalar_lea.vmem [#allocation0], 440
    %368 = vst [vmem:[%s367] sm:%s3] %v366
    %s369 = smul.addr 2, 54
    %s370 = scalar_lea.vmem %s0, %s369
    %v371 = vld [vmem:[%s370] sm:%s3]
    %s372 = scalar_lea.vmem [#allocation0], 432
    %373 = vst [vmem:[%s372] sm:%s3] %v371
    %s374 = smul.addr 2, 53
    %s375 = scalar_lea.vmem %s0, %s374
    %v376 = vld [vmem:[%s375] sm:%s3]
    %s377 = scalar_lea.vmem [#allocation0], 424
    %378 = vst [vmem:[%s377] sm:%s3] %v376
    %s379 = smul.addr 2, 52
    %s380 = scalar_lea.vmem %s0, %s379
    %v381 = vld [vmem:[%s380] sm:%s3]
    %s382 = scalar_lea.vmem [#allocation0], 416
    %383 = vst [vmem:[%s382] sm:%s3] %v381
    %s384 = smul.addr 2, 51
    %s385 = scalar_lea.vmem %s0, %s384
    %v386 = vld [vmem:[%s385] sm:%s3]
    %s387 = scalar_lea.vmem [#allocation0], 408
    %388 = vst [vmem:[%s387] sm:%s3] %v386
    %s389 = smul.addr 2, 50
    %s390 = scalar_lea.vmem %s0, %s389
    %v391 = vld [vmem:[%s390] sm:%s3]
    %s392 = scalar_lea.vmem [#allocation0], 400
    %393 = vst [vmem:[%s392] sm:%s3] %v391
    %s394 = smul.addr 2, 49
    %s395 = scalar_lea.vmem %s0, %s394
    %v396 = vld [vmem:[%s395] sm:%s3]
    %s397 = scalar_lea.vmem [#allocation0], 392
    %398 = vst [vmem:[%s397] sm:%s3] %v396
    %s399 = smul.addr 2, 48
    %s400 = scalar_lea.vmem %s0, %s399
    %v401 = vld [vmem:[%s400] sm:%s3]
    %s402 = scalar_lea.vmem [#allocation0], 384
    %403 = vst [vmem:[%s402] sm:%s3] %v401
    %s404 = smul.addr 2, 47
    %s405 = scalar_lea.vmem %s0, %s404
    %v406 = vld [vmem:[%s405] sm:%s3]
    %s407 = scalar_lea.vmem [#allocation0], 376
    %408 = vst [vmem:[%s407] sm:%s3] %v406
    %s409 = smul.addr 2, 46
    %s410 = scalar_lea.vmem %s0, %s409
    %v411 = vld [vmem:[%s410] sm:%s3]
    %s412 = scalar_lea.vmem [#allocation0], 368
    %413 = vst [vmem:[%s412] sm:%s3] %v411
    %s414 = smul.addr 2, 45
    %s415 = scalar_lea.vmem %s0, %s414
    %v416 = vld [vmem:[%s415] sm:%s3]
    %s417 = scalar_lea.vmem [#allocation0], 360
    %418 = vst [vmem:[%s417] sm:%s3] %v416
    %s419 = smul.addr 2, 44
    %s420 = scalar_lea.vmem %s0, %s419
    %v421 = vld [vmem:[%s420] sm:%s3]
    %s422 = scalar_lea.vmem [#allocation0], 352
    %423 = vst [vmem:[%s422] sm:%s3] %v421
    %s424 = smul.addr 2, 43
    %s425 = scalar_lea.vmem %s0, %s424
    %v426 = vld [vmem:[%s425] sm:%s3]
    %s427 = scalar_lea.vmem [#allocation0], 344
    %428 = vst [vmem:[%s427] sm:%s3] %v426
    %s429 = smul.addr 2, 42
    %s430 = scalar_lea.vmem %s0, %s429
    %v431 = vld [vmem:[%s430] sm:%s3]
    %s432 = scalar_lea.vmem [#allocation0], 336
    %433 = vst [vmem:[%s432] sm:%s3] %v431
    %s434 = smul.addr 2, 41
    %s435 = scalar_lea.vmem %s0, %s434
    %v436 = vld [vmem:[%s435] sm:%s3]
    %s437 = scalar_lea.vmem [#allocation0], 328
    %438 = vst [vmem:[%s437] sm:%s3] %v436
    %s439 = smul.addr 2, 40
    %s440 = scalar_lea.vmem %s0, %s439
    %v441 = vld [vmem:[%s440] sm:%s3]
    %s442 = scalar_lea.vmem [#allocation0], 320
    %443 = vst [vmem:[%s442] sm:%s3] %v441
    %s444 = smul.addr 2, 39
    %s445 = scalar_lea.vmem %s0, %s444
    %v446 = vld [vmem:[%s445] sm:%s3]
    %s447 = scalar_lea.vmem [#allocation0], 312
    %448 = vst [vmem:[%s447] sm:%s3] %v446
    %s449 = smul.addr 2, 38
    %s450 = scalar_lea.vmem %s0, %s449
    %v451 = vld [vmem:[%s450] sm:%s3]
    %s452 = scalar_lea.vmem [#allocation0], 304
    %453 = vst [vmem:[%s452] sm:%s3] %v451
    %s454 = smul.addr 2, 37
    %s455 = scalar_lea.vmem %s0, %s454
    %v456 = vld [vmem:[%s455] sm:%s3]
    %s457 = scalar_lea.vmem [#allocation0], 296
    %458 = vst [vmem:[%s457] sm:%s3] %v456
    %s459 = smul.addr 2, 36
    %s460 = scalar_lea.vmem %s0, %s459
    %v461 = vld [vmem:[%s460] sm:%s3]
    %s462 = scalar_lea.vmem [#allocation0], 288
    %463 = vst [vmem:[%s462] sm:%s3] %v461
    %s464 = smul.addr 2, 35
    %s465 = scalar_lea.vmem %s0, %s464
    %v466 = vld [vmem:[%s465] sm:%s3]
    %s467 = scalar_lea.vmem [#allocation0], 280
    %468 = vst [vmem:[%s467] sm:%s3] %v466
    %s469 = smul.addr 2, 34
    %s470 = scalar_lea.vmem %s0, %s469
    %v471 = vld [vmem:[%s470] sm:%s3]
    %s472 = scalar_lea.vmem [#allocation0], 272
    %473 = vst [vmem:[%s472] sm:%s3] %v471
    %s474 = smul.addr 2, 33
    %s475 = scalar_lea.vmem %s0, %s474
    %v476 = vld [vmem:[%s475] sm:%s3]
    %s477 = scalar_lea.vmem [#allocation0], 264
    %478 = vst [vmem:[%s477] sm:%s3] %v476
    %s479 = smul.addr 2, 32
    %s480 = scalar_lea.vmem %s0, %s479
    %v481 = vld [vmem:[%s480] sm:%s3]
    %s482 = scalar_lea.vmem [#allocation0], 256
    %483 = vst [vmem:[%s482] sm:%s3] %v481
    %s484 = smul.addr 2, 31
    %s485 = scalar_lea.vmem %s0, %s484
    %v486 = vld [vmem:[%s485] sm:%s3]
    %s487 = scalar_lea.vmem [#allocation0], 248
    %488 = vst [vmem:[%s487] sm:%s3] %v486
    %s489 = smul.addr 2, 30
    %s490 = scalar_lea.vmem %s0, %s489
    %v491 = vld [vmem:[%s490] sm:%s3]
    %s492 = scalar_lea.vmem [#allocation0], 240
    %493 = vst [vmem:[%s492] sm:%s3] %v491
    %s494 = smul.addr 2, 29
    %s495 = scalar_lea.vmem %s0, %s494
    %v496 = vld [vmem:[%s495] sm:%s3]
    %s497 = scalar_lea.vmem [#allocation0], 232
    %498 = vst [vmem:[%s497] sm:%s3] %v496
    %s499 = smul.addr 2, 28
    %s500 = scalar_lea.vmem %s0, %s499
    %v501 = vld [vmem:[%s500] sm:%s3]
    %s502 = scalar_lea.vmem [#allocation0], 224
    %503 = vst [vmem:[%s502] sm:%s3] %v501
    %s504 = smul.addr 2, 27
    %s505 = scalar_lea.vmem %s0, %s504
    %v506 = vld [vmem:[%s505] sm:%s3]
    %s507 = scalar_lea.vmem [#allocation0], 216
    %508 = vst [vmem:[%s507] sm:%s3] %v506
    %s509 = smul.addr 2, 26
    %s510 = scalar_lea.vmem %s0, %s509
    %v511 = vld [vmem:[%s510] sm:%s3]
    %s512 = scalar_lea.vmem [#allocation0], 208
    %513 = vst [vmem:[%s512] sm:%s3] %v511
    %s514 = smul.addr 2, 25
    %s515 = scalar_lea.vmem %s0, %s514
    %v516 = vld [vmem:[%s515] sm:%s3]
    %s517 = scalar_lea.vmem [#allocation0], 200
    %518 = vst [vmem:[%s517] sm:%s3] %v516
    %s519 = smul.addr 2, 24
    %s520 = scalar_lea.vmem %s0, %s519
    %v521 = vld [vmem:[%s520] sm:%s3]
    %s522 = scalar_lea.vmem [#allocation0], 192
    %523 = vst [vmem:[%s522] sm:%s3] %v521
    %s524 = smul.addr 2, 23
    %s525 = scalar_lea.vmem %s0, %s524
    %v526 = vld [vmem:[%s525] sm:%s3]
    %s527 = scalar_lea.vmem [#allocation0], 184
    %528 = vst [vmem:[%s527] sm:%s3] %v526
    %s529 = smul.addr 2, 22
    %s530 = scalar_lea.vmem %s0, %s529
    %v531 = vld [vmem:[%s530] sm:%s3]
    %s532 = scalar_lea.vmem [#allocation0], 176
    %533 = vst [vmem:[%s532] sm:%s3] %v531
    %s534 = smul.addr 2, 21
    %s535 = scalar_lea.vmem %s0, %s534
    %v536 = vld [vmem:[%s535] sm:%s3]
    %s537 = scalar_lea.vmem [#allocation0], 168
    %538 = vst [vmem:[%s537] sm:%s3] %v536
    %s539 = smul.addr 2, 20
    %s540 = scalar_lea.vmem %s0, %s539
    %v541 = vld [vmem:[%s540] sm:%s3]
    %s542 = scalar_lea.vmem [#allocation0], 160
    %543 = vst [vmem:[%s542] sm:%s3] %v541
    %s544 = smul.addr 2, 19
    %s545 = scalar_lea.vmem %s0, %s544
    %v546 = vld [vmem:[%s545] sm:%s3]
    %s547 = scalar_lea.vmem [#allocation0], 152
    %548 = vst [vmem:[%s547] sm:%s3] %v546
    %s549 = smul.addr 2, 18
    %s550 = scalar_lea.vmem %s0, %s549
    %v551 = vld [vmem:[%s550] sm:%s3]
    %s552 = scalar_lea.vmem [#allocation0], 144
    %553 = vst [vmem:[%s552] sm:%s3] %v551
    %s554 = smul.addr 2, 17
    %s555 = scalar_lea.vmem %s0, %s554
    %v556 = vld [vmem:[%s555] sm:%s3]
    %s557 = scalar_lea.vmem [#allocation0], 136
    %558 = vst [vmem:[%s557] sm:%s3] %v556
    %s559 = smul.addr 2, 16
    %s560 = scalar_lea.vmem %s0, %s559
    %v561 = vld [vmem:[%s560] sm:%s3]
    %s562 = scalar_lea.vmem [#allocation0], 128
    %563 = vst [vmem:[%s562] sm:%s3] %v561
    %s564 = smul.addr 2, 15
    %s565 = scalar_lea.vmem %s0, %s564
    %v566 = vld [vmem:[%s565] sm:%s3]
    %s567 = scalar_lea.vmem [#allocation0], 120
    %568 = vst [vmem:[%s567] sm:%s3] %v566
    %s569 = smul.addr 2, 14
    %s570 = scalar_lea.vmem %s0, %s569
    %v571 = vld [vmem:[%s570] sm:%s3]
    %s572 = scalar_lea.vmem [#allocation0], 112
    %573 = vst [vmem:[%s572] sm:%s3] %v571
    %s574 = smul.addr 2, 13
    %s575 = scalar_lea.vmem %s0, %s574
    %v576 = vld [vmem:[%s575] sm:%s3]
    %s577 = scalar_lea.vmem [#allocation0], 104
    %578 = vst [vmem:[%s577] sm:%s3] %v576
    %s579 = smul.addr 2, 12
    %s580 = scalar_lea.vmem %s0, %s579
    %v581 = vld [vmem:[%s580] sm:%s3]
    %s582 = scalar_lea.vmem [#allocation0], 96
    %583 = vst [vmem:[%s582] sm:%s3] %v581
    %s584 = smul.addr 2, 11
    %s585 = scalar_lea.vmem %s0, %s584
    %v586 = vld [vmem:[%s585] sm:%s3]
    %s587 = scalar_lea.vmem [#allocation0], 88
    %588 = vst [vmem:[%s587] sm:%s3] %v586
    %s589 = smul.addr 2, 10
    %s590 = scalar_lea.vmem %s0, %s589
    %v591 = vld [vmem:[%s590] sm:%s3]
    %s592 = scalar_lea.vmem [#allocation0], 80
    %593 = vst [vmem:[%s592] sm:%s3] %v591
    %s594 = smul.addr 2, 9
    %s595 = scalar_lea.vmem %s0, %s594
    %v596 = vld [vmem:[%s595] sm:%s3]
    %s597 = scalar_lea.vmem [#allocation0], 72
    %598 = vst [vmem:[%s597] sm:%s3] %v596
    %s599 = smul.addr 2, 8
    %s600 = scalar_lea.vmem %s0, %s599
    %v601 = vld [vmem:[%s600] sm:%s3]
    %s602 = scalar_lea.vmem [#allocation0], 64
    %603 = vst [vmem:[%s602] sm:%s3] %v601
    %s604 = smul.addr 2, 7
    %s605 = scalar_lea.vmem %s0, %s604
    %v606 = vld [vmem:[%s605] sm:%s3]
    %s607 = scalar_lea.vmem [#allocation0], 56
    %608 = vst [vmem:[%s607] sm:%s3] %v606
    %s609 = smul.addr 2, 6
    %s610 = scalar_lea.vmem %s0, %s609
    %v611 = vld [vmem:[%s610] sm:%s3]
    %s612 = scalar_lea.vmem [#allocation0], 48
    %613 = vst [vmem:[%s612] sm:%s3] %v611
    %s614 = smul.addr 2, 5
    %s615 = scalar_lea.vmem %s0, %s614
    %v616 = vld [vmem:[%s615] sm:%s3]
    %s617 = scalar_lea.vmem [#allocation0], 40
    %618 = vst [vmem:[%s617] sm:%s3] %v616
    %s619 = smul.addr 2, 4
    %s620 = scalar_lea.vmem %s0, %s619
    %v621 = vld [vmem:[%s620] sm:%s3]
    %s622 = scalar_lea.vmem [#allocation0], 32
    %623 = vst [vmem:[%s622] sm:%s3] %v621
    %s624 = smul.addr 2, 3
    %s625 = scalar_lea.vmem %s0, %s624
    %v626 = vld [vmem:[%s625] sm:%s3]
    %s627 = scalar_lea.vmem [#allocation0], 24
    %628 = vst [vmem:[%s627] sm:%s3] %v626
    %s629 = smul.addr 2, 2
    %s630 = scalar_lea.vmem %s0, %s629
    %v631 = vld [vmem:[%s630] sm:%s3]
    %s632 = scalar_lea.vmem [#allocation0], 16
    %633 = vst [vmem:[%s632] sm:%s3] %v631
    %s634 = scalar_lea.vmem %s0, 2
    %v635 = vld [vmem:[%s634] sm:%s3]
    %s636 = scalar_lea.vmem [#allocation0], 8
    %637 = vst [vmem:[%s636] sm:%s3] %v635
    %v638 = vld [vmem:[%s0] sm:%s3]
    %639 = vst [vmem:[#allocation0] sm:%s3] %v638
    %v640 = vld [vmem:[#allocation0] ss:$8 sm:$0xf]
    %v641 = vld [vmem:[#allocation0] ss:$8 sm:$0xf0]
    %vm642 = vcmask 1047556
    %v643 = vsel %vm642, %v641, %v640
    %vm644 = vcmask 64512
    %645 = vst.msk [vmem:[%s1] sm:$0xff] %vm644, %v643
    %s646 = scalar_lea.vmem [#allocation0], 64
    %v647 = vld [vmem:[%s646] ss:$8 sm:$0xf]
    %s648 = scalar_lea.vmem [#allocation0], 64
    %v649 = vld [vmem:[%s648] ss:$8 sm:$0xf0]
    %vm650 = vcmask 1047556
    %v651 = vsel %vm650, %v649, %v647
    %vm652 = vcmask 64512
    %s653 = scalar_lea.vmem %s1, 8
    %654 = vst.msk [vmem:[%s653] sm:$0xff] %vm652, %v651
    %s655 = scalar_lea.vmem [#allocation0], 128
    %v656 = vld [vmem:[%s655] ss:$8 sm:$0xf]
    %s657 = scalar_lea.vmem [#allocation0], 128
    %v658 = vld [vmem:[%s657] ss:$8 sm:$0xf0]
    %vm659 = vcmask 1047556
    %v660 = vsel %vm659, %v658, %v656
    %vm661 = vcmask 64512
    %s662 = scalar_lea.vmem %s1, 16
    %663 = vst.msk [vmem:[%s662] sm:$0xff] %vm661, %v660
    %s664 = scalar_lea.vmem [#allocation0], 192
    %v665 = vld [vmem:[%s664] ss:$8 sm:$0xf]
    %s666 = scalar_lea.vmem [#allocation0], 192
    %v667 = vld [vmem:[%s666] ss:$8 sm:$0xf0]
    %vm668 = vcmask 1047556
    %v669 = vsel %vm668, %v667, %v665
    %vm670 = vcmask 64512
    %s671 = scalar_lea.vmem %s1, 24
    %672 = vst.msk [vmem:[%s671] sm:$0xff] %vm670, %v669
    %s673 = scalar_lea.vmem [#allocation0], 256
    %v674 = vld [vmem:[%s673] ss:$8 sm:$0xf]
    %s675 = scalar_lea.vmem [#allocation0], 256
    %v676 = vld [vmem:[%s675] ss:$8 sm:$0xf0]
    %vm677 = vcmask 1047556
    %v678 = vsel %vm677, %v676, %v674
    %vm679 = vcmask 64512
    %s680 = scalar_lea.vmem %s1, 32
    %681 = vst.msk [vmem:[%s680] sm:$0xff] %vm679, %v678
    %s682 = scalar_lea.vmem [#allocation0], 320
    %v683 = vld [vmem:[%s682] ss:$8 sm:$0xf]
    %s684 = scalar_lea.vmem [#allocation0], 320
    %v685 = vld [vmem:[%s684] ss:$8 sm:$0xf0]
    %vm686 = vcmask 1047556
    %v687 = vsel %vm686, %v685, %v683
    %vm688 = vcmask 64512
    %s689 = scalar_lea.vmem %s1, 40
    %690 = vst.msk [vmem:[%s689] sm:$0xff] %vm688, %v687
    %s691 = scalar_lea.vmem [#allocation0], 384
    %v692 = vld [vmem:[%s691] ss:$8 sm:$0xf]
    %s693 = scalar_lea.vmem [#allocation0], 384
    %v694 = vld [vmem:[%s693] ss:$8 sm:$0xf0]
    %vm695 = vcmask 1047556
    %v696 = vsel %vm695, %v694, %v692
    %vm697 = vcmask 64512
    %s698 = scalar_lea.vmem %s1, 48
    %699 = vst.msk [vmem:[%s698] sm:$0xff] %vm697, %v696
    %s700 = scalar_lea.vmem [#allocation0], 448
    %v701 = vld [vmem:[%s700] ss:$8 sm:$0xf]
    %s702 = scalar_lea.vmem [#allocation0], 448
    %v703 = vld [vmem:[%s702] ss:$8 sm:$0xf0]
    %vm704 = vcmask 1047556
    %v705 = vsel %vm704, %v703, %v701
    %vm706 = vcmask 64512
    %s707 = scalar_lea.vmem %s1, 56
    %708 = vst.msk [vmem:[%s707] sm:$0xff] %vm706, %v705
    %s709 = scalar_lea.vmem [#allocation0], 512
    %v710 = vld [vmem:[%s709] ss:$8 sm:$0xf]
    %s711 = scalar_lea.vmem [#allocation0], 512
    %v712 = vld [vmem:[%s711] ss:$8 sm:$0xf0]
    %vm713 = vcmask 1047556
    %v714 = vsel %vm713, %v712, %v710
    %vm715 = vcmask 64512
    %s716 = scalar_lea.vmem %s1, 64
    %717 = vst.msk [vmem:[%s716] sm:$0xff] %vm715, %v714
    %s718 = scalar_lea.vmem [#allocation0], 576
    %v719 = vld [vmem:[%s718] ss:$8 sm:$0xf]
    %s720 = scalar_lea.vmem [#allocation0], 576
    %v721 = vld [vmem:[%s720] ss:$8 sm:$0xf0]
    %vm722 = vcmask 1047556
    %v723 = vsel %vm722, %v721, %v719
    %vm724 = vcmask 64512
    %s725 = scalar_lea.vmem %s1, 72
    %726 = vst.msk [vmem:[%s725] sm:$0xff] %vm724, %v723
    %s727 = scalar_lea.vmem [#allocation0], 640
    %v728 = vld [vmem:[%s727] ss:$8 sm:$0xf]
    %s729 = scalar_lea.vmem [#allocation0], 640
    %v730 = vld [vmem:[%s729] ss:$8 sm:$0xf0]
    %vm731 = vcmask 1047556
    %v732 = vsel %vm731, %v730, %v728
    %vm733 = vcmask 64512
    %s734 = scalar_lea.vmem %s1, 80
    %735 = vst.msk [vmem:[%s734] sm:$0xff] %vm733, %v732
    %s736 = scalar_lea.vmem [#allocation0], 704
    %v737 = vld [vmem:[%s736] ss:$8 sm:$0xf]
    %s738 = scalar_lea.vmem [#allocation0], 704
    %v739 = vld [vmem:[%s738] ss:$8 sm:$0xf0]
    %vm740 = vcmask 1047556
    %v741 = vsel %vm740, %v739, %v737
    %vm742 = vcmask 64512
    %s743 = scalar_lea.vmem %s1, 88
    %744 = vst.msk [vmem:[%s743] sm:$0xff] %vm742, %v741
    %s745 = scalar_lea.vmem [#allocation0], 768
    %v746 = vld [vmem:[%s745] ss:$8 sm:$0xf]
    %s747 = scalar_lea.vmem [#allocation0], 768
    %v748 = vld [vmem:[%s747] ss:$8 sm:$0xf0]
    %vm749 = vcmask 1047556
    %v750 = vsel %vm749, %v748, %v746
    %vm751 = vcmask 64512
    %s752 = scalar_lea.vmem %s1, 96
    %753 = vst.msk [vmem:[%s752] sm:$0xff] %vm751, %v750
    %s754 = scalar_lea.vmem [#allocation0], 832
    %v755 = vld [vmem:[%s754] ss:$8 sm:$0xf]
    %s756 = scalar_lea.vmem [#allocation0], 832
    %v757 = vld [vmem:[%s756] ss:$8 sm:$0xf0]
    %vm758 = vcmask 1047556
    %v759 = vsel %vm758, %v757, %v755
    %vm760 = vcmask 64512
    %s761 = scalar_lea.vmem %s1, 104
    %762 = vst.msk [vmem:[%s761] sm:$0xff] %vm760, %v759
    %s763 = scalar_lea.vmem [#allocation0], 896
    %v764 = vld [vmem:[%s763] ss:$8 sm:$0xf]
    %s765 = scalar_lea.vmem [#allocation0], 896
    %v766 = vld [vmem:[%s765] ss:$8 sm:$0xf0]
    %vm767 = vcmask 1047556
    %v768 = vsel %vm767, %v766, %v764
    %vm769 = vcmask 64512
    %s770 = scalar_lea.vmem %s1, 112
    %771 = vst.msk [vmem:[%s770] sm:$0xff] %vm769, %v768
    %s772 = scalar_lea.vmem [#allocation0], 960
    %v773 = vld [vmem:[%s772] ss:$8 sm:$0xf]
    %s774 = scalar_lea.vmem [#allocation0], 960
    %v775 = vld [vmem:[%s774] ss:$8 sm:$0xf0]
    %vm776 = vcmask 1047556
    %v777 = vsel %vm776, %v775, %v773
    %vm778 = vcmask 64512
    %s779 = scalar_lea.vmem %s1, 120
    %780 = vst.msk [vmem:[%s779] sm:$0xff] %vm778, %v777
    %s781 = scalar_lea.vmem [#allocation0], 1
    %v782 = vld [vmem:[%s781] ss:$8 sm:$0xf]
    %s783 = scalar_lea.vmem [#allocation0], 1
    %v784 = vld [vmem:[%s783] ss:$8 sm:$0xf0]
    %vm785 = vcmask 1047556
    %v786 = vsel %vm785, %v784, %v782
    %787 = vrot.lane.b32.xlu0 %v786, 8
    %v788 = vpop.permute.xlu0 %787
    %vm789 = vcmask 130112
    %790 = vst.msk [vmem:[%s1] sm:$0xff] %vm789, %v788
    %s791 = scalar_lea.vmem [#allocation0], 257
    %v792 = vld [vmem:[%s791] ss:$8 sm:$0xf]
    %s793 = scalar_lea.vmem [#allocation0], 257
    %v794 = vld [vmem:[%s793] ss:$8 sm:$0xf0]
    %vm795 = vcmask 1047556
    %v796 = vsel %vm795, %v794, %v792
    %797 = vrot.lane.b32.xlu0 %v796, 8
    %v798 = vpop.permute.xlu0 %797
    %vm799 = vcmask 130112
    %s800 = scalar_lea.vmem %s1, 32
    %801 = vst.msk [vmem:[%s800] sm:$0xff] %vm799, %v798
    %s802 = scalar_lea.vmem [#allocation0], 513
    %v803 = vld [vmem:[%s802] ss:$8 sm:$0xf]
    %s804 = scalar_lea.vmem [#allocation0], 513
    %v805 = vld [vmem:[%s804] ss:$8 sm:$0xf0]
    %vm806 = vcmask 1047556
    %v807 = vsel %vm806, %v805, %v803
    %808 = vrot.lane.b32.xlu0 %v807, 8
    %v809 = vpop.permute.xlu0 %808
    %vm810 = vcmask 130112
    %s811 = scalar_lea.vmem %s1, 64
    %812 = vst.msk [vmem:[%s811] sm:$0xff] %vm810, %v809
    %s813 = scalar_lea.vmem [#allocation0], 769
    %v814 = vld [vmem:[%s813] ss:$8 sm:$0xf]
    %s815 = scalar_lea.vmem [#allocation0], 769
    %v816 = vld [vmem:[%s815] ss:$8 sm:$0xf0]
    %vm817 = vcmask 1047556
    %v818 = vsel %vm817, %v816, %v814
    %819 = vrot.lane.b32.xlu0 %v818, 8
    %v820 = vpop.permute.xlu0 %819
    %vm821 = vcmask 130112
    %s822 = scalar_lea.vmem %s1, 96
    %823 = vst.msk [vmem:[%s822] sm:$0xff] %vm821, %v820
    %s824 = scalar_lea.vmem [#allocation0], 65
    %v825 = vld [vmem:[%s824] ss:$8 sm:$0xf]
    %s826 = scalar_lea.vmem [#allocation0], 65
    %v827 = vld [vmem:[%s826] ss:$8 sm:$0xf0]
    %vm828 = vcmask 1047556
    %v829 = vsel %vm828, %v827, %v825
    %830 = vrot.lane.b32.xlu0 %v829, 8
    %v831 = vpop.permute.xlu0 %830
    %vm832 = vcmask 130112
    %s833 = scalar_lea.vmem %s1, 8
    %834 = vst.msk [vmem:[%s833] sm:$0xff] %vm832, %v831
    %s835 = scalar_lea.vmem [#allocation0], 321
    %v836 = vld [vmem:[%s835] ss:$8 sm:$0xf]
    %s837 = scalar_lea.vmem [#allocation0], 321
    %v838 = vld [vmem:[%s837] ss:$8 sm:$0xf0]
    %vm839 = vcmask 1047556
    %v840 = vsel %vm839, %v838, %v836
    %841 = vrot.lane.b32.xlu0 %v840, 8
    %v842 = vpop.permute.xlu0 %841
    %vm843 = vcmask 130112
    %s844 = scalar_lea.vmem %s1, 40
    %845 = vst.msk [vmem:[%s844] sm:$0xff] %vm843, %v842
    %s846 = scalar_lea.vmem [#allocation0], 577
    %v847 = vld [vmem:[%s846] ss:$8 sm:$0xf]
    %s848 = scalar_lea.vmem [#allocation0], 577
    %v849 = vld [vmem:[%s848] ss:$8 sm:$0xf0]
    %vm850 = vcmask 1047556
    %v851 = vsel %vm850, %v849, %v847
    %852 = vrot.lane.b32.xlu0 %v851, 8
    %v853 = vpop.permute.xlu0 %852
    %vm854 = vcmask 130112
    %s855 = scalar_lea.vmem %s1, 72
    %856 = vst.msk [vmem:[%s855] sm:$0xff] %vm854, %v853
    %s857 = scalar_lea.vmem [#allocation0], 833
    %v858 = vld [vmem:[%s857] ss:$8 sm:$0xf]
    %s859 = scalar_lea.vmem [#allocation0], 833
    %v860 = vld [vmem:[%s859] ss:$8 sm:$0xf0]
    %vm861 = vcmask 1047556
    %v862 = vsel %vm861, %v860, %v858
    %863 = vrot.lane.b32.xlu0 %v862, 8
    %v864 = vpop.permute.xlu0 %863
    %vm865 = vcmask 130112
    %s866 = scalar_lea.vmem %s1, 104
    %867 = vst.msk [vmem:[%s866] sm:$0xff] %vm865, %v864
    %s868 = scalar_lea.vmem [#allocation0], 129
    %v869 = vld [vmem:[%s868] ss:$8 sm:$0xf]
    %s870 = scalar_lea.vmem [#allocation0], 129
    %v871 = vld [vmem:[%s870] ss:$8 sm:$0xf0]
    %vm872 = vcmask 1047556
    %v873 = vsel %vm872, %v871, %v869
    %874 = vrot.lane.b32.xlu0 %v873, 8
    %v875 = vpop.permute.xlu0 %874
    %vm876 = vcmask 130112
    %s877 = scalar_lea.vmem %s1, 16
    %878 = vst.msk [vmem:[%s877] sm:$0xff] %vm876, %v875
    %s879 = scalar_lea.vmem [#allocation0], 385
    %v880 = vld [vmem:[%s879] ss:$8 sm:$0xf]
    %s881 = scalar_lea.vmem [#allocation0], 385
    %v882 = vld [vmem:[%s881] ss:$8 sm:$0xf0]
    %vm883 = vcmask 1047556
    %v884 = vsel %vm883, %v882, %v880
    %885 = vrot.lane.b32.xlu0 %v884, 8
    %v886 = vpop.permute.xlu0 %885
    %vm887 = vcmask 130112
    %s888 = scalar_lea.vmem %s1, 48
    %889 = vst.msk [vmem:[%s888] sm:$0xff] %vm887, %v886
    %s890 = scalar_lea.vmem [#allocation0], 641
    %v891 = vld [vmem:[%s890] ss:$8 sm:$0xf]
    %s892 = scalar_lea.vmem [#allocation0], 641
    %v893 = vld [vmem:[%s892] ss:$8 sm:$0xf0]
    %vm894 = vcmask 1047556
    %v895 = vsel %vm894, %v893, %v891
    %896 = vrot.lane.b32.xlu0 %v895, 8
    %v897 = vpop.permute.xlu0 %896
    %vm898 = vcmask 130112
    %s899 = scalar_lea.vmem %s1, 80
    %900 = vst.msk [vmem:[%s899] sm:$0xff] %vm898, %v897
    %s901 = scalar_lea.vmem [#allocation0], 897
    %v902 = vld [vmem:[%s901] ss:$8 sm:$0xf]
    %s903 = scalar_lea.vmem [#allocation0], 897
    %v904 = vld [vmem:[%s903] ss:$8 sm:$0xf0]
    %vm905 = vcmask 1047556
    %v906 = vsel %vm905, %v904, %v902
    %907 = vrot.lane.b32.xlu0 %v906, 8
    %v908 = vpop.permute.xlu0 %907
    %vm909 = vcmask 130112
    %s910 = scalar_lea.vmem %s1, 112
    %911 = vst.msk [vmem:[%s910] sm:$0xff] %vm909, %v908
    %s912 = scalar_lea.vmem [#allocation0], 193
    %v913 = vld [vmem:[%s912] ss:$8 sm:$0xf]
    %s914 = scalar_lea.vmem [#allocation0], 193
    %v915 = vld [vmem:[%s914] ss:$8 sm:$0xf0]
    %vm916 = vcmask 1047556
    %v917 = vsel %vm916, %v915, %v913
    %918 = vrot.lane.b32.xlu0 %v917, 8
    %v919 = vpop.permute.xlu0 %918
    %vm920 = vcmask 130112
    %s921 = scalar_lea.vmem %s1, 24
    %922 = vst.msk [vmem:[%s921] sm:$0xff] %vm920, %v919
    %s923 = scalar_lea.vmem [#allocation0], 449
    %v924 = vld [vmem:[%s923] ss:$8 sm:$0xf]
    %s925 = scalar_lea.vmem [#allocation0], 449
    %v926 = vld [vmem:[%s925] ss:$8 sm:$0xf0]
    %vm927 = vcmask 1047556
    %v928 = vsel %vm927, %v926, %v924
    %929 = vrot.lane.b32.xlu0 %v928, 8
    %v930 = vpop.permute.xlu0 %929
    %vm931 = vcmask 130112
    %s932 = scalar_lea.vmem %s1, 56
    %933 = vst.msk [vmem:[%s932] sm:$0xff] %vm931, %v930
    %s934 = scalar_lea.vmem [#allocation0], 705
    %v935 = vld [vmem:[%s934] ss:$8 sm:$0xf]
    %s936 = scalar_lea.vmem [#allocation0], 705
    %v937 = vld [vmem:[%s936] ss:$8 sm:$0xf0]
    %vm938 = vcmask 1047556
    %v939 = vsel %vm938, %v937, %v935
    %940 = vrot.lane.b32.xlu0 %v939, 8
    %v941 = vpop.permute.xlu0 %940
    %vm942 = vcmask 130112
    %s943 = scalar_lea.vmem %s1, 88
    %944 = vst.msk [vmem:[%s943] sm:$0xff] %vm942, %v941
    %s945 = scalar_lea.vmem [#allocation0], 961
    %v946 = vld [vmem:[%s945] ss:$8 sm:$0xf]
    %s947 = scalar_lea.vmem [#allocation0], 961
    %v948 = vld [vmem:[%s947] ss:$8 sm:$0xf0]
    %vm949 = vcmask 1047556
    %v950 = vsel %vm949, %v948, %v946
    %951 = vrot.lane.b32.xlu0 %v950, 8
    %v952 = vpop.permute.xlu0 %951
    %vm953 = vcmask 130112
    %s954 = scalar_lea.vmem %s1, 120
    %955 = vst.msk [vmem:[%s954] sm:$0xff] %vm953, %v952

// kernel: _lambda_.8
$region0: #{_lambda_.8}
  #allocation0 [shape = 'u32[]', space=smem, size = 0x4, offset = 0x4, fixed_abs, tag = 'smem constant byte address 0x4 - core index']
  #allocation1 [shape = 'u32[144,128]{1,0:T(1,128)}', space=vmem, size = 0x12000, scoped, tag = 'internal scratch']
  %s0 = inlined_call_operand.vmem [shape: f32[8,80], index: 0, kind: input, shape index: {}]
  %s1 = inlined_call_operand.vmem [shape: f32[8,8], index: 1, kind: input, shape index: {}]
  %s2 = inlined_call_operand.vmem [shape: f32[8,1], index: 2, kind: input, shape index: {}]
  %s3 = inlined_call_operand.vmem [shape: f32[8,80], index: 3, kind: output, shape index: {}]
  %s4 = sld [smem:[#allocation0]]
  $region22: #{_lambda_.8} parent=0
    _
  %s6 = ssub.s32 1, %s4
  %s7 = scalar_select 0, %s6, %s4
  // Predicated region
  $region2: #{_lambda_.8} parent=0 // pred_check
    _
  $region3: #{_lambda_.8} parent=0 // pred_check_branch
    %9 = sbr.rel (0) target = $region5
  $region4: #{_lambda_.8} parent=0 // pred_region
    _
  $region5: #{_lambda_.8} parent=0 // pred_fallthru
    _
  // Predicated region
  $region6: #{_lambda_.8} parent=0 // pred_check
    _
  $region7: #{_lambda_.8} parent=0 // pred_check_branch
    %11 = sbr.rel (0) target = $region9
  $region8: #{_lambda_.8} parent=0 // pred_region
    _
  $region9: #{_lambda_.8} parent=0 // pred_fallthru
    _
  // Predicated region
  $region10: #{_lambda_.8} parent=0 // pred_check
    _
  $region11: #{_lambda_.8} parent=0 // pred_check_branch
    %13 = sbr.rel (0) target = $region13
  $region12: #{_lambda_.8} parent=0 // pred_region
    _
  $region13: #{_lambda_.8} parent=0 // pred_fallthru
    _
  %v14 = vld [vmem:[%s1] sm:$0xff]
  %v15 = vld [vmem:[%s0] sm:$0xff]
  %v16 = vld [vmem:[%s2] sm:$0xff]
  %18 = vset.pattern.permute.xlu0 0
  %19 = vperm.xlu0 %18, %v16
  %v20 = vpop.permute.xlu0 %19
  %vm22 = vcmask 64512
  %v24 = vsel %vm22, %v14, 0
  %26 = vmatprep.subr.mxu0 0.0
  %27 = vmatpush1.msra.mxu0 %v15
  %28 = vmatprep.subr.mxu0 0.0
  %29 = vmatpush1.msra.mxu0 0.0
  %30 = vmatprep.subr.mxu0 0.0
  %31 = vmatpush1.msra.mxu0 0.0
  %32 = vmatprep.subr.mxu0 0.0
  %33 = vmatpush1.msra.mxu0 0.0
  %34 = vmatprep.subr.mxu0 0.0
  %35 = vmatpush1.msra.mxu0 0.0
  %36 = vmatprep.subr.mxu0 0.0
  %37 = vmatpush1.msra.mxu0 0.0
  %38 = vmatprep.subr.mxu0 0.0
  %39 = vmatpush1.msra.mxu0 0.0
  %40 = vmatprep.subr.mxu0 0.0
  %41 = vmatpush1.msra.mxu0 0.0
  %42 = vmatprep.subr.mxu0 0.0
  %43 = vmatpush1.msra.mxu0 0.0
  %44 = vmatprep.subr.mxu0 0.0
  %45 = vmatpush1.msra.mxu0 0.0
  %46 = vmatprep.subr.mxu0 0.0
  %47 = vmatpush1.msra.mxu0 0.0
  %48 = vmatprep.subr.mxu0 0.0
  %49 = vmatpush1.msra.mxu0 0.0
  %50 = vmatprep.subr.mxu0 0.0
  %51 = vmatpush1.msra.mxu0 0.0
  %52 = vmatprep.subr.mxu0 0.0
  %53 = vmatpush1.msra.mxu0 0.0
  %54 = vmatprep.subr.mxu0 0.0
  %55 = vmatpush1.msra.mxu0 0.0
  %56 = vmatprep.subr.mxu0 0.0
  %57 = vmatpush1.msra.mxu0 0.0
  %58 = vmatprep.subr.mxu0 0.0
  %59 = vmatpush1.msra.mxu0 0.0
  %60 = vmatprep.subr.mxu0 0.0
  %61 = vmatpush1.msra.mxu0 0.0
  %62 = vmatprep.subr.mxu0 0.0
  %63 = vmatpush1.msra.mxu0 0.0
  %64 = vmatprep.subr.mxu0 0.0
  %65 = vmatpush1.msra.mxu0 0.0
  %66 = vmatprep.subr.mxu0 0.0
  %67 = vmatpush1.msra.mxu0 0.0
  %68 = vmatprep.subr.mxu0 0.0
  %69 = vmatpush1.msra.mxu0 0.0
  %70 = vmatprep.subr.mxu0 0.0
  %71 = vmatpush1.msra.mxu0 0.0
  %72 = vmatprep.subr.mxu0 0.0
  %73 = vmatpush1.msra.mxu0 0.0
  %74 = vmatprep.subr.mxu0 0.0
  %75 = vmatpush1.msra.mxu0 0.0
  %76 = vmatprep.subr.mxu0 0.0
  %77 = vmatpush1.msra.mxu0 0.0
  %78 = vmatprep.subr.mxu0 0.0
  %79 = vmatpush1.msra.mxu0 0.0
  %80 = vmatprep.subr.mxu0 0.0
  %81 = vmatpush1.msra.mxu0 0.0
  %82 = vmatprep.subr.mxu0 0.0
  %83 = vmatpush1.msra.mxu0 0.0
  %84 = vmatprep.subr.mxu0 0.0
  %85 = vmatpush1.msra.mxu0 0.0
  %86 = vmatprep.subr.mxu0 0.0
  %87 = vmatpush1.msra.mxu0 0.0
  %88 = vmatprep.subr.mxu0 0.0
  %89 = vmatpush1.msra.mxu0 0.0
  %90 = vmatprep.mubr.f32.mxu0 0.0
  %91 = vmatmul.mubr.f32.gmra.mrb[0].mxu0 %v24
  %v92 = vpop.f32.mrb[0].mxu0
  %v93 = vadd.f32 %v20, %v92
  %v94 = vpop.f32.mrb[0].mxu0
  %95 = vdwg.mxu0
  %v96 = vmax.f32 %v93, 0.0
  %vm97 = vcmask 654336
  %98 = vst.msk [vmem:[%s3] sm:$0xff] %vm97, %v96
  // Predicated region
  $region14: #{_lambda_.8} parent=0 // pred_check
    _
  $region15: #{_lambda_.8} parent=0 // pred_check_branch
    %100 = sbr.rel (0) target = $region17
  $region16: #{_lambda_.8} parent=0 // pred_region
    _
  $region17: #{_lambda_.8} parent=0 // pred_fallthru
    _
  // Predicated region
  $region18: #{_lambda_.8} parent=0 // pred_check
    _
  $region19: #{_lambda_.8} parent=0 // pred_check_branch
    %102 = sbr.rel (0) target = $region21
  $region20: #{_lambda_.8} parent=0 // pred_region
    _
  $region21: #{_lambda_.8} parent=0 // pred_fallthru
    _

// kernel: _lambda_.9
$region0: #{_lambda_.9}
  #allocation0 [shape = 'u32[]', space=smem, size = 0x4, offset = 0x4, fixed_abs, tag = 'smem constant byte address 0x4 - core index']
  #allocation1 [shape = 'u32[144,128]{1,0:T(1,128)}', space=vmem, size = 0x12000, scoped, tag = 'internal scratch']
  %s0 = inlined_call_operand.vmem [shape: f32[8,512], index: 0, kind: input, shape index: {}]
  %s1 = inlined_call_operand.vmem [shape: f32[8,8], index: 1, kind: input, shape index: {}]
  %s2 = inlined_call_operand.vmem [shape: f32[4,512], index: 2, kind: input, shape index: {}]
  %s3 = inlined_call_operand.vmem [shape: f32[8,4], index: 3, kind: input, shape index: {}]
  %s4 = inlined_call_operand.vmem [shape: f32[8,1], index: 4, kind: input, shape index: {}]
  %s5 = inlined_call_operand.vmem [shape: f32[8,512], index: 5, kind: output, shape index: {}]
  %s6 = sld [smem:[#allocation0]]
  $region53: #{_lambda_.9} parent=0
    _
  %s8 = ssub.s32 1, %s6
  %s9 = scalar_select 0, %s8, %s6
  loop: start=0, step=1, limit=4
  $region2: #{_lambda_.9} parent=0 // loop_pre_header
    _
  $region3: #{_lambda_.9} parent=0 // loop_header
    %s11 = sphi 0, %s15
    %p12 = scmp.ge.s32.totalorder %s11, 4
    %s21 = sphi 0, %s23
    %s24 = sphi 0, %s21
    %s25 = sphi 0, %s24
    %s41 = sphi 0, %s25
    %s45 = sphi 0, %s45
    %s47 = sphi 0, %s45
    %s48 = sphi 0, %s47
    %s62 = sphi 0, %s48
    %s68 = sphi 0, %s70
    %s71 = sphi 0, %s68
    %s72 = sphi 0, %s71
    %s88 = sphi 0, %s72
    %s92 = sphi 0, %s92
    %s94 = sphi 0, %s92
    %s95 = sphi 0, %s94
    %s109 = sphi 0, %s95
    %s113 = sphi 0, %s113
    %s115 = sphi 0, %s113
    %s116 = sphi 0, %s115
    %s130 = sphi 0, %s116
    %s136 = sphi 0, %s138
    %s139 = sphi 0, %s136
    %s140 = sphi 0, %s139
    %s156 = sphi 0, %s140
  $region4: #{_lambda_.9} parent=0 // loop_header_branch
    %14 = sbr.rel (%p12) target = $region8
  $region5: #{_lambda_.9} parent=0 // loop_body
    %s16 = ssub.s32 %s11, 1
    %s17 = ssub.s32 %s11, 2
    %s18 = sadd.s32 %s11, 1
    %s19 = ssub.s32 %s11, %s18
    %p20 = scmp.eq.s32.totalorder %s19, 0
    %s22 = sadd.s32 %s21, 1
    %s23 = scalar_select %p20, %s21, %s22
    %p26 = pneg %p20
    %p27 = scmp.eq.s32.totalorder %s11, 1
    %p28 = por %p26, %p27
    %p29 = scmp.ne.s32.totalorder %s21, %s24
    %p30 = scmp.eq.s32.totalorder %s11, 0
    %p31 = por %p29, %p30
    %p32 = scmp.ne.s32.totalorder %s21, %s24
    %p33 = scmp.eq.s32.totalorder %s16, 1
    %p34 = por %p32, %p33
    %p35 = scmp.ne.s32.totalorder %s24, %s25
    %p36 = scmp.eq.s32.totalorder %s16, 0
    %p37 = por %p35, %p36
    %p38 = scmp.ne.s32.totalorder %s24, %s25
    %p39 = scmp.eq.s32.totalorder %s17, 1
    %p40 = por %p38, %p39
    %p42 = scmp.ne.s32.totalorder %s25, %s41
    %p43 = scmp.eq.s32.totalorder %s17, 0
    %p44 = por %p42, %p43
    %s46 = sadd.s32 %s45, 1
    %p49 = scmp.eq.s32.totalorder %s11, 1
    %p50 = scmp.ne.s32.totalorder %s45, %s47
    %p51 = scmp.eq.s32.totalorder %s11, 0
    %p52 = por %p50, %p51
    %p53 = scmp.ne.s32.totalorder %s45, %s47
    %p54 = scmp.eq.s32.totalorder %s16, 1
    %p55 = por %p53, %p54
    %p56 = scmp.ne.s32.totalorder %s47, %s48
    %p57 = scmp.eq.s32.totalorder %s16, 0
    %p58 = por %p56, %p57
    %p59 = scmp.ne.s32.totalorder %s47, %s48
    %p60 = scmp.eq.s32.totalorder %s17, 1
    %p61 = por %p59, %p60
    %p63 = scmp.ne.s32.totalorder %s48, %s62
    %p64 = scmp.eq.s32.totalorder %s17, 0
    %p65 = por %p63, %p64
    %s66 = ssub.s32 %s11, %s18
    %p67 = scmp.eq.s32.totalorder %s66, 0
    %s69 = sadd.s32 %s68, 1
    %s70 = scalar_select %p67, %s68, %s69
    %p73 = pneg %p67
    %p74 = scmp.eq.s32.totalorder %s11, 1
    %p75 = por %p73, %p74
    %p76 = scmp.ne.s32.totalorder %s68, %s71
    %p77 = scmp.eq.s32.totalorder %s11, 0
    %p78 = por %p76, %p77
    %p79 = scmp.ne.s32.totalorder %s68, %s71
    %p80 = scmp.eq.s32.totalorder %s16, 1
    %p81 = por %p79, %p80
    %p82 = scmp.ne.s32.totalorder %s71, %s72
    %p83 = scmp.eq.s32.totalorder %s16, 0
    %p84 = por %p82, %p83
    %p85 = scmp.ne.s32.totalorder %s71, %s72
    %p86 = scmp.eq.s32.totalorder %s17, 1
    %p87 = por %p85, %p86
    %p89 = scmp.ne.s32.totalorder %s72, %s88
    %p90 = scmp.eq.s32.totalorder %s17, 0
    %p91 = por %p89, %p90
    %s93 = sadd.s32 %s92, 1
    %p96 = scmp.eq.s32.totalorder %s11, 1
    %p97 = scmp.ne.s32.totalorder %s92, %s94
    %p98 = scmp.eq.s32.totalorder %s11, 0
    %p99 = por %p97, %p98
    %p100 = scmp.ne.s32.totalorder %s92, %s94
    %p101 = scmp.eq.s32.totalorder %s16, 1
    %p102 = por %p100, %p101
    %p103 = scmp.ne.s32.totalorder %s94, %s95
    %p104 = scmp.eq.s32.totalorder %s16, 0
    %p105 = por %p103, %p104
    %p106 = scmp.ne.s32.totalorder %s94, %s95
    %p107 = scmp.eq.s32.totalorder %s17, 1
    %p108 = por %p106, %p107
    %p110 = scmp.ne.s32.totalorder %s95, %s109
    %p111 = scmp.eq.s32.totalorder %s17, 0
    %p112 = por %p110, %p111
    %s114 = sadd.s32 %s113, 1
    %p117 = scmp.eq.s32.totalorder %s11, 1
    %p118 = scmp.ne.s32.totalorder %s113, %s115
    %p119 = scmp.eq.s32.totalorder %s11, 0
    %p120 = por %p118, %p119
    %p121 = scmp.ne.s32.totalorder %s113, %s115
    %p122 = scmp.eq.s32.totalorder %s16, 1
    %p123 = por %p121, %p122
    %p124 = scmp.ne.s32.totalorder %s115, %s116
    %p125 = scmp.eq.s32.totalorder %s16, 0
    %p126 = por %p124, %p125
    %p127 = scmp.ne.s32.totalorder %s115, %s116
    %p128 = scmp.eq.s32.totalorder %s17, 1
    %p129 = por %p127, %p128
    %p131 = scmp.ne.s32.totalorder %s116, %s130
    %p132 = scmp.eq.s32.totalorder %s17, 0
    %p133 = por %p131, %p132
    %s134 = ssub.s32 %s11, %s18
    %p135 = scmp.eq.s32.totalorder %s134, 0
    %s137 = sadd.s32 %s136, 1
    %s138 = scalar_select %p135, %s136, %s137
    %p141 = pneg %p135
    %p142 = scmp.eq.s32.totalorder %s11, 1
    %p143 = por %p141, %p142
    %p144 = scmp.ne.s32.totalorder %s136, %s139
    %p145 = scmp.eq.s32.totalorder %s11, 0
    %p146 = por %p144, %p145
    %p147 = scmp.ne.s32.totalorder %s136, %s139
    %p148 = scmp.eq.s32.totalorder %s16, 1
    %p149 = por %p147, %p148
    %p150 = scmp.ne.s32.totalorder %s139, %s140
    %p151 = scmp.eq.s32.totalorder %s16, 0
    %p152 = por %p150, %p151
    %p153 = scmp.ne.s32.totalorder %s139, %s140
    %p154 = scmp.eq.s32.totalorder %s17, 1
    %p155 = por %p153, %p154
    %p157 = scmp.ne.s32.totalorder %s140, %s156
    %p158 = scmp.eq.s32.totalorder %s17, 0
    %p159 = por %p157, %p158
    %p160 = scmp.le.s32.totalorder 1, %s11
    %p161 = scmp.lt.s32.totalorder %s11, 3
    %p162 = pnand %p160, %p161
    %p163 = pneg %p162
    // Predicated region
    $region9: #{_lambda_.9} parent=5 // pred_check
      _
    $region10: #{_lambda_.9} parent=5 // pred_check_branch
      %165 = sbr.rel (%p162) target = $region12
    $region11: #{_lambda_.9} parent=5 // pred_region
      %s166 = ssub.s32 %s11, 1
      // Predicated region
      $region13: #{_lambda_.9} parent=11 // pred_check
        %p167 = pneg %p58
      $region14: #{_lambda_.9} parent=11 // pred_check_branch
        %169 = sbr.rel (%p167) target = $region16
      $region15: #{_lambda_.9} parent=11 // pred_region
        _
      $region16: #{_lambda_.9} parent=11 // pred_fallthru
        _
      // Predicated region
      $region17: #{_lambda_.9} parent=11 // pred_check
        %p170 = pneg %p105
      $region18: #{_lambda_.9} parent=11 // pred_check_branch
        %172 = sbr.rel (%p170) target = $region20
      $region19: #{_lambda_.9} parent=11 // pred_region
        _
      $region20: #{_lambda_.9} parent=11 // pred_fallthru
        _
      // Predicated region
      $region21: #{_lambda_.9} parent=11 // pred_check
        %p173 = pneg %p126
      $region22: #{_lambda_.9} parent=11 // pred_check_branch
        %175 = sbr.rel (%p173) target = $region24
      $region23: #{_lambda_.9} parent=11 // pred_region
        _
      $region24: #{_lambda_.9} parent=11 // pred_fallthru
        _
    $region12: #{_lambda_.9} parent=5 // pred_fallthru
      _
    %p176 = scmp.lt.s32.totalorder %s11, 2
    // Predicated region
    $region25: #{_lambda_.9} parent=5 // pred_check
      %p177 = pneg %p176
    $region26: #{_lambda_.9} parent=5 // pred_check_branch
      %179 = sbr.rel (%p177) target = $region28
    $region27: #{_lambda_.9} parent=5 // pred_region
      // Predicated region
      $region29: #{_lambda_.9} parent=27 // pred_check
        %p180 = pneg %p31
      $region30: #{_lambda_.9} parent=27 // pred_check_branch
        %182 = sbr.rel (%p180) target = $region32
      $region31: #{_lambda_.9} parent=27 // pred_region
        %s183 = smul.u32 2, %s11
        %p184 = scmp.lt.s32.totalorder %s183, 3
        %s185 = scalar_select %p184, %s183, 3
        %s186 = smul.addr %s185, 8
        %s187 = scalar_lea.vmem %s0, %s186
        %s188 = smul.u32 2, %s11
      $region32: #{_lambda_.9} parent=27 // pred_fallthru
        _
      // Predicated region
      $region33: #{_lambda_.9} parent=27 // pred_check
        %p189 = pneg %p78
      $region34: #{_lambda_.9} parent=27 // pred_check_branch
        %191 = sbr.rel (%p189) target = $region36
      $region35: #{_lambda_.9} parent=27 // pred_region
        %s192 = smul.u32 2, %s11
        %p193 = scmp.lt.s32.totalorder %s192, 3
        %s194 = scalar_select %p193, %s192, 3
        %s195 = smul.addr %s194, 4
        %s196 = scalar_lea.vmem %s2, %s195
        %s197 = smul.u32 2, %s11
      $region36: #{_lambda_.9} parent=27 // pred_fallthru
        _
    $region28: #{_lambda_.9} parent=5 // pred_fallthru
      _
    %p198 = scmp.le.s32.totalorder 1, %s11
    %p199 = scmp.lt.s32.totalorder %s11, 3
    %p200 = pnand %p198, %p199
    %p201 = pneg %p200
    // Predicated region
    $region37: #{_lambda_.9} parent=5 // pred_check
      _
    $region38: #{_lambda_.9} parent=5 // pred_check_branch
      %203 = sbr.rel (%p200) target = $region40
    $region39: #{_lambda_.9} parent=5 // pred_region
      %s204 = ssub.s32 %s11, 1
      %s205 = smul.u32 2, %s16
      %p206 = scmp.lt.s32.totalorder %s205, 3
      %s207 = scalar_select %p206, %s205, 3
      %s208 = smul.addr %s207, 8
      %s209 = scalar_lea.vmem %s0, %s208
      %p210 = pneg %p37
      %p211 = pneg %p34
      %p212 = pneg %p58
      %p213 = pneg %p55
      %s214 = smul.u32 2, %s16
      %p215 = scmp.lt.s32.totalorder %s214, 3
      %s216 = scalar_select %p215, %s214, 3
      %s217 = smul.addr %s216, 4
      %s218 = scalar_lea.vmem %s2, %s217
      %p219 = pneg %p84
      %p220 = pneg %p81
      %p221 = pneg %p105
      %p222 = pneg %p102
      %p223 = pneg %p126
      %p224 = pneg %p123
      %p225 = pneg %p152
      %p226 = pneg %p149
      %s227 = smul.u32 2, %s16
      %p228 = scmp.lt.s32.totalorder %s227, 3
      %s229 = scalar_select %p228, %s227, 3
      %s230 = smul.addr %s229, 8
      %s231 = scalar_lea.vmem %s5, %s230
      %s232 = smul.u32 2, %s16
      %p233 = scmp.lt.s32.totalorder %s232, 3
      %s234 = scalar_select %p233, %s232, 3
      %s235 = smul.addr %s234, 8
      %s236 = scalar_lea.vmem %s0, %s235
      %s237 = smul.u32 2, %s16
      %s238 = smul.u32 2, %s16
      %p239 = scmp.lt.s32.totalorder %s238, 3
      %s240 = scalar_select %p239, %s238, 3
      %s241 = smul.addr %s240, 4
      %s242 = scalar_lea.vmem %s2, %s241
      %s243 = smul.u32 2, %s16
      %s244 = smul.u32 2, %s16
      %p245 = scmp.lt.s32.totalorder %s244, 3
      %s246 = scalar_select %p245, %s244, 3
      %s247 = smul.addr %s246, 8
      %s248 = scalar_lea.vmem %s5, %s247
      %s249 = smul.u32 2, %s16
      %v250 = vld [vmem:[%s1] sm:$0xff]
      %v251 = vld [vmem:[%s236] sm:$0xff]
      %v252 = vld [vmem:[%s236 + $0x8] sm:$0xff]
      %v253 = vld [vmem:[%s3] sm:$0xff]
      %v254 = vld [vmem:[%s242] sm:$0xff]
      %v256 = vcombine.high %v254, %v254
      %vm257 = vcmask 31744
      %v259 = vsel %vm257, %v253, 0
      %vm261 = vcmask 1043456
      %v262 = vsel %vm261, %v254, 0
      %v264 = vsel %vm261, %v256, 0
      %266 = vmatprep.subr.mxu0 %v264
      %267 = vmatpush1.msra.mxu0 %v262
      %268 = vmatprep.subr.mxu0 0.0
      %269 = vmatpush1.msra.mxu0 0.0
      %270 = vmatprep.subr.mxu0 0.0
      %271 = vmatpush1.msra.mxu0 0.0
      %272 = vmatprep.subr.mxu0 0.0
      %273 = vmatpush1.msra.mxu0 0.0
      %274 = vmatprep.subr.mxu0 0.0
      %275 = vmatpush1.msra.mxu0 0.0
      %276 = vmatprep.subr.mxu0 0.0
      %277 = vmatpush1.msra.mxu0 0.0
      %278 = vmatprep.subr.mxu0 0.0
      %279 = vmatpush1.msra.mxu0 0.0
      %280 = vmatprep.subr.mxu0 0.0
      %281 = vmatpush1.msra.mxu0 0.0
      %282 = vmatprep.subr.mxu0 0.0
      %283 = vmatpush1.msra.mxu0 0.0
      %284 = vmatprep.subr.mxu0 0.0
      %285 = vmatpush1.msra.mxu0 0.0
      %286 = vmatprep.subr.mxu0 0.0
      %287 = vmatpush1.msra.mxu0 0.0
      %288 = vmatprep.subr.mxu0 0.0
      %289 = vmatpush1.msra.mxu0 0.0
      %290 = vmatprep.subr.mxu0 0.0
      %291 = vmatpush1.msra.mxu0 0.0
      %292 = vmatprep.subr.mxu0 0.0
      %293 = vmatpush1.msra.mxu0 0.0
      %294 = vmatprep.subr.mxu0 0.0
      %295 = vmatpush1.msra.mxu0 0.0
      %296 = vmatprep.subr.mxu0 0.0
      %297 = vmatpush1.msra.mxu0 0.0
      %298 = vmatprep.subr.mxu0 0.0
      %299 = vmatpush1.msra.mxu0 0.0
      %300 = vmatprep.subr.mxu0 0.0
      %301 = vmatpush1.msra.mxu0 0.0
      %302 = vmatprep.subr.mxu0 0.0
      %303 = vmatpush1.msra.mxu0 0.0
      %304 = vmatprep.subr.mxu0 0.0
      %305 = vmatpush1.msra.mxu0 0.0
      %306 = vmatprep.subr.mxu0 0.0
      %307 = vmatpush1.msra.mxu0 0.0
      %308 = vmatprep.subr.mxu0 0.0
      %309 = vmatpush1.msra.mxu0 0.0
      %310 = vmatprep.subr.mxu0 0.0
      %311 = vmatpush1.msra.mxu0 0.0
      %312 = vmatprep.subr.mxu0 0.0
      %313 = vmatpush1.msra.mxu0 0.0
      %314 = vmatprep.subr.mxu0 0.0
      %315 = vmatpush1.msra.mxu0 0.0
      %316 = vmatprep.subr.mxu0 0.0
      %317 = vmatpush1.msra.mxu0 0.0
      %318 = vmatprep.subr.mxu0 0.0
      %319 = vmatpush1.msra.mxu0 0.0
      %320 = vmatprep.subr.mxu0 0.0
      %321 = vmatpush1.msra.mxu0 0.0
      %322 = vmatprep.subr.mxu0 0.0
      %323 = vmatpush1.msra.mxu0 0.0
      %324 = vmatprep.subr.mxu0 0.0
      %325 = vmatpush1.msra.mxu0 0.0
      %326 = vmatprep.subr.mxu0 0.0
      %327 = vmatpush1.msra.mxu0 0.0
      %328 = vmatprep.subr.mxu0 0.0
      %329 = vmatpush1.msra.mxu0 0.0
      %330 = vmatprep.mubr.f32.mxu0 0.0
      %331 = vmatmul.mubr.f32.gmra.mrb[0].mxu0 %v259
      %v332 = vpop.f32.mrb[0].mxu0
      %v333 = vadd.f32 0.0, %v332
      %v334 = vpop.f32.mrb[0].mxu0
      %v335 = vadd.f32 0.0, %v334
      %336 = vdwg.mxu0
      %vm337 = vcmask 64512
      %v339 = vsel %vm337, %v250, 0
      %341 = vmatprep.subr.mxu0 %v252
      %342 = vmatpush1.msra.mxu0 %v251
      %343 = vmatprep.subr.mxu0 0.0
      %344 = vmatpush1.msra.mxu0 0.0
      %345 = vmatprep.subr.mxu0 0.0
      %346 = vmatpush1.msra.mxu0 0.0
      %347 = vmatprep.subr.mxu0 0.0
      %348 = vmatpush1.msra.mxu0 0.0
      %349 = vmatprep.subr.mxu0 0.0
      %350 = vmatpush1.msra.mxu0 0.0
      %351 = vmatprep.subr.mxu0 0.0
      %352 = vmatpush1.msra.mxu0 0.0
      %353 = vmatprep.subr.mxu0 0.0
      %354 = vmatpush1.msra.mxu0 0.0
      %355 = vmatprep.subr.mxu0 0.0
      %356 = vmatpush1.msra.mxu0 0.0
      %357 = vmatprep.subr.mxu0 0.0
      %358 = vmatpush1.msra.mxu0 0.0
      %359 = vmatprep.subr.mxu0 0.0
      %360 = vmatpush1.msra.mxu0 0.0
      %361 = vmatprep.subr.mxu0 0.0
      %362 = vmatpush1.msra.mxu0 0.0
      %363 = vmatprep.subr.mxu0 0.0
      %364 = vmatpush1.msra.mxu0 0.0
      %365 = vmatprep.subr.mxu0 0.0
      %366 = vmatpush1.msra.mxu0 0.0
      %367 = vmatprep.subr.mxu0 0.0
      %368 = vmatpush1.msra.mxu0 0.0
      %369 = vmatprep.subr.mxu0 0.0
      %370 = vmatpush1.msra.mxu0 0.0
      %371 = vmatprep.subr.mxu0 0.0
      %372 = vmatpush1.msra.mxu0 0.0
      %373 = vmatprep.subr.mxu0 0.0
      %374 = vmatpush1.msra.mxu0 0.0
      %375 = vmatprep.subr.mxu0 0.0
      %376 = vmatpush1.msra.mxu0 0.0
      %377 = vmatprep.subr.mxu0 0.0
      %378 = vmatpush1.msra.mxu0 0.0
      %379 = vmatprep.subr.mxu0 0.0
      %380 = vmatpush1.msra.mxu0 0.0
      %381 = vmatprep.subr.mxu0 0.0
      %382 = vmatpush1.msra.mxu0 0.0
      %383 = vmatprep.subr.mxu0 0.0
      %384 = vmatpush1.msra.mxu0 0.0
      %385 = vmatprep.subr.mxu0 0.0
      %386 = vmatpush1.msra.mxu0 0.0
      %387 = vmatprep.subr.mxu0 0.0
      %388 = vmatpush1.msra.mxu0 0.0
      %389 = vmatprep.subr.mxu0 0.0
      %390 = vmatpush1.msra.mxu0 0.0
      %391 = vmatprep.subr.mxu0 0.0
      %392 = vmatpush1.msra.mxu0 0.0
      %393 = vmatprep.subr.mxu0 0.0
      %394 = vmatpush1.msra.mxu0 0.0
      %395 = vmatprep.subr.mxu0 0.0
      %396 = vmatpush1.msra.mxu0 0.0
      %397 = vmatprep.subr.mxu0 0.0
      %398 = vmatpush1.msra.mxu0 0.0
      %399 = vmatprep.subr.mxu0 0.0
      %400 = vmatpush1.msra.mxu0 0.0
      %401 = vmatprep.subr.mxu0 0.0
      %402 = vmatpush1.msra.mxu0 0.0
      %403 = vmatprep.subr.mxu0 0.0
      %404 = vmatpush1.msra.mxu0 0.0
      %405 = vmatprep.mubr.f32.mxu0 0.0
      %406 = vmatmul.mubr.f32.gmra.mrb[0].mxu0 %v339
      %v407 = vpop.f32.mrb[0].mxu0
      %v408 = vadd.f32 %v333, %v407
      %v409 = vpop.f32.mrb[0].mxu0
      %v410 = vadd.f32 %v335, %v409
      %411 = vdwg.mxu0
      %v412 = vld [vmem:[%s4] sm:$0xff]
      %414 = vset.pattern.permute.xlu0 0
      %415 = vperm.xlu0 %414, %v412
      %v416 = vpop.permute.xlu0 %415
      %v418 = vadd.f32 %v408, %v416
      %v419 = vadd.f32 %v410, %v416
      %v420 = vmax.f32 %v418, 0.0
      %v421 = vmax.f32 %v419, 0.0
      %422 = vst [vmem:[%s248] sm:$0xff] %v420
      %423 = vst [vmem:[%s248 + $0x8] sm:$0xff] %v421
      %s424 = smul.u32 2, %s16
      %p425 = scmp.lt.s32.totalorder %s424, 3
      %s426 = scalar_select %p425, %s424, 3
      %s427 = smul.addr %s426, 8
      %s428 = scalar_lea.vmem %s5, %s427
      // Predicated region
      $region41: #{_lambda_.9} parent=39 // pred_check
        %p429 = pneg %p149
      $region42: #{_lambda_.9} parent=39 // pred_check_branch
        %431 = sbr.rel (%p429) target = $region44
      $region43: #{_lambda_.9} parent=39 // pred_region
        %s432 = smul.u32 2, %s16
      $region44: #{_lambda_.9} parent=39 // pred_fallthru
        _
    $region40: #{_lambda_.9} parent=5 // pred_fallthru
      _
    %p433 = scmp.le.s32.totalorder 2, %s11
    // Predicated region
    $region45: #{_lambda_.9} parent=5 // pred_check
      %p434 = pneg %p433
    $region46: #{_lambda_.9} parent=5 // pred_check_branch
      %436 = sbr.rel (%p434) target = $region48
    $region47: #{_lambda_.9} parent=5 // pred_region
      %s437 = ssub.s32 %s11, 2
      // Predicated region
      $region49: #{_lambda_.9} parent=47 // pred_check
        %p438 = pneg %p155
      $region50: #{_lambda_.9} parent=47 // pred_check_branch
        %440 = sbr.rel (%p438) target = $region52
      $region51: #{_lambda_.9} parent=47 // pred_region
        %s441 = smul.u32 2, %s17
        %p442 = scmp.lt.s32.totalorder %s441, 3
        %s443 = scalar_select %p442, %s441, 3
        %s444 = smul.addr %s443, 8
        %s445 = scalar_lea.vmem %s5, %s444
      $region52: #{_lambda_.9} parent=47 // pred_fallthru
        _
    $region48: #{_lambda_.9} parent=5 // pred_fallthru
      _
  $region6: #{_lambda_.9} parent=0 // loop_footer
    %s15 = sadd.s32 1, %s11
  $region7: #{_lambda_.9} parent=0 // loop_footer_branch
    %10 = sbr.rel target = $region3
  $region8: #{_lambda_.9} parent=0 // loop_exit
    _

// kernel: _lambda_.5
$region0: #{_lambda_.5}
  #allocation0 [shape = 'u32[]', space=smem, size = 0x4, offset = 0x4, fixed_abs, tag = 'smem constant byte address 0x4 - core index']
  #allocation1 [shape = 'u32[144,128]{1,0:T(1,128)}', space=vmem, size = 0x12000, scoped, tag = 'internal scratch']
  %s0 = inlined_call_operand.vmem [shape: f32[8,512], index: 0, kind: input, shape index: {}]
  %s1 = inlined_call_operand.vmem [shape: f32[8,8], index: 1, kind: input, shape index: {}]
  %s2 = inlined_call_operand.vmem [shape: f32[8,512], index: 2, kind: input, shape index: {}]
  %s3 = inlined_call_operand.vmem [shape: f32[8,8], index: 3, kind: input, shape index: {}]
  %s4 = inlined_call_operand.vmem [shape: f32[8,1], index: 4, kind: input, shape index: {}]
  %s5 = inlined_call_operand.vmem [shape: f32[8,512], index: 5, kind: output, shape index: {}]
  %s6 = sld [smem:[#allocation0]]
  $region53: #{_lambda_.5} parent=0
    _
  %s8 = ssub.s32 1, %s6
  %s9 = scalar_select 0, %s8, %s6
  loop: start=0, step=1, limit=4
  $region2: #{_lambda_.5} parent=0 // loop_pre_header
    _
  $region3: #{_lambda_.5} parent=0 // loop_header
    %s11 = sphi 0, %s15
    %p12 = scmp.ge.s32.totalorder %s11, 4
    %s21 = sphi 0, %s23
    %s24 = sphi 0, %s21
    %s25 = sphi 0, %s24
    %s41 = sphi 0, %s25
    %s45 = sphi 0, %s45
    %s47 = sphi 0, %s45
    %s48 = sphi 0, %s47
    %s62 = sphi 0, %s48
    %s68 = sphi 0, %s70
    %s71 = sphi 0, %s68
    %s72 = sphi 0, %s71
    %s88 = sphi 0, %s72
    %s92 = sphi 0, %s92
    %s94 = sphi 0, %s92
    %s95 = sphi 0, %s94
    %s109 = sphi 0, %s95
    %s113 = sphi 0, %s113
    %s115 = sphi 0, %s113
    %s116 = sphi 0, %s115
    %s130 = sphi 0, %s116
    %s136 = sphi 0, %s138
    %s139 = sphi 0, %s136
    %s140 = sphi 0, %s139
    %s156 = sphi 0, %s140
  $region4: #{_lambda_.5} parent=0 // loop_header_branch
    %14 = sbr.rel (%p12) target = $region8
  $region5: #{_lambda_.5} parent=0 // loop_body
    %s16 = ssub.s32 %s11, 1
    %s17 = ssub.s32 %s11, 2
    %s18 = sadd.s32 %s11, 1
    %s19 = ssub.s32 %s11, %s18
    %p20 = scmp.eq.s32.totalorder %s19, 0
    %s22 = sadd.s32 %s21, 1
    %s23 = scalar_select %p20, %s21, %s22
    %p26 = pneg %p20
    %p27 = scmp.eq.s32.totalorder %s11, 1
    %p28 = por %p26, %p27
    %p29 = scmp.ne.s32.totalorder %s21, %s24
    %p30 = scmp.eq.s32.totalorder %s11, 0
    %p31 = por %p29, %p30
    %p32 = scmp.ne.s32.totalorder %s21, %s24
    %p33 = scmp.eq.s32.totalorder %s16, 1
    %p34 = por %p32, %p33
    %p35 = scmp.ne.s32.totalorder %s24, %s25
    %p36 = scmp.eq.s32.totalorder %s16, 0
    %p37 = por %p35, %p36
    %p38 = scmp.ne.s32.totalorder %s24, %s25
    %p39 = scmp.eq.s32.totalorder %s17, 1
    %p40 = por %p38, %p39
    %p42 = scmp.ne.s32.totalorder %s25, %s41
    %p43 = scmp.eq.s32.totalorder %s17, 0
    %p44 = por %p42, %p43
    %s46 = sadd.s32 %s45, 1
    %p49 = scmp.eq.s32.totalorder %s11, 1
    %p50 = scmp.ne.s32.totalorder %s45, %s47
    %p51 = scmp.eq.s32.totalorder %s11, 0
    %p52 = por %p50, %p51
    %p53 = scmp.ne.s32.totalorder %s45, %s47
    %p54 = scmp.eq.s32.totalorder %s16, 1
    %p55 = por %p53, %p54
    %p56 = scmp.ne.s32.totalorder %s47, %s48
    %p57 = scmp.eq.s32.totalorder %s16, 0
    %p58 = por %p56, %p57
    %p59 = scmp.ne.s32.totalorder %s47, %s48
    %p60 = scmp.eq.s32.totalorder %s17, 1
    %p61 = por %p59, %p60
    %p63 = scmp.ne.s32.totalorder %s48, %s62
    %p64 = scmp.eq.s32.totalorder %s17, 0
    %p65 = por %p63, %p64
    %s66 = ssub.s32 %s11, %s18
    %p67 = scmp.eq.s32.totalorder %s66, 0
    %s69 = sadd.s32 %s68, 1
    %s70 = scalar_select %p67, %s68, %s69
    %p73 = pneg %p67
    %p74 = scmp.eq.s32.totalorder %s11, 1
    %p75 = por %p73, %p74
    %p76 = scmp.ne.s32.totalorder %s68, %s71
    %p77 = scmp.eq.s32.totalorder %s11, 0
    %p78 = por %p76, %p77
    %p79 = scmp.ne.s32.totalorder %s68, %s71
    %p80 = scmp.eq.s32.totalorder %s16, 1
    %p81 = por %p79, %p80
    %p82 = scmp.ne.s32.totalorder %s71, %s72
    %p83 = scmp.eq.s32.totalorder %s16, 0
    %p84 = por %p82, %p83
    %p85 = scmp.ne.s32.totalorder %s71, %s72
    %p86 = scmp.eq.s32.totalorder %s17, 1
    %p87 = por %p85, %p86
    %p89 = scmp.ne.s32.totalorder %s72, %s88
    %p90 = scmp.eq.s32.totalorder %s17, 0
    %p91 = por %p89, %p90
    %s93 = sadd.s32 %s92, 1
    %p96 = scmp.eq.s32.totalorder %s11, 1
    %p97 = scmp.ne.s32.totalorder %s92, %s94
    %p98 = scmp.eq.s32.totalorder %s11, 0
    %p99 = por %p97, %p98
    %p100 = scmp.ne.s32.totalorder %s92, %s94
    %p101 = scmp.eq.s32.totalorder %s16, 1
    %p102 = por %p100, %p101
    %p103 = scmp.ne.s32.totalorder %s94, %s95
    %p104 = scmp.eq.s32.totalorder %s16, 0
    %p105 = por %p103, %p104
    %p106 = scmp.ne.s32.totalorder %s94, %s95
    %p107 = scmp.eq.s32.totalorder %s17, 1
    %p108 = por %p106, %p107
    %p110 = scmp.ne.s32.totalorder %s95, %s109
    %p111 = scmp.eq.s32.totalorder %s17, 0
    %p112 = por %p110, %p111
    %s114 = sadd.s32 %s113, 1
    %p117 = scmp.eq.s32.totalorder %s11, 1
    %p118 = scmp.ne.s32.totalorder %s113, %s115
    %p119 = scmp.eq.s32.totalorder %s11, 0
    %p120 = por %p118, %p119
    %p121 = scmp.ne.s32.totalorder %s113, %s115
    %p122 = scmp.eq.s32.totalorder %s16, 1
    %p123 = por %p121, %p122
    %p124 = scmp.ne.s32.totalorder %s115, %s116
    %p125 = scmp.eq.s32.totalorder %s16, 0
    %p126 = por %p124, %p125
    %p127 = scmp.ne.s32.totalorder %s115, %s116
    %p128 = scmp.eq.s32.totalorder %s17, 1
    %p129 = por %p127, %p128
    %p131 = scmp.ne.s32.totalorder %s116, %s130
    %p132 = scmp.eq.s32.totalorder %s17, 0
    %p133 = por %p131, %p132
    %s134 = ssub.s32 %s11, %s18
    %p135 = scmp.eq.s32.totalorder %s134, 0
    %s137 = sadd.s32 %s136, 1
    %s138 = scalar_select %p135, %s136, %s137
    %p141 = pneg %p135
    %p142 = scmp.eq.s32.totalorder %s11, 1
    %p143 = por %p141, %p142
    %p144 = scmp.ne.s32.totalorder %s136, %s139
    %p145 = scmp.eq.s32.totalorder %s11, 0
    %p146 = por %p144, %p145
    %p147 = scmp.ne.s32.totalorder %s136, %s139
    %p148 = scmp.eq.s32.totalorder %s16, 1
    %p149 = por %p147, %p148
    %p150 = scmp.ne.s32.totalorder %s139, %s140
    %p151 = scmp.eq.s32.totalorder %s16, 0
    %p152 = por %p150, %p151
    %p153 = scmp.ne.s32.totalorder %s139, %s140
    %p154 = scmp.eq.s32.totalorder %s17, 1
    %p155 = por %p153, %p154
    %p157 = scmp.ne.s32.totalorder %s140, %s156
    %p158 = scmp.eq.s32.totalorder %s17, 0
    %p159 = por %p157, %p158
    %p160 = scmp.le.s32.totalorder 1, %s11
    %p161 = scmp.lt.s32.totalorder %s11, 3
    %p162 = pnand %p160, %p161
    %p163 = pneg %p162
    // Predicated region
    $region9: #{_lambda_.5} parent=5 // pred_check
      _
    $region10: #{_lambda_.5} parent=5 // pred_check_branch
      %165 = sbr.rel (%p162) target = $region12
    $region11: #{_lambda_.5} parent=5 // pred_region
      %s166 = ssub.s32 %s11, 1
      // Predicated region
      $region13: #{_lambda_.5} parent=11 // pred_check
        %p167 = pneg %p58
      $region14: #{_lambda_.5} parent=11 // pred_check_branch
        %169 = sbr.rel (%p167) target = $region16
      $region15: #{_lambda_.5} parent=11 // pred_region
        _
      $region16: #{_lambda_.5} parent=11 // pred_fallthru
        _
      // Predicated region
      $region17: #{_lambda_.5} parent=11 // pred_check
        %p170 = pneg %p105
      $region18: #{_lambda_.5} parent=11 // pred_check_branch
        %172 = sbr.rel (%p170) target = $region20
      $region19: #{_lambda_.5} parent=11 // pred_region
        _
      $region20: #{_lambda_.5} parent=11 // pred_fallthru
        _
      // Predicated region
      $region21: #{_lambda_.5} parent=11 // pred_check
        %p173 = pneg %p126
      $region22: #{_lambda_.5} parent=11 // pred_check_branch
        %175 = sbr.rel (%p173) target = $region24
      $region23: #{_lambda_.5} parent=11 // pred_region
        _
      $region24: #{_lambda_.5} parent=11 // pred_fallthru
        _
    $region12: #{_lambda_.5} parent=5 // pred_fallthru
      _
    %p176 = scmp.lt.s32.totalorder %s11, 2
    // Predicated region
    $region25: #{_lambda_.5} parent=5 // pred_check
      %p177 = pneg %p176
    $region26: #{_lambda_.5} parent=5 // pred_check_branch
      %179 = sbr.rel (%p177) target = $region28
    $region27: #{_lambda_.5} parent=5 // pred_region
      // Predicated region
      $region29: #{_lambda_.5} parent=27 // pred_check
        %p180 = pneg %p31
      $region30: #{_lambda_.5} parent=27 // pred_check_branch
        %182 = sbr.rel (%p180) target = $region32
      $region31: #{_lambda_.5} parent=27 // pred_region
        %s183 = smul.u32 2, %s11
        %p184 = scmp.lt.s32.totalorder %s183, 3
        %s185 = scalar_select %p184, %s183, 3
        %s186 = smul.addr %s185, 8
        %s187 = scalar_lea.vmem %s0, %s186
        %s188 = smul.u32 2, %s11
      $region32: #{_lambda_.5} parent=27 // pred_fallthru
        _
      // Predicated region
      $region33: #{_lambda_.5} parent=27 // pred_check
        %p189 = pneg %p78
      $region34: #{_lambda_.5} parent=27 // pred_check_branch
        %191 = sbr.rel (%p189) target = $region36
      $region35: #{_lambda_.5} parent=27 // pred_region
        %s192 = smul.u32 2, %s11
        %p193 = scmp.lt.s32.totalorder %s192, 3
        %s194 = scalar_select %p193, %s192, 3
        %s195 = smul.addr %s194, 8
        %s196 = scalar_lea.vmem %s2, %s195
        %s197 = smul.u32 2, %s11
      $region36: #{_lambda_.5} parent=27 // pred_fallthru
        _
    $region28: #{_lambda_.5} parent=5 // pred_fallthru
      _
    %p198 = scmp.le.s32.totalorder 1, %s11
    %p199 = scmp.lt.s32.totalorder %s11, 3
    %p200 = pnand %p198, %p199
    %p201 = pneg %p200
    // Predicated region
    $region37: #{_lambda_.5} parent=5 // pred_check
      _
    $region38: #{_lambda_.5} parent=5 // pred_check_branch
      %203 = sbr.rel (%p200) target = $region40
    $region39: #{_lambda_.5} parent=5 // pred_region
      %s204 = ssub.s32 %s11, 1
      %s205 = smul.u32 2, %s16
      %p206 = scmp.lt.s32.totalorder %s205, 3
      %s207 = scalar_select %p206, %s205, 3
      %s208 = smul.addr %s207, 8
      %s209 = scalar_lea.vmem %s0, %s208
      %p210 = pneg %p37
      %p211 = pneg %p34
      %p212 = pneg %p58
      %p213 = pneg %p55
      %s214 = smul.u32 2, %s16
      %p215 = scmp.lt.s32.totalorder %s214, 3
      %s216 = scalar_select %p215, %s214, 3
      %s217 = smul.addr %s216, 8
      %s218 = scalar_lea.vmem %s2, %s217
      %p219 = pneg %p84
      %p220 = pneg %p81
      %p221 = pneg %p105
      %p222 = pneg %p102
      %p223 = pneg %p126
      %p224 = pneg %p123
      %p225 = pneg %p152
      %p226 = pneg %p149
      %s227 = smul.u32 2, %s16
      %p228 = scmp.lt.s32.totalorder %s227, 3
      %s229 = scalar_select %p228, %s227, 3
      %s230 = smul.addr %s229, 8
      %s231 = scalar_lea.vmem %s5, %s230
      %s232 = smul.u32 2, %s16
      %p233 = scmp.lt.s32.totalorder %s232, 3
      %s234 = scalar_select %p233, %s232, 3
      %s235 = smul.addr %s234, 8
      %s236 = scalar_lea.vmem %s0, %s235
      %s237 = smul.u32 2, %s16
      %s238 = smul.u32 2, %s16
      %p239 = scmp.lt.s32.totalorder %s238, 3
      %s240 = scalar_select %p239, %s238, 3
      %s241 = smul.addr %s240, 8
      %s242 = scalar_lea.vmem %s2, %s241
      %s243 = smul.u32 2, %s16
      %s244 = smul.u32 2, %s16
      %p245 = scmp.lt.s32.totalorder %s244, 3
      %s246 = scalar_select %p245, %s244, 3
      %s247 = smul.addr %s246, 8
      %s248 = scalar_lea.vmem %s5, %s247
      %s249 = smul.u32 2, %s16
      %v250 = vld [vmem:[%s1] sm:$0xff]
      %v251 = vld [vmem:[%s236] sm:$0xff]
      %v252 = vld [vmem:[%s236 + $0x8] sm:$0xff]
      %v253 = vld [vmem:[%s3] sm:$0xff]
      %v254 = vld [vmem:[%s242] sm:$0xff]
      %v255 = vld [vmem:[%s242 + $0x8] sm:$0xff]
      %vm256 = vcmask 64512
      %v258 = vsel %vm256, %v253, 0
      %260 = vmatprep.subr.mxu0 %v255
      %261 = vmatpush1.msra.mxu0 %v254
      %262 = vmatprep.subr.mxu0 0.0
      %263 = vmatpush1.msra.mxu0 0.0
      %264 = vmatprep.subr.mxu0 0.0
      %265 = vmatpush1.msra.mxu0 0.0
      %266 = vmatprep.subr.mxu0 0.0
      %267 = vmatpush1.msra.mxu0 0.0
      %268 = vmatprep.subr.mxu0 0.0
      %269 = vmatpush1.msra.mxu0 0.0
      %270 = vmatprep.subr.mxu0 0.0
      %271 = vmatpush1.msra.mxu0 0.0
      %272 = vmatprep.subr.mxu0 0.0
      %273 = vmatpush1.msra.mxu0 0.0
      %274 = vmatprep.subr.mxu0 0.0
      %275 = vmatpush1.msra.mxu0 0.0
      %276 = vmatprep.subr.mxu0 0.0
      %277 = vmatpush1.msra.mxu0 0.0
      %278 = vmatprep.subr.mxu0 0.0
      %279 = vmatpush1.msra.mxu0 0.0
      %280 = vmatprep.subr.mxu0 0.0
      %281 = vmatpush1.msra.mxu0 0.0
      %282 = vmatprep.subr.mxu0 0.0
      %283 = vmatpush1.msra.mxu0 0.0
      %284 = vmatprep.subr.mxu0 0.0
      %285 = vmatpush1.msra.mxu0 0.0
      %286 = vmatprep.subr.mxu0 0.0
      %287 = vmatpush1.msra.mxu0 0.0
      %288 = vmatprep.subr.mxu0 0.0
      %289 = vmatpush1.msra.mxu0 0.0
      %290 = vmatprep.subr.mxu0 0.0
      %291 = vmatpush1.msra.mxu0 0.0
      %292 = vmatprep.subr.mxu0 0.0
      %293 = vmatpush1.msra.mxu0 0.0
      %294 = vmatprep.subr.mxu0 0.0
      %295 = vmatpush1.msra.mxu0 0.0
      %296 = vmatprep.subr.mxu0 0.0
      %297 = vmatpush1.msra.mxu0 0.0
      %298 = vmatprep.subr.mxu0 0.0
      %299 = vmatpush1.msra.mxu0 0.0
      %300 = vmatprep.subr.mxu0 0.0
      %301 = vmatpush1.msra.mxu0 0.0
      %302 = vmatprep.subr.mxu0 0.0
      %303 = vmatpush1.msra.mxu0 0.0
      %304 = vmatprep.subr.mxu0 0.0
      %305 = vmatpush1.msra.mxu0 0.0
      %306 = vmatprep.subr.mxu0 0.0
      %307 = vmatpush1.msra.mxu0 0.0
      %308 = vmatprep.subr.mxu0 0.0
      %309 = vmatpush1.msra.mxu0 0.0
      %310 = vmatprep.subr.mxu0 0.0
      %311 = vmatpush1.msra.mxu0 0.0
      %312 = vmatprep.subr.mxu0 0.0
      %313 = vmatpush1.msra.mxu0 0.0
      %314 = vmatprep.subr.mxu0 0.0
      %315 = vmatpush1.msra.mxu0 0.0
      %316 = vmatprep.subr.mxu0 0.0
      %317 = vmatpush1.msra.mxu0 0.0
      %318 = vmatprep.subr.mxu0 0.0
      %319 = vmatpush1.msra.mxu0 0.0
      %320 = vmatprep.subr.mxu0 0.0
      %321 = vmatpush1.msra.mxu0 0.0
      %322 = vmatprep.subr.mxu0 0.0
      %323 = vmatpush1.msra.mxu0 0.0
      %324 = vmatprep.mubr.f32.mxu0 0.0
      %325 = vmatmul.mubr.f32.gmra.mrb[0].mxu0 %v258
      %v326 = vpop.f32.mrb[0].mxu0
      %v327 = vadd.f32 0.0, %v326
      %v328 = vpop.f32.mrb[0].mxu0
      %v329 = vadd.f32 0.0, %v328
      %330 = vdwg.mxu0
      %v332 = vsel %vm256, %v250, 0
      %334 = vmatprep.subr.mxu0 %v252
      %335 = vmatpush1.msra.mxu0 %v251
      %336 = vmatprep.subr.mxu0 0.0
      %337 = vmatpush1.msra.mxu0 0.0
      %338 = vmatprep.subr.mxu0 0.0
      %339 = vmatpush1.msra.mxu0 0.0
      %340 = vmatprep.subr.mxu0 0.0
      %341 = vmatpush1.msra.mxu0 0.0
      %342 = vmatprep.subr.mxu0 0.0
      %343 = vmatpush1.msra.mxu0 0.0
      %344 = vmatprep.subr.mxu0 0.0
      %345 = vmatpush1.msra.mxu0 0.0
      %346 = vmatprep.subr.mxu0 0.0
      %347 = vmatpush1.msra.mxu0 0.0
      %348 = vmatprep.subr.mxu0 0.0
      %349 = vmatpush1.msra.mxu0 0.0
      %350 = vmatprep.subr.mxu0 0.0
      %351 = vmatpush1.msra.mxu0 0.0
      %352 = vmatprep.subr.mxu0 0.0
      %353 = vmatpush1.msra.mxu0 0.0
      %354 = vmatprep.subr.mxu0 0.0
      %355 = vmatpush1.msra.mxu0 0.0
      %356 = vmatprep.subr.mxu0 0.0
      %357 = vmatpush1.msra.mxu0 0.0
      %358 = vmatprep.subr.mxu0 0.0
      %359 = vmatpush1.msra.mxu0 0.0
      %360 = vmatprep.subr.mxu0 0.0
      %361 = vmatpush1.msra.mxu0 0.0
      %362 = vmatprep.subr.mxu0 0.0
      %363 = vmatpush1.msra.mxu0 0.0
      %364 = vmatprep.subr.mxu0 0.0
      %365 = vmatpush1.msra.mxu0 0.0
      %366 = vmatprep.subr.mxu0 0.0
      %367 = vmatpush1.msra.mxu0 0.0
      %368 = vmatprep.subr.mxu0 0.0
      %369 = vmatpush1.msra.mxu0 0.0
      %370 = vmatprep.subr.mxu0 0.0
      %371 = vmatpush1.msra.mxu0 0.0
      %372 = vmatprep.subr.mxu0 0.0
      %373 = vmatpush1.msra.mxu0 0.0
      %374 = vmatprep.subr.mxu0 0.0
      %375 = vmatpush1.msra.mxu0 0.0
      %376 = vmatprep.subr.mxu0 0.0
      %377 = vmatpush1.msra.mxu0 0.0
      %378 = vmatprep.subr.mxu0 0.0
      %379 = vmatpush1.msra.mxu0 0.0
      %380 = vmatprep.subr.mxu0 0.0
      %381 = vmatpush1.msra.mxu0 0.0
      %382 = vmatprep.subr.mxu0 0.0
      %383 = vmatpush1.msra.mxu0 0.0
      %384 = vmatprep.subr.mxu0 0.0
      %385 = vmatpush1.msra.mxu0 0.0
      %386 = vmatprep.subr.mxu0 0.0
      %387 = vmatpush1.msra.mxu0 0.0
      %388 = vmatprep.subr.mxu0 0.0
      %389 = vmatpush1.msra.mxu0 0.0
      %390 = vmatprep.subr.mxu0 0.0
      %391 = vmatpush1.msra.mxu0 0.0
      %392 = vmatprep.subr.mxu0 0.0
      %393 = vmatpush1.msra.mxu0 0.0
      %394 = vmatprep.subr.mxu0 0.0
      %395 = vmatpush1.msra.mxu0 0.0
      %396 = vmatprep.subr.mxu0 0.0
      %397 = vmatpush1.msra.mxu0 0.0
      %398 = vmatprep.mubr.f32.mxu0 0.0
      %399 = vmatmul.mubr.f32.gmra.mrb[0].mxu0 %v332
      %v400 = vpop.f32.mrb[0].mxu0
      %v401 = vadd.f32 %v327, %v400
      %v402 = vpop.f32.mrb[0].mxu0
      %v403 = vadd.f32 %v329, %v402
      %404 = vdwg.mxu0
      %v405 = vld [vmem:[%s4] sm:$0xff]
      %407 = vset.pattern.permute.xlu0 0
      %408 = vperm.xlu0 %407, %v405
      %v409 = vpop.permute.xlu0 %408
      %v411 = vadd.f32 %v401, %v409
      %v412 = vadd.f32 %v403, %v409
      %v413 = vmax.f32 %v411, 0.0
      %v414 = vmax.f32 %v412, 0.0
      %415 = vst [vmem:[%s248] sm:$0xff] %v413
      %416 = vst [vmem:[%s248 + $0x8] sm:$0xff] %v414
      %s417 = smul.u32 2, %s16
      %p418 = scmp.lt.s32.totalorder %s417, 3
      %s419 = scalar_select %p418, %s417, 3
      %s420 = smul.addr %s419, 8
      %s421 = scalar_lea.vmem %s5, %s420
      // Predicated region
      $region41: #{_lambda_.5} parent=39 // pred_check
        %p422 = pneg %p149
      $region42: #{_lambda_.5} parent=39 // pred_check_branch
        %424 = sbr.rel (%p422) target = $region44
      $region43: #{_lambda_.5} parent=39 // pred_region
        %s425 = smul.u32 2, %s16
      $region44: #{_lambda_.5} parent=39 // pred_fallthru
        _
    $region40: #{_lambda_.5} parent=5 // pred_fallthru
      _
    %p426 = scmp.le.s32.totalorder 2, %s11
    // Predicated region
    $region45: #{_lambda_.5} parent=5 // pred_check
      %p427 = pneg %p426
    $region46: #{_lambda_.5} parent=5 // pred_check_branch
      %429 = sbr.rel (%p427) target = $region48
    $region47: #{_lambda_.5} parent=5 // pred_region
      %s430 = ssub.s32 %s11, 2
      // Predicated region
      $region49: #{_lambda_.5} parent=47 // pred_check
        %p431 = pneg %p155
      $region50: #{_lambda_.5} parent=47 // pred_check_branch
        %433 = sbr.rel (%p431) target = $region52
      $region51: #{_lambda_.5} parent=47 // pred_region
        %s434 = smul.u32 2, %s17
        %p435 = scmp.lt.s32.totalorder %s434, 3
        %s436 = scalar_select %p435, %s434, 3
        %s437 = smul.addr %s436, 8
        %s438 = scalar_lea.vmem %s5, %s437
      $region52: #{_lambda_.5} parent=47 // pred_fallthru
        _
    $region48: #{_lambda_.5} parent=5 // pred_fallthru
      _
  $region6: #{_lambda_.5} parent=0 // loop_footer
    %s15 = sadd.s32 1, %s11
  $region7: #{_lambda_.5} parent=0 // loop_footer_branch
    %10 = sbr.rel target = $region3
  $region8: #{_lambda_.5} parent=0 // loop_exit
    _

</llo_original>
